<compile_context>
chip_gen: v5e
topology: v5e:2x2
jax: 0.10.0
libtpu: 0.0.40
codegen_flags: <defaults>
</compile_context>

<pallas_src>
import math
from functools import partial

import jax
import jax.numpy as jnp
from jax.experimental import pallas as pl
from jax.experimental.pallas import tpu as pltpu

VMEM_SPEC = pl.BlockSpec(memory_space=pltpu.MemorySpace.VMEM)


# ----------------------------------------------------------------------------
# Pallas kernels: fused GRUCell + MLP head(s), all ns columns stacked in batch.
# Matmul operands are bf16; accumulation, gates, biases, nonlinearities are f32.
# ----------------------------------------------------------------------------
def _gru_update(x_ref, h, wih_ref, whh_ref, bih_ref, bhh_ref):
    """PyTorch GRUCell semantics (gate order r, z, n)."""
    H = h.shape[-1]
    gi = jnp.dot(x_ref[...].astype(jnp.bfloat16), wih_ref[...],
                 preferred_element_type=jnp.float32) + bih_ref[...]
    gh = jnp.dot(h.astype(jnp.bfloat16), whh_ref[...],
                 preferred_element_type=jnp.float32) + bhh_ref[...]
    r = jax.nn.sigmoid(gi[:, 0:H] + gh[:, 0:H])
    z = jax.nn.sigmoid(gi[:, H:2 * H] + gh[:, H:2 * H])
    n = jnp.tanh(gi[:, 2 * H:3 * H] + r * gh[:, 2 * H:3 * H])
    return (1.0 - z) * n + z * h


def _gru_mlp2_kernel(x_ref, h_ref, wih_ref, whh_ref, bih_ref, bhh_ref,
                     w1_ref, b1_ref, w2s_ref, b2s_ref, w2t_ref, b2t_ref,
                     h_out_ref, ys_out_ref, yt_out_ref):
    """Side B: GRU update, then sensing + data-tx MLP heads.
    First layers are concatenated along N (one (M,H)@(H,2048) dot); second
    layers are two independent (M,1024)@(1024,2n) dots with true-width outputs."""
    h_new = _gru_update(x_ref, h_ref[...], wih_ref, whh_ref, bih_ref, bhh_ref)
    h_out_ref[...] = h_new
    h1 = jnp.dot(h_new.astype(jnp.bfloat16), w1_ref[...],
                 preferred_element_type=jnp.float32) + b1_ref[...]
    h1 = jnp.maximum(h1, 0.0).astype(jnp.bfloat16)
    K = w2s_ref.shape[0]
    ys_out_ref[...] = jnp.dot(h1[:, 0:K], w2s_ref[...],
                              preferred_element_type=jnp.float32) + b2s_ref[...]
    yt_out_ref[...] = jnp.dot(h1[:, K:2 * K], w2t_ref[...],
                              preferred_element_type=jnp.float32) + b2t_ref[...]


def _gru_mlp1_kernel(x_ref, h_ref, wih_ref, whh_ref, bih_ref, bhh_ref,
                     w1_ref, b1_ref, w2_ref, b2_ref,
                     h_out_ref, y_out_ref):
    """Side A: GRU update + data-tx MLP head only (the side-A sensing head is
    dead when return_sensing=False)."""
    h_new = _gru_update(x_ref, h_ref[...], wih_ref, whh_ref, bih_ref, bhh_ref)
    h_out_ref[...] = h_new
    h1 = jnp.dot(h_new.astype(jnp.bfloat16), w1_ref[...],
                 preferred_element_type=jnp.float32) + b1_ref[...]
    h1 = jnp.maximum(h1, 0.0).astype(jnp.bfloat16)
    y_out_ref[...] = jnp.dot(h1, w2_ref[...],
                             preferred_element_type=jnp.float32) + b2_ref[...]


def gru_mlp_step_b(x, h, fp):
    """x: (ns*bsz, 2*nb) f32, h: (ns*bsz, hsz) f32 -> (h_new, y_sense, y_tx)."""
    M, H = h.shape
    no = fp["w2s"].shape[1]
    return pl.pallas_call(
        _gru_mlp2_kernel,
        out_shape=(jax.ShapeDtypeStruct((M, H), jnp.float32),
                   jax.ShapeDtypeStruct((M, no), jnp.float32),
                   jax.ShapeDtypeStruct((M, no), jnp.float32)),
        in_specs=[VMEM_SPEC] * 12,
        out_specs=(VMEM_SPEC, VMEM_SPEC, VMEM_SPEC),
        input_output_aliases={1: 0},          # hidden state updated in place
    )(x, h, fp["wih"], fp["whh"], fp["bih"], fp["bhh"],
      fp["w1"], fp["b1"], fp["w2s"], fp["b2s"], fp["w2t"], fp["b2t"])


def gru_mlp_step_a(x, h, fp):
    """x: (ns*bsz, 2*na) f32, h: (ns*bsz, hsz) f32 -> (h_new, y_tx)."""
    M, H = h.shape
    no = fp["w2"].shape[1]
    return pl.pallas_call(
        _gru_mlp1_kernel,
        out_shape=(jax.ShapeDtypeStruct((M, H), jnp.float32),
                   jax.ShapeDtypeStruct((M, no), jnp.float32)),
        in_specs=[VMEM_SPEC] * 10,
        out_specs=(VMEM_SPEC, VMEM_SPEC),
        input_output_aliases={1: 0},
    )(x, h, fp["wih"], fp["whh"], fp["bih"], fp["bhh"],
      fp["w1"], fp["b1"], fp["w2"], fp["b2"])


# ----------------------------------------------------------------------------
# Plain-JAX glue (tiny sequential math, left to XLA on purpose)
# ----------------------------------------------------------------------------
def proj(u, v):
    uh = jnp.conj(jnp.swapaxes(u, -1, -2))
    return (uh @ v) / (uh @ u) * u


def orthogonal(x, ns):
    outs = []
    for ii in range(ns):
        x_i = x[:, :, ii:ii + 1]
        for jj in range(ii):
            x_j = x[:, :, jj:jj + 1]      # classical GS vs ORIGINAL columns, as in reference
            x_i = x_i - proj(x_j, x_i)
        x_i = x_i / jnp.linalg.norm(x_i, axis=1, keepdims=True)
        outs.append(x_i)
    return jnp.concatenate(outs, axis=2)


def compute_logdet_Y(Wa, Wb, H):
    # TODO(synk): compute_logdet_Y is referenced but not defined in the provided
    # source; using the standard objective logdet(I + G G^H) with G = Wb^H H Wa.
    G = jnp.einsum('bns,bnm,bmt->bst', jnp.conj(Wb), H, Wa)
    ns = G.shape[-1]
    Y = jnp.eye(ns, dtype=G.dtype)[None] + G @ jnp.conj(jnp.swapaxes(G, -1, -2))
    det = jnp.linalg.det(Y)                      # closed-form for 2x2 / 3x3
    return jnp.mean(jnp.log(jnp.real(det)))


def stack_columns(y):
    """(bsz, n, ns) c64 -> (ns*bsz, 2n) f32, layout [Re | Im]."""
    bsz, n, ns = y.shape
    yc = jnp.moveaxis(y, 2, 0)                   # (ns, bsz, n)
    return jnp.concatenate([jnp.real(yc), jnp.imag(yc)],
                           axis=-1).reshape(ns * bsz, 2 * n).astype(jnp.float32)


def cols_to_complex(out, n, ns, bsz):
    """(ns*bsz, 2n) f32 MLP output -> (bsz, n, ns) c64."""
    c = jax.lax.complex(out[:, 0:n], out[:, n:2 * n])
    return jnp.transpose(c.reshape(ns, bsz, n), (1, 2, 0))


def crandn(key, shape):
    """Mimics torch.randn(..., dtype=complex64): real/imag ~ N(0, 1/2)."""
    k1, k2 = jax.random.split(key)
    s = jnp.float32(math.sqrt(0.5))
    return jax.lax.complex(jax.random.normal(k1, shape, jnp.float32) * s,
                           jax.random.normal(k2, shape, jnp.float32) * s)


# ----------------------------------------------------------------------------
# Parameters (deterministic synthetic init; shapes mirror the PyTorch __init__)
# ----------------------------------------------------------------------------
def init_params(key, hsz, na, nb, ns):
    keys = jax.random.split(key, 8)

    def uni(k, shape, bound):
        return jax.random.uniform(k, shape, jnp.float32, -bound, bound)

    def init_gru(k, din, h):
        k1, k2, k3, k4 = jax.random.split(k, 4)
        bd = 1.0 / math.sqrt(h)
        return dict(wih_t=uni(k1, (din, 3 * h), bd),     # transposed W_ih
                    whh_t=uni(k2, (h, 3 * h), bd),       # transposed W_hh
                    bih=uni(k3, (1, 3 * h), bd),
                    bhh=uni(k4, (1, 3 * h), bd))

    def init_mlp(k, din, n):
        k1, k2, k3, k4 = jax.random.split(k, 4)
        b1 = 1.0 / math.sqrt(din)
        b2 = 1.0 / math.sqrt(1024)
        return dict(w1_t=uni(k1, (din, 1024), b1),
                    b1=uni(k2, (1, 1024), b1),
                    w2_t=uni(k3, (1024, 2 * n), b2),
                    b2=uni(k4, (1, 2 * n), b2))

    kwr, kwi = jax.random.split(keys[6], 2)
    s = jnp.float32(math.sqrt(0.5))
    Wa = jax.lax.complex(jax.random.normal(kwr, (na, ns), jnp.float32) * s,
                         jax.random.normal(kwi, (na, ns), jnp.float32) * s)
    Wa = Wa / jnp.linalg.norm(Wa, axis=0, keepdims=True)

    return dict(cell_a=init_gru(keys[0], 2 * na, hsz),
                cell_b=init_gru(keys[1], 2 * nb, hsz),
                mlp_a=init_mlp(keys[2], hsz, na),    # only used when return_sensing=True
                mlp_b=init_mlp(keys[3], hsz, nb),
                mlp_a1=init_mlp(keys[4], hsz, na),
                mlp_b1=init_mlp(keys[5], hsz, nb),
                init_Wa=Wa)


# Weight packing is done ONCE, outside the jitted forward (hoisted per review).
def pack_side_b(params):
    cb = params["cell_b"]
    return dict(
        wih=cb["wih_t"].astype(jnp.bfloat16),
        whh=cb["whh_t"].astype(jnp.bfloat16),
        bih=cb["bih"], bhh=cb["bhh"],
        # sensing + data-tx first layers concatenated along N (single dot)
        w1=jnp.concatenate([params["mlp_b"]["w1_t"],
                            params["mlp_b1"]["w1_t"]], axis=1).astype(jnp.bfloat16),
        b1=jnp.concatenate([params["mlp_b"]["b1"], params["mlp_b1"]["b1"]], axis=1),
        # second layers kept separate (no block-diagonal zeros, no lane padding)
        w2s=params["mlp_b"]["w2_t"].astype(jnp.bfloat16),
        b2s=params["mlp_b"]["b2"],
        w2t=params["mlp_b1"]["w2_t"].astype(jnp.bfloat16),
        b2t=params["mlp_b1"]["b2"])


def pack_side_a(params):
    ca = params["cell_a"]
    return dict(
        wih=ca["wih_t"].astype(jnp.bfloat16),
        whh=ca["whh_t"].astype(jnp.bfloat16),
        bih=ca["bih"], bhh=ca["bhh"],
        w1=params["mlp_a1"]["w1_t"].astype(jnp.bfloat16),
        b1=params["mlp_a1"]["b1"],
        w2=params["mlp_a1"]["w2_t"].astype(jnp.bfloat16),
        b2=params["mlp_a1"]["b2"])


# ----------------------------------------------------------------------------
# Forward pass (semantics of ActiveSensingFramework.forward, return_sensing=False)
# ----------------------------------------------------------------------------
@partial(jax.jit, static_argnums=(5, 6))
def active_sensing_forward(fp_a, fp_b, init_Wa, channel, noise_key, sigma2, n_stages):
    bsz, nb, na = channel.shape
    ns = init_Wa.shape[1]
    hsz = fp_a["whh"].shape[0]

    hs_a = jnp.ones((ns * bsz, hsz), jnp.float32)     # ns column states stacked in batch
    hs_b = jnp.ones((ns * bsz, hsz), jnp.float32)

    Fa_tx = init_Wa / jnp.linalg.norm(init_Wa, axis=0, keepdims=True)
    Fa_tx = jnp.broadcast_to(Fa_tx[None], (bsz, na, ns))

    Hc = channel
    Hh = jnp.conj(jnp.swapaxes(channel, -1, -2))      # channel.mH
    sq = math.sqrt(sigma2)

    # All per-stage noise in one RNG draw per side (removes 4*n_stages tiny launches).
    kb, ka = jax.random.split(noise_key)
    noise_b = crandn(kb, (n_stages, bsz, nb, ns)) * sq
    noise_a = crandn(ka, (n_stages, bsz, na, ns)) * sq

    loss = jnp.float32(0.0)
    Fb_tx = None

    for i in range(n_stages):
        # --- A transmits to B ---  (tiny complex matmul: left to XLA on purpose)
        yb = Hc @ Fa_tx + noise_b[i]
        hs_b, out_bs, out_bt = gru_mlp_step_b(stack_columns(yb), hs_b, fp_b)
        Fb_sense = orthogonal(cols_to_complex(out_bs, nb, ns, bsz) + yb, ns)

        # --- B transmits to A ---
        ya = Hh @ Fb_sense + noise_a[i]
        hs_a, out_at = gru_mlp_step_a(stack_columns(ya), hs_a, fp_a)
        # (side-A sensing beamformer / Fa_tx_all is dead for return_sensing=False)

        # --- data transmission beamformers (overwrite Fa_tx / Fb_tx, as in reference) ---
        Fb_tx = orthogonal(cols_to_complex(out_bt, nb, ns, bsz) + yb, ns)
        Fa_tx = orthogonal(cols_to_complex(out_at, na, ns, bsz) + ya, ns)

        loss = loss - compute_logdet_Y(Fa_tx, Fb_tx, Hc)

    return Fa_tx, Fb_tx, loss


# ----------------------------------------------------------------------------
if __name__ == "__main__":
    hsz, n_stages, ns, na, nb = 128, 2, 2, 8, 8
    bsz = 2
    sigma2 = 0.1

    root = jax.random.PRNGKey(0)
    kp, kc, kn = jax.random.split(root, 3)

    params = init_params(kp, hsz, na, nb, ns)
    fp_a = pack_side_a(params)        # packed once, outside the jit
    fp_b = pack_side_b(params)
    channel = crandn(kc, (bsz, nb, na))               # complex64 channel

    Fa_tx, Fb_tx, loss = active_sensing_forward(fp_a, fp_b, params["init_Wa"],
                                                channel, kn, sigma2, n_stages)
    jax.block_until_ready((Fa_tx, Fb_tx, loss))
    assert Fa_tx.shape == (bsz, na, ns) and Fb_tx.shape == (bsz, nb, ns)
    assert bool(jnp.isfinite(loss))
    print("KERNEL_OK")
</pallas_src>

<mosaic_0001>
module attributes {stable_mosaic.version = 11 : i64} {
  func.func @_gru_mlp2_kernel(%arg0: memref<4x16xf32, #tpu.memory_space<vmem>>, %arg1: memref<4x128xf32, #tpu.memory_space<vmem>>, %arg2: memref<16x384xbf16, #tpu.memory_space<vmem>>, %arg3: memref<128x384xbf16, #tpu.memory_space<vmem>>, %arg4: memref<1x384xf32, #tpu.memory_space<vmem>>, %arg5: memref<1x384xf32, #tpu.memory_space<vmem>>, %arg6: memref<128x2048xbf16, #tpu.memory_space<vmem>>, %arg7: memref<1x2048xf32, #tpu.memory_space<vmem>>, %arg8: memref<1024x16xbf16, #tpu.memory_space<vmem>>, %arg9: memref<1x16xf32, #tpu.memory_space<vmem>>, %arg10: memref<1024x16xbf16, #tpu.memory_space<vmem>>, %arg11: memref<1x16xf32, #tpu.memory_space<vmem>>, %arg12: memref<4x128xf32, #tpu.memory_space<vmem>>, %arg13: memref<4x16xf32, #tpu.memory_space<vmem>>, %arg14: memref<4x16xf32, #tpu.memory_space<vmem>>) attributes {dimension_semantics = [], scalar_prefetch = 0 : i64, scratch_operands = 0 : i64, tpu.core_type = #tpu.core_type<tc>} {
    %c0 = arith.constant 0 : index
    %c0_0 = arith.constant 0 : index
    %0 = vector.load %arg1[%c0, %c0_0] : memref<4x128xf32, #tpu.memory_space<vmem>>, vector<4x128xf32>
    %c0_1 = arith.constant 0 : index
    %c0_2 = arith.constant 0 : index
    %1 = vector.load %arg0[%c0_1, %c0_2] : memref<4x16xf32, #tpu.memory_space<vmem>>, vector<4x16xf32>
    %2 = arith.truncf %1 : vector<4x16xf32> to vector<4x16xbf16>
    %c0_3 = arith.constant 0 : index
    %c0_4 = arith.constant 0 : index
    %3 = vector.load %arg2[%c0_3, %c0_4] : memref<16x384xbf16, #tpu.memory_space<vmem>>, vector<16x384xbf16>
    %cst = arith.constant dense<0.000000e+00> : vector<4x384xf32>
    %4 = tpu.matmul %2, %3, %cst {dimension_numbers = #tpu.dot_dimension_numbers<[1], [0], [0], [1], [0, 0, 1, 1], [], []>} : vector<4x16xbf16>, vector<16x384xbf16>, vector<4x384xf32> -> vector<4x384xf32>
    %c0_5 = arith.constant 0 : index
    %c0_6 = arith.constant 0 : index
    %5 = vector.load %arg4[%c0_5, %c0_6] : memref<1x384xf32, #tpu.memory_space<vmem>>, vector<1x384xf32>
    %6 = vector.broadcast %5 : vector<1x384xf32> to vector<4x384xf32>
    %7 = arith.addf %4, %6 : vector<4x384xf32>
    %8 = arith.truncf %0 : vector<4x128xf32> to vector<4x128xbf16>
    %c0_7 = arith.constant 0 : index
    %c0_8 = arith.constant 0 : index
    %9 = vector.load %arg3[%c0_7, %c0_8] : memref<128x384xbf16, #tpu.memory_space<vmem>>, vector<128x384xbf16>
    %cst_9 = arith.constant dense<0.000000e+00> : vector<4x384xf32>
    %10 = tpu.matmul %8, %9, %cst_9 {dimension_numbers = #tpu.dot_dimension_numbers<[1], [0], [0], [1], [0, 0, 1, 1], [], []>} : vector<4x128xbf16>, vector<128x384xbf16>, vector<4x384xf32> -> vector<4x384xf32>
    %c0_10 = arith.constant 0 : index
    %c0_11 = arith.constant 0 : index
    %11 = vector.load %arg5[%c0_10, %c0_11] : memref<1x384xf32, #tpu.memory_space<vmem>>, vector<1x384xf32>
    %12 = vector.broadcast %11 : vector<1x384xf32> to vector<4x384xf32>
    %13 = arith.addf %10, %12 : vector<4x384xf32>
    %14 = vector.extract_strided_slice %7 {offsets = [0, 0], sizes = [4, 128], strides = [1, 1]} : vector<4x384xf32> to vector<4x128xf32>
    %15 = vector.extract_strided_slice %13 {offsets = [0, 0], sizes = [4, 128], strides = [1, 1]} : vector<4x384xf32> to vector<4x128xf32>
    %16 = arith.addf %14, %15 : vector<4x128xf32>
    %17 = arith.negf %16 : vector<4x128xf32>
    %18 = math.exp %17 : vector<4x128xf32>
    %cst_12 = arith.constant 1.000000e+00 : f32
    %19 = vector.broadcast %cst_12 : f32 to vector<4x128xf32>
    %20 = arith.addf %19, %18 : vector<4x128xf32>
    %21 = arith.divf %19, %20 : vector<4x128xf32>
    %22 = vector.extract_strided_slice %7 {offsets = [0, 128], sizes = [4, 128], strides = [1, 1]} : vector<4x384xf32> to vector<4x128xf32>
    %23 = vector.extract_strided_slice %13 {offsets = [0, 128], sizes = [4, 128], strides = [1, 1]} : vector<4x384xf32> to vector<4x128xf32>
    %24 = arith.addf %22, %23 : vector<4x128xf32>
    %25 = arith.negf %24 : vector<4x128xf32>
    %26 = math.exp %25 : vector<4x128xf32>
    %cst_13 = arith.constant 1.000000e+00 : f32
    %27 = vector.broadcast %cst_13 : f32 to vector<4x128xf32>
    %28 = arith.addf %27, %26 : vector<4x128xf32>
    %29 = arith.divf %27, %28 : vector<4x128xf32>
    %30 = vector.extract_strided_slice %7 {offsets = [0, 256], sizes = [4, 128], strides = [1, 1]} : vector<4x384xf32> to vector<4x128xf32>
    %31 = vector.extract_strided_slice %13 {offsets = [0, 256], sizes = [4, 128], strides = [1, 1]} : vector<4x384xf32> to vector<4x128xf32>
    %32 = arith.mulf %21, %31 : vector<4x128xf32>
    %33 = arith.addf %30, %32 : vector<4x128xf32>
    %34 = math.tanh %33 : vector<4x128xf32>
    %cst_14 = arith.constant 1.000000e+00 : f32
    %35 = vector.broadcast %cst_14 : f32 to vector<4x128xf32>
    %36 = arith.subf %35, %29 : vector<4x128xf32>
    %37 = arith.mulf %36, %34 : vector<4x128xf32>
    %38 = arith.mulf %29, %0 : vector<4x128xf32>
    %39 = arith.addf %37, %38 : vector<4x128xf32>
    %c0_15 = arith.constant 0 : index
    %c0_16 = arith.constant 0 : index
    %40 = vector.load %arg12[%c0_15, %c0_16] : memref<4x128xf32, #tpu.memory_space<vmem>>, vector<4x128xf32>
    tpu.vector_store %arg12[%c0_15, %c0_16], %39 {strides = array<i32>} : memref<4x128xf32, #tpu.memory_space<vmem>>, vector<4x128xf32>,
    %41 = arith.truncf %39 : vector<4x128xf32> to vector<4x128xbf16>
    %c0_17 = arith.constant 0 : index
    %c0_18 = arith.constant 0 : index
    %42 = vector.load %arg6[%c0_17, %c0_18] : memref<128x2048xbf16, #tpu.memory_space<vmem>>, vector<128x2048xbf16>
    %cst_19 = arith.constant dense<0.000000e+00> : vector<4x2048xf32>
    %43 = tpu.matmul %41, %42, %cst_19 {dimension_numbers = #tpu.dot_dimension_numbers<[1], [0], [0], [1], [0, 0, 1, 1], [], []>} : vector<4x128xbf16>, vector<128x2048xbf16>, vector<4x2048xf32> -> vector<4x2048xf32>
    %c0_20 = arith.constant 0 : index
    %c0_21 = arith.constant 0 : index
    %44 = vector.load %arg7[%c0_20, %c0_21] : memref<1x2048xf32, #tpu.memory_space<vmem>>, vector<1x2048xf32>
    %45 = vector.broadcast %44 : vector<1x2048xf32> to vector<4x2048xf32>
    %46 = arith.addf %43, %45 : vector<4x2048xf32>
    %cst_22 = arith.constant 0.000000e+00 : f32
    %47 = vector.broadcast %cst_22 : f32 to vector<4x2048xf32>
    %48 = arith.maximumf %46, %47 : vector<4x2048xf32>
    %49 = arith.truncf %48 : vector<4x2048xf32> to vector<4x2048xbf16>
    %50 = vector.extract_strided_slice %49 {offsets = [0, 0], sizes = [4, 1024], strides = [1, 1]} : vector<4x2048xbf16> to vector<4x1024xbf16>
    %c0_23 = arith.constant 0 : index
    %c0_24 = arith.constant 0 : index
    %51 = vector.load %arg8[%c0_23, %c0_24] : memref<1024x16xbf16, #tpu.memory_space<vmem>>, vector<1024x16xbf16>
    %cst_25 = arith.constant dense<0.000000e+00> : vector<4x16xf32>
    %52 = tpu.matmul %50, %51, %cst_25 {dimension_numbers = #tpu.dot_dimension_numbers<[1], [0], [0], [1], [0, 0, 1, 1], [], []>} : vector<4x1024xbf16>, vector<1024x16xbf16>, vector<4x16xf32> -> vector<4x16xf32>
    %c0_26 = arith.constant 0 : index
    %c0_27 = arith.constant 0 : index
    %53 = vector.load %arg9[%c0_26, %c0_27] : memref<1x16xf32, #tpu.memory_space<vmem>>, vector<1x16xf32>
    %54 = vector.broadcast %53 : vector<1x16xf32> to vector<4x16xf32>
    %55 = arith.addf %52, %54 : vector<4x16xf32>
    %c0_28 = arith.constant 0 : index
    %c0_29 = arith.constant 0 : index
    %56 = vector.load %arg13[%c0_28, %c0_29] : memref<4x16xf32, #tpu.memory_space<vmem>>, vector<4x16xf32>
    tpu.vector_store %arg13[%c0_28, %c0_29], %55 {strides = array<i32>} : memref<4x16xf32, #tpu.memory_space<vmem>>, vector<4x16xf32>,
    %57 = vector.extract_strided_slice %49 {offsets = [0, 1024], sizes = [4, 1024], strides = [1, 1]} : vector<4x2048xbf16> to vector<4x1024xbf16>
    %c0_30 = arith.constant 0 : index
    %c0_31 = arith.constant 0 : index
    %58 = vector.load %arg10[%c0_30, %c0_31] : memref<1024x16xbf16, #tpu.memory_space<vmem>>, vector<1024x16xbf16>
    %cst_32 = arith.constant dense<0.000000e+00> : vector<4x16xf32>
    %59 = tpu.matmul %57, %58, %cst_32 {dimension_numbers = #tpu.dot_dimension_numbers<[1], [0], [0], [1], [0, 0, 1, 1], [], []>} : vector<4x1024xbf16>, vector<1024x16xbf16>, vector<4x16xf32> -> vector<4x16xf32>
    %c0_33 = arith.constant 0 : index
    %c0_34 = arith.constant 0 : index
    %60 = vector.load %arg11[%c0_33, %c0_34] : memref<1x16xf32, #tpu.memory_space<vmem>>, vector<1x16xf32>
    %61 = vector.broadcast %60 : vector<1x16xf32> to vector<4x16xf32>
    %62 = arith.addf %59, %61 : vector<4x16xf32>
    %c0_35 = arith.constant 0 : index
    %c0_36 = arith.constant 0 : index
    %63 = vector.load %arg14[%c0_35, %c0_36] : memref<4x16xf32, #tpu.memory_space<vmem>>, vector<4x16xf32>
    tpu.vector_store %arg14[%c0_35, %c0_36], %62 {strides = array<i32>} : memref<4x16xf32, #tpu.memory_space<vmem>>, vector<4x16xf32>,
    return
  }
}

module attributes {stable_mosaic.version = 11 : i64} {
  func.func @_gru_mlp1_kernel(%arg0: memref<4x16xf32, #tpu.memory_space<vmem>>, %arg1: memref<4x128xf32, #tpu.memory_space<vmem>>, %arg2: memref<16x384xbf16, #tpu.memory_space<vmem>>, %arg3: memref<128x384xbf16, #tpu.memory_space<vmem>>, %arg4: memref<1x384xf32, #tpu.memory_space<vmem>>, %arg5: memref<1x384xf32, #tpu.memory_space<vmem>>, %arg6: memref<128x1024xbf16, #tpu.memory_space<vmem>>, %arg7: memref<1x1024xf32, #tpu.memory_space<vmem>>, %arg8: memref<1024x16xbf16, #tpu.memory_space<vmem>>, %arg9: memref<1x16xf32, #tpu.memory_space<vmem>>, %arg10: memref<4x128xf32, #tpu.memory_space<vmem>>, %arg11: memref<4x16xf32, #tpu.memory_space<vmem>>) attributes {dimension_semantics = [], scalar_prefetch = 0 : i64, scratch_operands = 0 : i64, tpu.core_type = #tpu.core_type<tc>} {
    %c0 = arith.constant 0 : index
    %c0_0 = arith.constant 0 : index
    %0 = vector.load %arg1[%c0, %c0_0] : memref<4x128xf32, #tpu.memory_space<vmem>>, vector<4x128xf32>
    %c0_1 = arith.constant 0 : index
    %c0_2 = arith.constant 0 : index
    %1 = vector.load %arg0[%c0_1, %c0_2] : memref<4x16xf32, #tpu.memory_space<vmem>>, vector<4x16xf32>
    %2 = arith.truncf %1 : vector<4x16xf32> to vector<4x16xbf16>
    %c0_3 = arith.constant 0 : index
    %c0_4 = arith.constant 0 : index
    %3 = vector.load %arg2[%c0_3, %c0_4] : memref<16x384xbf16, #tpu.memory_space<vmem>>, vector<16x384xbf16>
    %cst = arith.constant dense<0.000000e+00> : vector<4x384xf32>
    %4 = tpu.matmul %2, %3, %cst {dimension_numbers = #tpu.dot_dimension_numbers<[1], [0], [0], [1], [0, 0, 1, 1], [], []>} : vector<4x16xbf16>, vector<16x384xbf16>, vector<4x384xf32> -> vector<4x384xf32>
    %c0_5 = arith.constant 0 : index
    %c0_6 = arith.constant 0 : index
    %5 = vector.load %arg4[%c0_5, %c0_6] : memref<1x384xf32, #tpu.memory_space<vmem>>, vector<1x384xf32>
    %6 = vector.broadcast %5 : vector<1x384xf32> to vector<4x384xf32>
    %7 = arith.addf %4, %6 : vector<4x384xf32>
    %8 = arith.truncf %0 : vector<4x128xf32> to vector<4x128xbf16>
    %c0_7 = arith.constant 0 : index
    %c0_8 = arith.constant 0 : index
    %9 = vector.load %arg3[%c0_7, %c0_8] : memref<128x384xbf16, #tpu.memory_space<vmem>>, vector<128x384xbf16>
    %cst_9 = arith.constant dense<0.000000e+00> : vector<4x384xf32>
    %10 = tpu.matmul %8, %9, %cst_9 {dimension_numbers = #tpu.dot_dimension_numbers<[1], [0], [0], [1], [0, 0, 1, 1], [], []>} : vector<4x128xbf16>, vector<128x384xbf16>, vector<4x384xf32> -> vector<4x384xf32>
    %c0_10 = arith.constant 0 : index
    %c0_11 = arith.constant 0 : index
    %11 = vector.load %arg5[%c0_10, %c0_11] : memref<1x384xf32, #tpu.memory_space<vmem>>, vector<1x384xf32>
    %12 = vector.broadcast %11 : vector<1x384xf32> to vector<4x384xf32>
    %13 = arith.addf %10, %12 : vector<4x384xf32>
    %14 = vector.extract_strided_slice %7 {offsets = [0, 0], sizes = [4, 128], strides = [1, 1]} : vector<4x384xf32> to vector<4x128xf32>
    %15 = vector.extract_strided_slice %13 {offsets = [0, 0], sizes = [4, 128], strides = [1, 1]} : vector<4x384xf32> to vector<4x128xf32>
    %16 = arith.addf %14, %15 : vector<4x128xf32>
    %17 = arith.negf %16 : vector<4x128xf32>
    %18 = math.exp %17 : vector<4x128xf32>
    %cst_12 = arith.constant 1.000000e+00 : f32
    %19 = vector.broadcast %cst_12 : f32 to vector<4x128xf32>
    %20 = arith.addf %19, %18 : vector<4x128xf32>
    %21 = arith.divf %19, %20 : vector<4x128xf32>
    %22 = vector.extract_strided_slice %7 {offsets = [0, 128], sizes = [4, 128], strides = [1, 1]} : vector<4x384xf32> to vector<4x128xf32>
    %23 = vector.extract_strided_slice %13 {offsets = [0, 128], sizes = [4, 128], strides = [1, 1]} : vector<4x384xf32> to vector<4x128xf32>
    %24 = arith.addf %22, %23 : vector<4x128xf32>
    %25 = arith.negf %24 : vector<4x128xf32>
    %26 = math.exp %25 : vector<4x128xf32>
    %cst_13 = arith.constant 1.000000e+00 : f32
    %27 = vector.broadcast %cst_13 : f32 to vector<4x128xf32>
    %28 = arith.addf %27, %26 : vector<4x128xf32>
    %29 = arith.divf %27, %28 : vector<4x128xf32>
    %30 = vector.extract_strided_slice %7 {offsets = [0, 256], sizes = [4, 128], strides = [1, 1]} : vector<4x384xf32> to vector<4x128xf32>
    %31 = vector.extract_strided_slice %13 {offsets = [0, 256], sizes = [4, 128], strides = [1, 1]} : vector<4x384xf32> to vector<4x128xf32>
    %32 = arith.mulf %21, %31 : vector<4x128xf32>
    %33 = arith.addf %30, %32 : vector<4x128xf32>
    %34 = math.tanh %33 : vector<4x128xf32>
    %cst_14 = arith.constant 1.000000e+00 : f32
    %35 = vector.broadcast %cst_14 : f32 to vector<4x128xf32>
    %36 = arith.subf %35, %29 : vector<4x128xf32>
    %37 = arith.mulf %36, %34 : vector<4x128xf32>
    %38 = arith.mulf %29, %0 : vector<4x128xf32>
    %39 = arith.addf %37, %38 : vector<4x128xf32>
    %c0_15 = arith.constant 0 : index
    %c0_16 = arith.constant 0 : index
    %40 = vector.load %arg10[%c0_15, %c0_16] : memref<4x128xf32, #tpu.memory_space<vmem>>, vector<4x128xf32>
    tpu.vector_store %arg10[%c0_15, %c0_16], %39 {strides = array<i32>} : memref<4x128xf32, #tpu.memory_space<vmem>>, vector<4x128xf32>,
    %41 = arith.truncf %39 : vector<4x128xf32> to vector<4x128xbf16>
    %c0_17 = arith.constant 0 : index
    %c0_18 = arith.constant 0 : index
    %42 = vector.load %arg6[%c0_17, %c0_18] : memref<128x1024xbf16, #tpu.memory_space<vmem>>, vector<128x1024xbf16>
    %cst_19 = arith.constant dense<0.000000e+00> : vector<4x1024xf32>
    %43 = tpu.matmul %41, %42, %cst_19 {dimension_numbers = #tpu.dot_dimension_numbers<[1], [0], [0], [1], [0, 0, 1, 1], [], []>} : vector<4x128xbf16>, vector<128x1024xbf16>, vector<4x1024xf32> -> vector<4x1024xf32>
    %c0_20 = arith.constant 0 : index
    %c0_21 = arith.constant 0 : index
    %44 = vector.load %arg7[%c0_20, %c0_21] : memref<1x1024xf32, #tpu.memory_space<vmem>>, vector<1x1024xf32>
    %45 = vector.broadcast %44 : vector<1x1024xf32> to vector<4x1024xf32>
    %46 = arith.addf %43, %45 : vector<4x1024xf32>
    %cst_22 = arith.constant 0.000000e+00 : f32
    %47 = vector.broadcast %cst_22 : f32 to vector<4x1024xf32>
    %48 = arith.maximumf %46, %47 : vector<4x1024xf32>
    %49 = arith.truncf %48 : vector<4x1024xf32> to vector<4x1024xbf16>
    %c0_23 = arith.constant 0 : index
    %c0_24 = arith.constant 0 : index
    %50 = vector.load %arg8[%c0_23, %c0_24] : memref<1024x16xbf16, #tpu.memory_space<vmem>>, vector<1024x16xbf16>
    %cst_25 = arith.constant dense<0.000000e+00> : vector<4x16xf32>
    %51 = tpu.matmul %49, %50, %cst_25 {dimension_numbers = #tpu.dot_dimension_numbers<[1], [0], [0], [1], [0, 0, 1, 1], [], []>} : vector<4x1024xbf16>, vector<1024x16xbf16>, vector<4x16xf32> -> vector<4x16xf32>
    %c0_26 = arith.constant 0 : index
    %c0_27 = arith.constant 0 : index
    %52 = vector.load %arg9[%c0_26, %c0_27] : memref<1x16xf32, #tpu.memory_space<vmem>>, vector<1x16xf32>
    %53 = vector.broadcast %52 : vector<1x16xf32> to vector<4x16xf32>
    %54 = arith.addf %51, %53 : vector<4x16xf32>
    %c0_28 = arith.constant 0 : index
    %c0_29 = arith.constant 0 : index
    %55 = vector.load %arg11[%c0_28, %c0_29] : memref<4x16xf32, #tpu.memory_space<vmem>>, vector<4x16xf32>
    tpu.vector_store %arg11[%c0_28, %c0_29], %54 {strides = array<i32>} : memref<4x16xf32, #tpu.memory_space<vmem>>, vector<4x16xf32>,
    return
  }
}

</mosaic_0001>

<llo_original>
// kernel: custom-call.3
$region0: #{custom-call.3}
  %s0 = inlined_call_operand.hbm [shape: c64[8,2], index: 0, kind: input, shape index: {}]
  %s1 = inlined_call_operand.vmem [shape: f32[8,2], index: 1, kind: output, shape index: {}]
  %s2 = scalar_lea.hbm %s0, 2
  $region1: #{custom-call.3} parent=0
    #allocation0 [shape = 's32[1]{0}', space=sflag, size = 0x4, scoped, tag = 'scoped memory for custom-call.3']
    %3 = vsyncpa [#allocation0], 0
    %s5 = sshll.u32 %s2, 4
    %s6 = int_to_ptr.hbm [resolvable:$true] %s5
    %s7 = sshll.u32 %s1, 4
    %s8 = int_to_ptr.vmem [resolvable:$true] %s7
    %10 = dma.hbm_to_vmem [thread:$0]  %s6, 32, %s8, [#allocation0]
    %12 = dma.done [#allocation0], 32
    %13 = vsyncpa [#allocation0], 1

// kernel: custom-call.2
$region0: #{custom-call.2}
  %s0 = inlined_call_operand.hbm [shape: c64[8,2], index: 0, kind: input, shape index: {}]
  %s1 = inlined_call_operand.vmem [shape: f32[8,2], index: 1, kind: output, shape index: {}]
  $region1: #{custom-call.2} parent=0
    #allocation0 [shape = 's32[1]{0}', space=sflag, size = 0x4, scoped, tag = 'scoped memory for custom-call.2']
    %2 = vsyncpa [#allocation0], 0
    %s4 = sshll.u32 %s0, 4
    %s5 = int_to_ptr.hbm [resolvable:$true] %s4
    %s6 = sshll.u32 %s1, 4
    %s7 = int_to_ptr.vmem [resolvable:$true] %s6
    %9 = dma.hbm_to_vmem [thread:$0]  %s5, 32, %s7, [#allocation0]
    %11 = dma.done [#allocation0], 32
    %12 = vsyncpa [#allocation0], 1

// kernel: custom-call.1
$region0: #{custom-call.1}
  %s0 = inlined_call_operand.hbm [shape: c64[2,8,8], index: 0, kind: input, shape index: {}]
  %s1 = inlined_call_operand.vmem [shape: f32[2,8,8], index: 1, kind: output, shape index: {}]
  %s2 = scalar_lea.hbm %s0, 16
  $region1: #{custom-call.1} parent=0
    #allocation0 [shape = 's32[1]{0}', space=sflag, size = 0x4, scoped, tag = 'scoped memory for custom-call.1']
    %3 = vsyncpa [#allocation0], 0
    %s5 = sshll.u32 %s2, 4
    %s6 = int_to_ptr.hbm [resolvable:$true] %s5
    %s7 = sshll.u32 %s1, 4
    %s8 = int_to_ptr.vmem [resolvable:$true] %s7
    %10 = dma.hbm_to_vmem [thread:$0]  %s6, 256, %s8, [#allocation0]
    %12 = dma.done [#allocation0], 256
    %13 = vsyncpa [#allocation0], 1

// kernel: custom-call
$region0: #{custom-call}
  %s0 = inlined_call_operand.hbm [shape: c64[2,8,8], index: 0, kind: input, shape index: {}]
  %s1 = inlined_call_operand.vmem [shape: f32[2,8,8], index: 1, kind: output, shape index: {}]
  $region1: #{custom-call} parent=0
    #allocation0 [shape = 's32[1]{0}', space=sflag, size = 0x4, scoped, tag = 'scoped memory for custom-call']
    %2 = vsyncpa [#allocation0], 0
    %s4 = sshll.u32 %s0, 4
    %s5 = int_to_ptr.hbm [resolvable:$true] %s4
    %s6 = sshll.u32 %s1, 4
    %s7 = int_to_ptr.vmem [resolvable:$true] %s6
    %9 = dma.hbm_to_vmem [thread:$0]  %s5, 256, %s7, [#allocation0]
    %11 = dma.done [#allocation0], 256
    %12 = vsyncpa [#allocation0], 1

// kernel: custom-call.4
$region0: #{custom-call.4}
  %s0 = inlined_call_operand.vmem [shape: f32[2,8,2], index: 0, kind: input, shape index: {}]
  %s1 = inlined_call_operand.vmem [shape: f32[2,8,2], index: 1, kind: input, shape index: {}]
  %s2 = inlined_call_operand.hbm [shape: c64[2,8,2], index: 2, kind: output, shape index: {}]
  %s3 = scalar_lea.hbm %s2, 4
  $region1: #{custom-call.4} parent=0
    #allocation0 [shape = 's32[1]{0}', space=sflag, size = 0x4, scoped, tag = 'scoped memory for custom-call.4']
    %4 = vsyncpa [#allocation0], 0
    %s6 = sshll.u32 %s0, 4
    %s7 = int_to_ptr.vmem [resolvable:$true] %s6
    %s8 = sshll.u32 %s2, 4
    %s9 = int_to_ptr.hbm [resolvable:$true] %s8
    %11 = dma.vmem_to_hbm [thread:$0]  %s7, 64, %s9, [#allocation0]
    %13 = dma.done [#allocation0], 64
    %14 = vsyncpa [#allocation0], 1
  $region2: #{custom-call.4} parent=0
    #allocation1 [shape = 's32[1]{0}', space=sflag, size = 0x4, scoped, tag = 'scoped memory for custom-call.4']
    %15 = vsyncpa [#allocation1], 0
    %s17 = sshll.u32 %s1, 4
    %s18 = int_to_ptr.vmem [resolvable:$true] %s17
    %s19 = sshll.u32 %s3, 4
    %s20 = int_to_ptr.hbm [resolvable:$true] %s19
    %22 = dma.vmem_to_hbm [thread:$0]  %s18, 64, %s20, [#allocation1]
    %24 = dma.done [#allocation1], 64
    %25 = vsyncpa [#allocation1], 1

// kernel: active_sensing_forward.5
$region0: #{active_sensing_forward.5}
  #allocation0 [shape = 'u32[]', space=smem, size = 0x4, offset = 0x4, fixed_abs, tag = 'smem constant byte address 0x4 - core index']
  #allocation1 [shape = 'u32[72,128]{1,0:T(1,128)}', space=vmem, size = 0x9000, scoped, tag = 'internal scratch']
  %s0 = inlined_call_operand.vmem [shape: f32[4,16], index: 0, kind: input, shape index: {}]
  %s1 = inlined_call_operand.vmem [shape: f32[4,128], index: 1, kind: input, shape index: {}, may-alias: {1,10}]
  %s2 = inlined_call_operand.vmem [shape: bf16[16,384], index: 2, kind: input, shape index: {}]
  %s3 = inlined_call_operand.vmem [shape: bf16[128,384], index: 3, kind: input, shape index: {}]
  %s4 = inlined_call_operand.vmem [shape: f32[1,384], index: 4, kind: input, shape index: {}]
  %s5 = inlined_call_operand.vmem [shape: f32[1,384], index: 5, kind: input, shape index: {}]
  %s6 = inlined_call_operand.vmem [shape: bf16[128,1024], index: 6, kind: input, shape index: {}]
  %s7 = inlined_call_operand.vmem [shape: f32[1,1024], index: 7, kind: input, shape index: {}]
  %s8 = inlined_call_operand.vmem [shape: bf16[1024,16], index: 8, kind: input, shape index: {}]
  %s9 = inlined_call_operand.vmem [shape: f32[1,16], index: 9, kind: input, shape index: {}]
  %s10 = inlined_call_operand.vmem [shape: f32[4,128], index: 10, kind: output, shape index: {0}, may-alias: {1,10}]
  %s11 = inlined_call_operand.vmem [shape: f32[4,16], index: 11, kind: output, shape index: {1}]
  %12 = xla_tuple %s10, %s11
  %s13 = sld [smem:[#allocation0]]
  $region58: #{active_sensing_forward.5} parent=0
    _
  %s15 = ssub.s32 1, %s13
  %s16 = scalar_select 0, %s15, %s13
  // Predicated region
  $region2: #{active_sensing_forward.5} parent=0 // pred_check
    _
  $region3: #{active_sensing_forward.5} parent=0 // pred_check_branch
    %18 = sbr.rel (0) target = $region5
  $region4: #{active_sensing_forward.5} parent=0 // pred_region
    _
  $region5: #{active_sensing_forward.5} parent=0 // pred_fallthru
    _
  // Predicated region
  $region6: #{active_sensing_forward.5} parent=0 // pred_check
    _
  $region7: #{active_sensing_forward.5} parent=0 // pred_check_branch
    %20 = sbr.rel (0) target = $region9
  $region8: #{active_sensing_forward.5} parent=0 // pred_region
    _
  $region9: #{active_sensing_forward.5} parent=0 // pred_fallthru
    _
  // Predicated region
  $region10: #{active_sensing_forward.5} parent=0 // pred_check
    _
  $region11: #{active_sensing_forward.5} parent=0 // pred_check_branch
    %22 = sbr.rel (0) target = $region13
  $region12: #{active_sensing_forward.5} parent=0 // pred_region
    _
  $region13: #{active_sensing_forward.5} parent=0 // pred_fallthru
    _
  // Predicated region
  $region14: #{active_sensing_forward.5} parent=0 // pred_check
    _
  $region15: #{active_sensing_forward.5} parent=0 // pred_check_branch
    %24 = sbr.rel (0) target = $region17
  $region16: #{active_sensing_forward.5} parent=0 // pred_region
    _
  $region17: #{active_sensing_forward.5} parent=0 // pred_fallthru
    _
  // Predicated region
  $region18: #{active_sensing_forward.5} parent=0 // pred_check
    _
  $region19: #{active_sensing_forward.5} parent=0 // pred_check_branch
    %26 = sbr.rel (0) target = $region21
  $region20: #{active_sensing_forward.5} parent=0 // pred_region
    _
  $region21: #{active_sensing_forward.5} parent=0 // pred_fallthru
    _
  // Predicated region
  $region22: #{active_sensing_forward.5} parent=0 // pred_check
    _
  $region23: #{active_sensing_forward.5} parent=0 // pred_check_branch
    %28 = sbr.rel (0) target = $region25
  $region24: #{active_sensing_forward.5} parent=0 // pred_region
    _
  $region25: #{active_sensing_forward.5} parent=0 // pred_fallthru
    _
  // Predicated region
  $region26: #{active_sensing_forward.5} parent=0 // pred_check
    _
  $region27: #{active_sensing_forward.5} parent=0 // pred_check_branch
    %30 = sbr.rel (0) target = $region29
  $region28: #{active_sensing_forward.5} parent=0 // pred_region
    _
  $region29: #{active_sensing_forward.5} parent=0 // pred_fallthru
    _
  // Predicated region
  $region30: #{active_sensing_forward.5} parent=0 // pred_check
    _
  $region31: #{active_sensing_forward.5} parent=0 // pred_check_branch
    %32 = sbr.rel (0) target = $region33
  $region32: #{active_sensing_forward.5} parent=0 // pred_region
    _
  $region33: #{active_sensing_forward.5} parent=0 // pred_fallthru
    _
  // Predicated region
  $region34: #{active_sensing_forward.5} parent=0 // pred_check
    _
  $region35: #{active_sensing_forward.5} parent=0 // pred_check_branch
    %34 = sbr.rel (0) target = $region37
  $region36: #{active_sensing_forward.5} parent=0 // pred_region
    _
  $region37: #{active_sensing_forward.5} parent=0 // pred_fallthru
    _
  // Predicated region
  $region38: #{active_sensing_forward.5} parent=0 // pred_check
    _
  $region39: #{active_sensing_forward.5} parent=0 // pred_check_branch
    %36 = sbr.rel (0) target = $region41
  $region40: #{active_sensing_forward.5} parent=0 // pred_region
    _
  $region41: #{active_sensing_forward.5} parent=0 // pred_fallthru
    _
  %v38 = vld [vmem:[%s1] sm:$0xf]
  %v39 = vld [vmem:[%s0] sm:$0xf]
  %v40 = vpack.c.bf16 %v39, %v39
  %v41 = vld [vmem:[%s2] sm:$0xff]
  %v42 = vld [vmem:[%s2 + $0x8] sm:$0xf]
  %v43 = vld [vmem:[%s2 + $0xc] sm:$0xff]
  %v44 = vld [vmem:[%s2 + $0x14] sm:$0xf]
  %v45 = vld [vmem:[%s4] sm:$0x7]
  %v47 = vperm.slane %v45, 0
  %v48 = vperm.slane %v45, 1
  %v49 = vperm.slane %v45, 2
  %v57 = vunpack.c.l.b16 %v41
  %v58 = vunpack.c.h.b16 %v41
  %v59 = vunpack.c.l.b16 %v42
  %v60 = vunpack.c.l.b16 %v43
  %v61 = vunpack.c.h.b16 %v43
  %v62 = vunpack.c.l.b16 %v44
  %v63 = vpack.c.b16 %v60, %v57
  %v64 = vpack.c.b16 %v61, %v58
  %v65 = vpack.c.b16 %v62, %v59
  %vm69 = vcmask 130048
  %v71 = vsel %vm69, %v40, 0
  %73 = vmatpush.bf16.msra.mxu0 0
  %74 = vmatpush.bf16.msra.mxu0 0
  %75 = vmatpush.bf16.msra.mxu0 0
  %76 = vmatpush.bf16.msra.mxu0 0
  %77 = vmatpush.bf16.msra.mxu0 0
  %78 = vmatpush.bf16.msra.mxu0 0
  %79 = vmatpush.bf16.msra.mxu0 0
  %80 = vmatpush.bf16.msra.mxu0 %v63
  %81 = vmatmul.bf16.gmra.mxu0 %v71
  %v82 = vpop.f32.mrf.mxu0
  %v83 = vadd.f32 %v47, %v82
  %v84 = vpop.f32.mrf.mxu0
  %85 = vdwg.mxu0
  %86 = vmatpush.bf16.msra.mxu0 0
  %87 = vmatpush.bf16.msra.mxu0 0
  %88 = vmatpush.bf16.msra.mxu0 0
  %89 = vmatpush.bf16.msra.mxu0 0
  %90 = vmatpush.bf16.msra.mxu0 0
  %91 = vmatpush.bf16.msra.mxu0 0
  %92 = vmatpush.bf16.msra.mxu0 0
  %93 = vmatpush.bf16.msra.mxu0 %v64
  %94 = vmatmul.bf16.gmra.mxu0 %v71
  %v95 = vpop.f32.mrf.mxu0
  %v96 = vadd.f32 %v48, %v95
  %v97 = vpop.f32.mrf.mxu0
  %98 = vdwg.mxu0
  %99 = vmatpush.bf16.msra.mxu0 0
  %100 = vmatpush.bf16.msra.mxu0 0
  %101 = vmatpush.bf16.msra.mxu0 0
  %102 = vmatpush.bf16.msra.mxu0 0
  %103 = vmatpush.bf16.msra.mxu0 0
  %104 = vmatpush.bf16.msra.mxu0 0
  %105 = vmatpush.bf16.msra.mxu0 0
  %106 = vmatpush.bf16.msra.mxu0 %v65
  %107 = vmatmul.bf16.gmra.mxu0 %v71
  %v108 = vpop.f32.mrf.mxu0
  %v109 = vadd.f32 %v49, %v108
  %v110 = vpop.f32.mrf.mxu0
  %111 = vdwg.mxu0
  %v112 = vpack.c.bf16 %v38, %v38
  %v113 = vld [vmem:[%s3] sm:$0xff]
  %v114 = vld [vmem:[%s3 + $0x8] sm:$0xf]
  %v115 = vld [vmem:[%s3 + $0xc] sm:$0xff]
  %v116 = vld [vmem:[%s3 + $0x14] sm:$0xf]
  %v117 = vld [vmem:[%s3 + $0x18] sm:$0xff]
  %v118 = vld [vmem:[%s3 + $0x20] sm:$0xf]
  %v119 = vld [vmem:[%s3 + $0x24] sm:$0xff]
  %v120 = vld [vmem:[%s3 + $0x2c] sm:$0xf]
  %v121 = vld [vmem:[%s3 + $0x30] sm:$0xff]
  %v122 = vld [vmem:[%s3 + $0x38] sm:$0xf]
  %v123 = vld [vmem:[%s3 + $0x3c] sm:$0xff]
  %v124 = vld [vmem:[%s3 + $0x44] sm:$0xf]
  %v125 = vld [vmem:[%s3 + $0x48] sm:$0xff]
  %v126 = vld [vmem:[%s3 + $0x50] sm:$0xf]
  %v127 = vld [vmem:[%s3 + $0x54] sm:$0xff]
  %v128 = vld [vmem:[%s3 + $0x5c] sm:$0xf]
  %v129 = vld [vmem:[%s3 + $0x60] sm:$0xff]
  %v130 = vld [vmem:[%s3 + $0x68] sm:$0xf]
  %v131 = vld [vmem:[%s3 + $0x6c] sm:$0xff]
  %v132 = vld [vmem:[%s3 + $0x74] sm:$0xf]
  %v133 = vld [vmem:[%s3 + $0x78] sm:$0xff]
  %v134 = vld [vmem:[%s3 + $0x80] sm:$0xf]
  %v135 = vld [vmem:[%s3 + $0x84] sm:$0xff]
  %v136 = vld [vmem:[%s3 + $0x8c] sm:$0xf]
  %v137 = vld [vmem:[%s3 + $0x90] sm:$0xff]
  %v138 = vld [vmem:[%s3 + $0x98] sm:$0xf]
  %v139 = vld [vmem:[%s3 + $0x9c] sm:$0xff]
  %v140 = vld [vmem:[%s3 + $0xa4] sm:$0xf]
  %v141 = vld [vmem:[%s3 + $0xa8] sm:$0xff]
  %v142 = vld [vmem:[%s3 + $0xb0] sm:$0xf]
  %v143 = vld [vmem:[%s3 + $0xb4] sm:$0xff]
  %v144 = vld [vmem:[%s3 + $0xbc] sm:$0xf]
  %v145 = vld [vmem:[%s5] sm:$0x7]
  %v147 = vperm.slane %v145, 0
  %v148 = vperm.slane %v145, 1
  %v149 = vperm.slane %v145, 2
  %v185 = vunpack.c.l.b16 %v113
  %v186 = vunpack.c.h.b16 %v113
  %v187 = vunpack.c.l.b16 %v114
  %v188 = vunpack.c.l.b16 %v115
  %v189 = vunpack.c.h.b16 %v115
  %v190 = vunpack.c.l.b16 %v116
  %v191 = vunpack.c.l.b16 %v117
  %v192 = vunpack.c.h.b16 %v117
  %v193 = vunpack.c.l.b16 %v118
  %v194 = vunpack.c.l.b16 %v119
  %v195 = vunpack.c.h.b16 %v119
  %v196 = vunpack.c.l.b16 %v120
  %v197 = vunpack.c.l.b16 %v121
  %v198 = vunpack.c.h.b16 %v121
  %v199 = vunpack.c.l.b16 %v122
  %v200 = vunpack.c.l.b16 %v123
  %v201 = vunpack.c.h.b16 %v123
  %v202 = vunpack.c.l.b16 %v124
  %v203 = vunpack.c.l.b16 %v125
  %v204 = vunpack.c.h.b16 %v125
  %v205 = vunpack.c.l.b16 %v126
  %v206 = vunpack.c.l.b16 %v127
  %v207 = vunpack.c.h.b16 %v127
  %v208 = vunpack.c.l.b16 %v128
  %v209 = vunpack.c.l.b16 %v129
  %v210 = vunpack.c.h.b16 %v129
  %v211 = vunpack.c.l.b16 %v130
  %v212 = vunpack.c.l.b16 %v131
  %v213 = vunpack.c.h.b16 %v131
  %v214 = vunpack.c.l.b16 %v132
  %v215 = vunpack.c.l.b16 %v133
  %v216 = vunpack.c.h.b16 %v133
  %v217 = vunpack.c.l.b16 %v134
  %v218 = vunpack.c.l.b16 %v135
  %v219 = vunpack.c.h.b16 %v135
  %v220 = vunpack.c.l.b16 %v136
  %v221 = vunpack.c.l.b16 %v137
  %v222 = vunpack.c.h.b16 %v137
  %v223 = vunpack.c.l.b16 %v138
  %v224 = vunpack.c.l.b16 %v139
  %v225 = vunpack.c.h.b16 %v139
  %v226 = vunpack.c.l.b16 %v140
  %v227 = vunpack.c.l.b16 %v141
  %v228 = vunpack.c.h.b16 %v141
  %v229 = vunpack.c.l.b16 %v142
  %v230 = vunpack.c.l.b16 %v143
  %v231 = vunpack.c.h.b16 %v143
  %v232 = vunpack.c.l.b16 %v144
  %v233 = vpack.c.b16 %v188, %v185
  %v234 = vpack.c.b16 %v189, %v186
  %v235 = vpack.c.b16 %v190, %v187
  %v236 = vpack.c.b16 %v194, %v191
  %v237 = vpack.c.b16 %v195, %v192
  %v238 = vpack.c.b16 %v196, %v193
  %v239 = vpack.c.b16 %v200, %v197
  %v240 = vpack.c.b16 %v201, %v198
  %v241 = vpack.c.b16 %v202, %v199
  %v242 = vpack.c.b16 %v206, %v203
  %v243 = vpack.c.b16 %v207, %v204
  %v244 = vpack.c.b16 %v208, %v205
  %v245 = vpack.c.b16 %v212, %v209
  %v246 = vpack.c.b16 %v213, %v210
  %v247 = vpack.c.b16 %v214, %v211
  %v248 = vpack.c.b16 %v218, %v215
  %v249 = vpack.c.b16 %v219, %v216
  %v250 = vpack.c.b16 %v220, %v217
  %v251 = vpack.c.b16 %v224, %v221
  %v252 = vpack.c.b16 %v225, %v222
  %v253 = vpack.c.b16 %v226, %v223
  %v254 = vpack.c.b16 %v230, %v227
  %v255 = vpack.c.b16 %v231, %v228
  %v256 = vpack.c.b16 %v232, %v229
  %281 = vmatpush.bf16.msra.mxu0 %v254
  %282 = vmatpush.bf16.msra.mxu0 %v251
  %283 = vmatpush.bf16.msra.mxu0 %v248
  %284 = vmatpush.bf16.msra.mxu0 %v245
  %285 = vmatpush.bf16.msra.mxu0 %v242
  %286 = vmatpush.bf16.msra.mxu0 %v239
  %287 = vmatpush.bf16.msra.mxu0 %v236
  %288 = vmatpush.bf16.msra.mxu0 %v233
  %289 = vmatmul.bf16.gmra.mxu0 %v112
  %v290 = vpop.f32.mrf.mxu0
  %v291 = vadd.f32 %v147, %v290
  %v292 = vpop.f32.mrf.mxu0
  %293 = vdwg.mxu0
  %294 = vmatpush.bf16.msra.mxu0 %v255
  %295 = vmatpush.bf16.msra.mxu0 %v252
  %296 = vmatpush.bf16.msra.mxu0 %v249
  %297 = vmatpush.bf16.msra.mxu0 %v246
  %298 = vmatpush.bf16.msra.mxu0 %v243
  %299 = vmatpush.bf16.msra.mxu0 %v240
  %300 = vmatpush.bf16.msra.mxu0 %v237
  %301 = vmatpush.bf16.msra.mxu0 %v234
  %302 = vmatmul.bf16.gmra.mxu0 %v112
  %v303 = vpop.f32.mrf.mxu0
  %v304 = vadd.f32 %v148, %v303
  %v305 = vpop.f32.mrf.mxu0
  %306 = vdwg.mxu0
  %307 = vmatpush.bf16.msra.mxu0 %v256
  %308 = vmatpush.bf16.msra.mxu0 %v253
  %309 = vmatpush.bf16.msra.mxu0 %v250
  %310 = vmatpush.bf16.msra.mxu0 %v247
  %311 = vmatpush.bf16.msra.mxu0 %v244
  %312 = vmatpush.bf16.msra.mxu0 %v241
  %313 = vmatpush.bf16.msra.mxu0 %v238
  %314 = vmatpush.bf16.msra.mxu0 %v235
  %315 = vmatmul.bf16.gmra.mxu0 %v112
  %v316 = vpop.f32.mrf.mxu0
  %v317 = vadd.f32 %v149, %v316
  %v318 = vpop.f32.mrf.mxu0
  %319 = vdwg.mxu0
  %v320 = vadd.f32 %v83, %v291
  %v321 = vxor.u32 %v320, 2147483648
  %v322 = vmul.f32 %v321, 1.442695
  %v323 = vpow.pop %v322
  %v324 = vadd.f32 %v323, 1.0
  %v325 = vrcp.pop %v324
  %v326 = vmul.f32 %v324, %v325
  %v327 = vsub.f32 1.0, %v326
  %v328 = vmul.f32 %v325, %v327
  %v329 = vadd.f32 %v325, %v328
  %vm330 = vweird.f32 %v324
  %vm331 = vweird.f32 %v325
  %vm332 = vmor %vm330, %vm331
  %v333 = vsel %vm332, %v325, %v329
  %v334 = vand.u32 2147483647, %v324
  %vm335 = vcmp.eq.f32.partialorder %v334, 8.507059e+37
  %v336 = vand.u32 %v324, 2147483648
  %v337 = vor.u32 1.1754944e-38, %v336
  %v338 = vsel %vm335, %v337, %v333
  %v339 = vmul.f32 1.0, %v338
  %v340 = vadd.f32 %v96, %v304
  %v341 = vxor.u32 %v340, 2147483648
  %v342 = vmul.f32 %v341, 1.442695
  %v343 = vpow.pop %v342
  %v344 = vadd.f32 %v343, 1.0
  %v345 = vrcp.pop %v344
  %v346 = vmul.f32 %v344, %v345
  %v347 = vsub.f32 1.0, %v346
  %v348 = vmul.f32 %v345, %v347
  %v349 = vadd.f32 %v345, %v348
  %vm350 = vweird.f32 %v344
  %vm351 = vweird.f32 %v345
  %vm352 = vmor %vm350, %vm351
  %v353 = vsel %vm352, %v345, %v349
  %v354 = vand.u32 2147483647, %v344
  %vm355 = vcmp.eq.f32.partialorder %v354, 8.507059e+37
  %v356 = vand.u32 %v344, 2147483648
  %v357 = vor.u32 1.1754944e-38, %v356
  %v358 = vsel %vm355, %v357, %v353
  %v359 = vmul.f32 1.0, %v358
  %v360 = vmul.f32 %v339, %v317
  %v361 = vadd.f32 %v109, %v360
  %v362 = vtanh.pop %v361
  %v363 = vsub.f32 1.0, %v359
  %v364 = vmul.f32 %v363, %v362
  %v365 = vmul.f32 %v359, %v38
  %v366 = vadd.f32 %v364, %v365
  %367 = vst [vmem:[%s10] sm:$0xf] %v366
  %v368 = vpack.c.bf16 %v366, %v366
  %v369 = vld [vmem:[%s6] sm:$0xff]
  %v370 = vld [vmem:[%s6 + $0x8] sm:$0xff]
  %v371 = vld [vmem:[%s6 + $0x10] sm:$0xff]
  %v372 = vld [vmem:[%s6 + $0x18] sm:$0xff]
  %v373 = vld [vmem:[%s6 + $0x20] sm:$0xff]
  %v374 = vld [vmem:[%s6 + $0x28] sm:$0xff]
  %v375 = vld [vmem:[%s6 + $0x30] sm:$0xff]
  %v376 = vld [vmem:[%s6 + $0x38] sm:$0xff]
  %v377 = vld [vmem:[%s6 + $0x40] sm:$0xff]
  %v378 = vld [vmem:[%s6 + $0x48] sm:$0xff]
  %v379 = vld [vmem:[%s6 + $0x50] sm:$0xff]
  %v380 = vld [vmem:[%s6 + $0x58] sm:$0xff]
  %v381 = vld [vmem:[%s6 + $0x60] sm:$0xff]
  %v382 = vld [vmem:[%s6 + $0x68] sm:$0xff]
  %v383 = vld [vmem:[%s6 + $0x70] sm:$0xff]
  %v384 = vld [vmem:[%s6 + $0x78] sm:$0xff]
  %v385 = vld [vmem:[%s6 + $0x80] sm:$0xff]
  %v386 = vld [vmem:[%s6 + $0x88] sm:$0xff]
  %v387 = vld [vmem:[%s6 + $0x90] sm:$0xff]
  %v388 = vld [vmem:[%s6 + $0x98] sm:$0xff]
  %v389 = vld [vmem:[%s6 + $0xa0] sm:$0xff]
  %v390 = vld [vmem:[%s6 + $0xa8] sm:$0xff]
  %v391 = vld [vmem:[%s6 + $0xb0] sm:$0xff]
  %v392 = vld [vmem:[%s6 + $0xb8] sm:$0xff]
  %v393 = vld [vmem:[%s6 + $0xc0] sm:$0xff]
  %v394 = vld [vmem:[%s6 + $0xc8] sm:$0xff]
  %v395 = vld [vmem:[%s6 + $0xd0] sm:$0xff]
  %v396 = vld [vmem:[%s6 + $0xd8] sm:$0xff]
  %v397 = vld [vmem:[%s6 + $0xe0] sm:$0xff]
  %v398 = vld [vmem:[%s6 + $0xe8] sm:$0xff]
  %v399 = vld [vmem:[%s6 + $0xf0] sm:$0xff]
  %v400 = vld [vmem:[%s6 + $0xf8] sm:$0xff]
  %v401 = vld [vmem:[%s6 + $0x100] sm:$0xff]
  %v402 = vld [vmem:[%s6 + $0x108] sm:$0xff]
  %v403 = vld [vmem:[%s6 + $0x110] sm:$0xff]
  %v404 = vld [vmem:[%s6 + $0x118] sm:$0xff]
  %v405 = vld [vmem:[%s6 + $0x120] sm:$0xff]
  %v406 = vld [vmem:[%s6 + $0x128] sm:$0xff]
  %v407 = vld [vmem:[%s6 + $0x130] sm:$0xff]
  %v408 = vld [vmem:[%s6 + $0x138] sm:$0xff]
  %v409 = vld [vmem:[%s6 + $0x140] sm:$0xff]
  %v410 = vld [vmem:[%s6 + $0x148] sm:$0xff]
  %v411 = vld [vmem:[%s6 + $0x150] sm:$0xff]
  %v412 = vld [vmem:[%s6 + $0x158] sm:$0xff]
  %v413 = vld [vmem:[%s6 + $0x160] sm:$0xff]
  %v414 = vld [vmem:[%s6 + $0x168] sm:$0xff]
  %v415 = vld [vmem:[%s6 + $0x170] sm:$0xff]
  %v416 = vld [vmem:[%s6 + $0x178] sm:$0xff]
  %v417 = vld [vmem:[%s6 + $0x180] sm:$0xff]
  %v418 = vld [vmem:[%s6 + $0x188] sm:$0xff]
  %v419 = vld [vmem:[%s6 + $0x190] sm:$0xff]
  %v420 = vld [vmem:[%s6 + $0x198] sm:$0xff]
  %v421 = vld [vmem:[%s6 + $0x1a0] sm:$0xff]
  %v422 = vld [vmem:[%s6 + $0x1a8] sm:$0xff]
  %v423 = vld [vmem:[%s6 + $0x1b0] sm:$0xff]
  %v424 = vld [vmem:[%s6 + $0x1b8] sm:$0xff]
  %v425 = vld [vmem:[%s6 + $0x1c0] sm:$0xff]
  %v426 = vld [vmem:[%s6 + $0x1c8] sm:$0xff]
  %v427 = vld [vmem:[%s6 + $0x1d0] sm:$0xff]
  %v428 = vld [vmem:[%s6 + $0x1d8] sm:$0xff]
  %v429 = vld [vmem:[%s6 + $0x1e0] sm:$0xff]
  %v430 = vld [vmem:[%s6 + $0x1e8] sm:$0xff]
  %v431 = vld [vmem:[%s6 + $0x1f0] sm:$0xff]
  %v432 = vld [vmem:[%s6 + $0x1f8] sm:$0xff]
  %v433 = vld [vmem:[%s7] sm:$0xff]
  %v435 = vperm.slane %v433, 0
  %v436 = vperm.slane %v433, 1
  %v437 = vperm.slane %v433, 2
  %v438 = vperm.slane %v433, 3
  %v439 = vperm.slane %v433, 4
  %v440 = vperm.slane %v433, 5
  %v441 = vperm.slane %v433, 6
  %v442 = vperm.slane %v433, 7
  %v515 = vunpack.c.l.b16 %v369
  %v516 = vunpack.c.h.b16 %v369
  %v517 = vunpack.c.l.b16 %v370
  %v518 = vunpack.c.h.b16 %v370
  %v519 = vunpack.c.l.b16 %v371
  %v520 = vunpack.c.h.b16 %v371
  %v521 = vunpack.c.l.b16 %v372
  %v522 = vunpack.c.h.b16 %v372
  %v523 = vunpack.c.l.b16 %v373
  %v524 = vunpack.c.h.b16 %v373
  %v525 = vunpack.c.l.b16 %v374
  %v526 = vunpack.c.h.b16 %v374
  %v527 = vunpack.c.l.b16 %v375
  %v528 = vunpack.c.h.b16 %v375
  %v529 = vunpack.c.l.b16 %v376
  %v530 = vunpack.c.h.b16 %v376
  %v531 = vunpack.c.l.b16 %v377
  %v532 = vunpack.c.h.b16 %v377
  %v533 = vunpack.c.l.b16 %v378
  %v534 = vunpack.c.h.b16 %v378
  %v535 = vunpack.c.l.b16 %v379
  %v536 = vunpack.c.h.b16 %v379
  %v537 = vunpack.c.l.b16 %v380
  %v538 = vunpack.c.h.b16 %v380
  %v539 = vunpack.c.l.b16 %v381
  %v540 = vunpack.c.h.b16 %v381
  %v541 = vunpack.c.l.b16 %v382
  %v542 = vunpack.c.h.b16 %v382
  %v543 = vunpack.c.l.b16 %v383
  %v544 = vunpack.c.h.b16 %v383
  %v545 = vunpack.c.l.b16 %v384
  %v546 = vunpack.c.h.b16 %v384
  %v547 = vunpack.c.l.b16 %v385
  %v548 = vunpack.c.h.b16 %v385
  %v549 = vunpack.c.l.b16 %v386
  %v550 = vunpack.c.h.b16 %v386
  %v551 = vunpack.c.l.b16 %v387
  %v552 = vunpack.c.h.b16 %v387
  %v553 = vunpack.c.l.b16 %v388
  %v554 = vunpack.c.h.b16 %v388
  %v555 = vunpack.c.l.b16 %v389
  %v556 = vunpack.c.h.b16 %v389
  %v557 = vunpack.c.l.b16 %v390
  %v558 = vunpack.c.h.b16 %v390
  %v559 = vunpack.c.l.b16 %v391
  %v560 = vunpack.c.h.b16 %v391
  %v561 = vunpack.c.l.b16 %v392
  %v562 = vunpack.c.h.b16 %v392
  %v563 = vunpack.c.l.b16 %v393
  %v564 = vunpack.c.h.b16 %v393
  %v565 = vunpack.c.l.b16 %v394
  %v566 = vunpack.c.h.b16 %v394
  %v567 = vunpack.c.l.b16 %v395
  %v568 = vunpack.c.h.b16 %v395
  %v569 = vunpack.c.l.b16 %v396
  %v570 = vunpack.c.h.b16 %v396
  %v571 = vunpack.c.l.b16 %v397
  %v572 = vunpack.c.h.b16 %v397
  %v573 = vunpack.c.l.b16 %v398
  %v574 = vunpack.c.h.b16 %v398
  %v575 = vunpack.c.l.b16 %v399
  %v576 = vunpack.c.h.b16 %v399
  %v577 = vunpack.c.l.b16 %v400
  %v578 = vunpack.c.h.b16 %v400
  %v579 = vunpack.c.l.b16 %v401
  %v580 = vunpack.c.h.b16 %v401
  %v581 = vunpack.c.l.b16 %v402
  %v582 = vunpack.c.h.b16 %v402
  %v583 = vunpack.c.l.b16 %v403
  %v584 = vunpack.c.h.b16 %v403
  %v585 = vunpack.c.l.b16 %v404
  %v586 = vunpack.c.h.b16 %v404
  %v587 = vunpack.c.l.b16 %v405
  %v588 = vunpack.c.h.b16 %v405
  %v589 = vunpack.c.l.b16 %v406
  %v590 = vunpack.c.h.b16 %v406
  %v591 = vunpack.c.l.b16 %v407
  %v592 = vunpack.c.h.b16 %v407
  %v593 = vunpack.c.l.b16 %v408
  %v594 = vunpack.c.h.b16 %v408
  %v595 = vunpack.c.l.b16 %v409
  %v596 = vunpack.c.h.b16 %v409
  %v597 = vunpack.c.l.b16 %v410
  %v598 = vunpack.c.h.b16 %v410
  %v599 = vunpack.c.l.b16 %v411
  %v600 = vunpack.c.h.b16 %v411
  %v601 = vunpack.c.l.b16 %v412
  %v602 = vunpack.c.h.b16 %v412
  %v603 = vunpack.c.l.b16 %v413
  %v604 = vunpack.c.h.b16 %v413
  %v605 = vunpack.c.l.b16 %v414
  %v606 = vunpack.c.h.b16 %v414
  %v607 = vunpack.c.l.b16 %v415
  %v608 = vunpack.c.h.b16 %v415
  %v609 = vunpack.c.l.b16 %v416
  %v610 = vunpack.c.h.b16 %v416
  %v611 = vunpack.c.l.b16 %v417
  %v612 = vunpack.c.h.b16 %v417
  %v613 = vunpack.c.l.b16 %v418
  %v614 = vunpack.c.h.b16 %v418
  %v615 = vunpack.c.l.b16 %v419
  %v616 = vunpack.c.h.b16 %v419
  %v617 = vunpack.c.l.b16 %v420
  %v618 = vunpack.c.h.b16 %v420
  %v619 = vunpack.c.l.b16 %v421
  %v620 = vunpack.c.h.b16 %v421
  %v621 = vunpack.c.l.b16 %v422
  %v622 = vunpack.c.h.b16 %v422
  %v623 = vunpack.c.l.b16 %v423
  %v624 = vunpack.c.h.b16 %v423
  %v625 = vunpack.c.l.b16 %v424
  %v626 = vunpack.c.h.b16 %v424
  %v627 = vunpack.c.l.b16 %v425
  %v628 = vunpack.c.h.b16 %v425
  %v629 = vunpack.c.l.b16 %v426
  %v630 = vunpack.c.h.b16 %v426
  %v631 = vunpack.c.l.b16 %v427
  %v632 = vunpack.c.h.b16 %v427
  %v633 = vunpack.c.l.b16 %v428
  %v634 = vunpack.c.h.b16 %v428
  %v635 = vunpack.c.l.b16 %v429
  %v636 = vunpack.c.h.b16 %v429
  %v637 = vunpack.c.l.b16 %v430
  %v638 = vunpack.c.h.b16 %v430
  %v639 = vunpack.c.l.b16 %v431
  %v640 = vunpack.c.h.b16 %v431
  %v641 = vunpack.c.l.b16 %v432
  %v642 = vunpack.c.h.b16 %v432
  %v643 = vpack.c.b16 %v523, %v515
  %v644 = vpack.c.b16 %v524, %v516
  %v645 = vpack.c.b16 %v525, %v517
  %v646 = vpack.c.b16 %v526, %v518
  %v647 = vpack.c.b16 %v527, %v519
  %v648 = vpack.c.b16 %v528, %v520
  %v649 = vpack.c.b16 %v529, %v521
  %v650 = vpack.c.b16 %v530, %v522
  %v651 = vpack.c.b16 %v539, %v531
  %v652 = vpack.c.b16 %v540, %v532
  %v653 = vpack.c.b16 %v541, %v533
  %v654 = vpack.c.b16 %v542, %v534
  %v655 = vpack.c.b16 %v543, %v535
  %v656 = vpack.c.b16 %v544, %v536
  %v657 = vpack.c.b16 %v545, %v537
  %v658 = vpack.c.b16 %v546, %v538
  %v659 = vpack.c.b16 %v555, %v547
  %v660 = vpack.c.b16 %v556, %v548
  %v661 = vpack.c.b16 %v557, %v549
  %v662 = vpack.c.b16 %v558, %v550
  %v663 = vpack.c.b16 %v559, %v551
  %v664 = vpack.c.b16 %v560, %v552
  %v665 = vpack.c.b16 %v561, %v553
  %v666 = vpack.c.b16 %v562, %v554
  %v667 = vpack.c.b16 %v571, %v563
  %v668 = vpack.c.b16 %v572, %v564
  %v669 = vpack.c.b16 %v573, %v565
  %v670 = vpack.c.b16 %v574, %v566
  %v671 = vpack.c.b16 %v575, %v567
  %v672 = vpack.c.b16 %v576, %v568
  %v673 = vpack.c.b16 %v577, %v569
  %v674 = vpack.c.b16 %v578, %v570
  %v675 = vpack.c.b16 %v587, %v579
  %v676 = vpack.c.b16 %v588, %v580
  %v677 = vpack.c.b16 %v589, %v581
  %v678 = vpack.c.b16 %v590, %v582
  %v679 = vpack.c.b16 %v591, %v583
  %v680 = vpack.c.b16 %v592, %v584
  %v681 = vpack.c.b16 %v593, %v585
  %v682 = vpack.c.b16 %v594, %v586
  %v683 = vpack.c.b16 %v603, %v595
  %v684 = vpack.c.b16 %v604, %v596
  %v685 = vpack.c.b16 %v605, %v597
  %v686 = vpack.c.b16 %v606, %v598
  %v687 = vpack.c.b16 %v607, %v599
  %v688 = vpack.c.b16 %v608, %v600
  %v689 = vpack.c.b16 %v609, %v601
  %v690 = vpack.c.b16 %v610, %v602
  %v691 = vpack.c.b16 %v619, %v611
  %v692 = vpack.c.b16 %v620, %v612
  %v693 = vpack.c.b16 %v621, %v613
  %v694 = vpack.c.b16 %v622, %v614
  %v695 = vpack.c.b16 %v623, %v615
  %v696 = vpack.c.b16 %v624, %v616
  %v697 = vpack.c.b16 %v625, %v617
  %v698 = vpack.c.b16 %v626, %v618
  %v699 = vpack.c.b16 %v635, %v627
  %v700 = vpack.c.b16 %v636, %v628
  %v701 = vpack.c.b16 %v637, %v629
  %v702 = vpack.c.b16 %v638, %v630
  %v703 = vpack.c.b16 %v639, %v631
  %v704 = vpack.c.b16 %v640, %v632
  %v705 = vpack.c.b16 %v641, %v633
  %v706 = vpack.c.b16 %v642, %v634
  %771 = vmatpush.bf16.msra.mxu0 %v699
  %772 = vmatpush.bf16.msra.mxu0 %v691
  %773 = vmatpush.bf16.msra.mxu0 %v683
  %774 = vmatpush.bf16.msra.mxu0 %v675
  %775 = vmatpush.bf16.msra.mxu0 %v667
  %776 = vmatpush.bf16.msra.mxu0 %v659
  %777 = vmatpush.bf16.msra.mxu0 %v651
  %778 = vmatpush.bf16.msra.mxu0 %v643
  %779 = vmatmul.bf16.gmra.mxu0 %v368
  %v780 = vpop.f32.mrf.mxu0
  %v781 = vadd.f32 %v435, %v780
  %v782 = vpop.f32.mrf.mxu0
  %783 = vdwg.mxu0
  %784 = vmatpush.bf16.msra.mxu0 %v700
  %785 = vmatpush.bf16.msra.mxu0 %v692
  %786 = vmatpush.bf16.msra.mxu0 %v684
  %787 = vmatpush.bf16.msra.mxu0 %v676
  %788 = vmatpush.bf16.msra.mxu0 %v668
  %789 = vmatpush.bf16.msra.mxu0 %v660
  %790 = vmatpush.bf16.msra.mxu0 %v652
  %791 = vmatpush.bf16.msra.mxu0 %v644
  %792 = vmatmul.bf16.gmra.mxu0 %v368
  %v793 = vpop.f32.mrf.mxu0
  %v794 = vadd.f32 %v436, %v793
  %v795 = vpop.f32.mrf.mxu0
  %796 = vdwg.mxu0
  %797 = vmatpush.bf16.msra.mxu0 %v701
  %798 = vmatpush.bf16.msra.mxu0 %v693
  %799 = vmatpush.bf16.msra.mxu0 %v685
  %800 = vmatpush.bf16.msra.mxu0 %v677
  %801 = vmatpush.bf16.msra.mxu0 %v669
  %802 = vmatpush.bf16.msra.mxu0 %v661
  %803 = vmatpush.bf16.msra.mxu0 %v653
  %804 = vmatpush.bf16.msra.mxu0 %v645
  %805 = vmatmul.bf16.gmra.mxu0 %v368
  %v806 = vpop.f32.mrf.mxu0
  %v807 = vadd.f32 %v437, %v806
  %v808 = vpop.f32.mrf.mxu0
  %809 = vdwg.mxu0
  %810 = vmatpush.bf16.msra.mxu0 %v702
  %811 = vmatpush.bf16.msra.mxu0 %v694
  %812 = vmatpush.bf16.msra.mxu0 %v686
  %813 = vmatpush.bf16.msra.mxu0 %v678
  %814 = vmatpush.bf16.msra.mxu0 %v670
  %815 = vmatpush.bf16.msra.mxu0 %v662
  %816 = vmatpush.bf16.msra.mxu0 %v654
  %817 = vmatpush.bf16.msra.mxu0 %v646
  %818 = vmatmul.bf16.gmra.mxu0 %v368
  %v819 = vpop.f32.mrf.mxu0
  %v820 = vadd.f32 %v438, %v819
  %v821 = vpop.f32.mrf.mxu0
  %822 = vdwg.mxu0
  %823 = vmatpush.bf16.msra.mxu0 %v703
  %824 = vmatpush.bf16.msra.mxu0 %v695
  %825 = vmatpush.bf16.msra.mxu0 %v687
  %826 = vmatpush.bf16.msra.mxu0 %v679
  %827 = vmatpush.bf16.msra.mxu0 %v671
  %828 = vmatpush.bf16.msra.mxu0 %v663
  %829 = vmatpush.bf16.msra.mxu0 %v655
  %830 = vmatpush.bf16.msra.mxu0 %v647
  %831 = vmatmul.bf16.gmra.mxu0 %v368
  %v832 = vpop.f32.mrf.mxu0
  %v833 = vadd.f32 %v439, %v832
  %v834 = vpop.f32.mrf.mxu0
  %835 = vdwg.mxu0
  %836 = vmatpush.bf16.msra.mxu0 %v704
  %837 = vmatpush.bf16.msra.mxu0 %v696
  %838 = vmatpush.bf16.msra.mxu0 %v688
  %839 = vmatpush.bf16.msra.mxu0 %v680
  %840 = vmatpush.bf16.msra.mxu0 %v672
  %841 = vmatpush.bf16.msra.mxu0 %v664
  %842 = vmatpush.bf16.msra.mxu0 %v656
  %843 = vmatpush.bf16.msra.mxu0 %v648
  %844 = vmatmul.bf16.gmra.mxu0 %v368
  %v845 = vpop.f32.mrf.mxu0
  %v846 = vadd.f32 %v440, %v845
  %v847 = vpop.f32.mrf.mxu0
  %848 = vdwg.mxu0
  %849 = vmatpush.bf16.msra.mxu0 %v705
  %850 = vmatpush.bf16.msra.mxu0 %v697
  %851 = vmatpush.bf16.msra.mxu0 %v689
  %852 = vmatpush.bf16.msra.mxu0 %v681
  %853 = vmatpush.bf16.msra.mxu0 %v673
  %854 = vmatpush.bf16.msra.mxu0 %v665
  %855 = vmatpush.bf16.msra.mxu0 %v657
  %856 = vmatpush.bf16.msra.mxu0 %v649
  %857 = vmatmul.bf16.gmra.mxu0 %v368
  %v858 = vpop.f32.mrf.mxu0
  %v859 = vadd.f32 %v441, %v858
  %v860 = vpop.f32.mrf.mxu0
  %861 = vdwg.mxu0
  %862 = vmatpush.bf16.msra.mxu0 %v706
  %863 = vmatpush.bf16.msra.mxu0 %v698
  %864 = vmatpush.bf16.msra.mxu0 %v690
  %865 = vmatpush.bf16.msra.mxu0 %v682
  %866 = vmatpush.bf16.msra.mxu0 %v674
  %867 = vmatpush.bf16.msra.mxu0 %v666
  %868 = vmatpush.bf16.msra.mxu0 %v658
  %869 = vmatpush.bf16.msra.mxu0 %v650
  %870 = vmatmul.bf16.gmra.mxu0 %v368
  %v871 = vpop.f32.mrf.mxu0
  %v872 = vadd.f32 %v442, %v871
  %v873 = vpop.f32.mrf.mxu0
  %874 = vdwg.mxu0
  %v875 = vmax.f32 %v781, 0.0
  %v876 = vmax.f32 %v794, 0.0
  %v877 = vmax.f32 %v807, 0.0
  %v878 = vmax.f32 %v820, 0.0
  %v879 = vmax.f32 %v833, 0.0
  %v880 = vmax.f32 %v846, 0.0
  %v881 = vmax.f32 %v859, 0.0
  %v882 = vmax.f32 %v872, 0.0
  %v883 = vpack.c.bf16 %v875, %v875
  %v884 = vpack.c.bf16 %v876, %v876
  %v885 = vpack.c.bf16 %v877, %v877
  %v886 = vpack.c.bf16 %v878, %v878
  %v887 = vpack.c.bf16 %v879, %v879
  %v888 = vpack.c.bf16 %v880, %v880
  %v889 = vpack.c.bf16 %v881, %v881
  %v890 = vpack.c.bf16 %v882, %v882
  %v891 = vld [vmem:[%s8] sm:$0xf]
  %v892 = vld [vmem:[%s8 + $0x4] sm:$0xf]
  %v893 = vld [vmem:[%s8 + $0x8] sm:$0xf]
  %v894 = vld [vmem:[%s8 + $0xc] sm:$0xf]
  %v895 = vld [vmem:[%s8 + $0x10] sm:$0xf]
  %v896 = vld [vmem:[%s8 + $0x14] sm:$0xf]
  %v897 = vld [vmem:[%s8 + $0x18] sm:$0xf]
  %v898 = vld [vmem:[%s8 + $0x1c] sm:$0xf]
  %v899 = vld [vmem:[%s8 + $0x20] sm:$0xf]
  %v900 = vld [vmem:[%s8 + $0x24] sm:$0xf]
  %v901 = vld [vmem:[%s8 + $0x28] sm:$0xf]
  %v902 = vld [vmem:[%s8 + $0x2c] sm:$0xf]
  %v903 = vld [vmem:[%s8 + $0x30] sm:$0xf]
  %v904 = vld [vmem:[%s8 + $0x34] sm:$0xf]
  %v905 = vld [vmem:[%s8 + $0x38] sm:$0xf]
  %v906 = vld [vmem:[%s8 + $0x3c] sm:$0xf]
  %v907 = vld [vmem:[%s8 + $0x40] sm:$0xf]
  %v908 = vld [vmem:[%s8 + $0x44] sm:$0xf]
  %v909 = vld [vmem:[%s8 + $0x48] sm:$0xf]
  %v910 = vld [vmem:[%s8 + $0x4c] sm:$0xf]
  %v911 = vld [vmem:[%s8 + $0x50] sm:$0xf]
  %v912 = vld [vmem:[%s8 + $0x54] sm:$0xf]
  %v913 = vld [vmem:[%s8 + $0x58] sm:$0xf]
  %v914 = vld [vmem:[%s8 + $0x5c] sm:$0xf]
  %v915 = vld [vmem:[%s8 + $0x60] sm:$0xf]
  %v916 = vld [vmem:[%s8 + $0x64] sm:$0xf]
  %v917 = vld [vmem:[%s8 + $0x68] sm:$0xf]
  %v918 = vld [vmem:[%s8 + $0x6c] sm:$0xf]
  %v919 = vld [vmem:[%s8 + $0x70] sm:$0xf]
  %v920 = vld [vmem:[%s8 + $0x74] sm:$0xf]
  %v921 = vld [vmem:[%s8 + $0x78] sm:$0xf]
  %v922 = vld [vmem:[%s8 + $0x7c] sm:$0xf]
  %v923 = vld [vmem:[%s8 + $0x80] sm:$0xf]
  %v924 = vld [vmem:[%s8 + $0x84] sm:$0xf]
  %v925 = vld [vmem:[%s8 + $0x88] sm:$0xf]
  %v926 = vld [vmem:[%s8 + $0x8c] sm:$0xf]
  %v927 = vld [vmem:[%s8 + $0x90] sm:$0xf]
  %v928 = vld [vmem:[%s8 + $0x94] sm:$0xf]
  %v929 = vld [vmem:[%s8 + $0x98] sm:$0xf]
  %v930 = vld [vmem:[%s8 + $0x9c] sm:$0xf]
  %v931 = vld [vmem:[%s8 + $0xa0] sm:$0xf]
  %v932 = vld [vmem:[%s8 + $0xa4] sm:$0xf]
  %v933 = vld [vmem:[%s8 + $0xa8] sm:$0xf]
  %v934 = vld [vmem:[%s8 + $0xac] sm:$0xf]
  %v935 = vld [vmem:[%s8 + $0xb0] sm:$0xf]
  %v936 = vld [vmem:[%s8 + $0xb4] sm:$0xf]
  %v937 = vld [vmem:[%s8 + $0xb8] sm:$0xf]
  %v938 = vld [vmem:[%s8 + $0xbc] sm:$0xf]
  %v939 = vld [vmem:[%s8 + $0xc0] sm:$0xf]
  %v940 = vld [vmem:[%s8 + $0xc4] sm:$0xf]
  %v941 = vld [vmem:[%s8 + $0xc8] sm:$0xf]
  %v942 = vld [vmem:[%s8 + $0xcc] sm:$0xf]
  %v943 = vld [vmem:[%s8 + $0xd0] sm:$0xf]
  %v944 = vld [vmem:[%s8 + $0xd4] sm:$0xf]
  %v945 = vld [vmem:[%s8 + $0xd8] sm:$0xf]
  %v946 = vld [vmem:[%s8 + $0xdc] sm:$0xf]
  %v947 = vld [vmem:[%s8 + $0xe0] sm:$0xf]
  %v948 = vld [vmem:[%s8 + $0xe4] sm:$0xf]
  %v949 = vld [vmem:[%s8 + $0xe8] sm:$0xf]
  %v950 = vld [vmem:[%s8 + $0xec] sm:$0xf]
  %v951 = vld [vmem:[%s8 + $0xf0] sm:$0xf]
  %v952 = vld [vmem:[%s8 + $0xf4] sm:$0xf]
  %v953 = vld [vmem:[%s8 + $0xf8] sm:$0xf]
  %v954 = vld [vmem:[%s8 + $0xfc] sm:$0xf]
  %v955 = vld [vmem:[%s8 + $0x100] sm:$0xf]
  %v956 = vld [vmem:[%s8 + $0x104] sm:$0xf]
  %v957 = vld [vmem:[%s8 + $0x108] sm:$0xf]
  %v958 = vld [vmem:[%s8 + $0x10c] sm:$0xf]
  %v959 = vld [vmem:[%s8 + $0x110] sm:$0xf]
  %v960 = vld [vmem:[%s8 + $0x114] sm:$0xf]
  %v961 = vld [vmem:[%s8 + $0x118] sm:$0xf]
  %v962 = vld [vmem:[%s8 + $0x11c] sm:$0xf]
  %v963 = vld [vmem:[%s8 + $0x120] sm:$0xf]
  %v964 = vld [vmem:[%s8 + $0x124] sm:$0xf]
  %v965 = vld [vmem:[%s8 + $0x128] sm:$0xf]
  %v966 = vld [vmem:[%s8 + $0x12c] sm:$0xf]
  %v967 = vld [vmem:[%s8 + $0x130] sm:$0xf]
  %v968 = vld [vmem:[%s8 + $0x134] sm:$0xf]
  %v969 = vld [vmem:[%s8 + $0x138] sm:$0xf]
  %v970 = vld [vmem:[%s8 + $0x13c] sm:$0xf]
  %v971 = vld [vmem:[%s8 + $0x140] sm:$0xf]
  %v972 = vld [vmem:[%s8 + $0x144] sm:$0xf]
  %v973 = vld [vmem:[%s8 + $0x148] sm:$0xf]
  %v974 = vld [vmem:[%s8 + $0x14c] sm:$0xf]
  %v975 = vld [vmem:[%s8 + $0x150] sm:$0xf]
  %v976 = vld [vmem:[%s8 + $0x154] sm:$0xf]
  %v977 = vld [vmem:[%s8 + $0x158] sm:$0xf]
  %v978 = vld [vmem:[%s8 + $0x15c] sm:$0xf]
  %v979 = vld [vmem:[%s8 + $0x160] sm:$0xf]
  %v980 = vld [vmem:[%s8 + $0x164] sm:$0xf]
  %v981 = vld [vmem:[%s8 + $0x168] sm:$0xf]
  %v982 = vld [vmem:[%s8 + $0x16c] sm:$0xf]
  %v983 = vld [vmem:[%s8 + $0x170] sm:$0xf]
  %v984 = vld [vmem:[%s8 + $0x174] sm:$0xf]
  %v985 = vld [vmem:[%s8 + $0x178] sm:$0xf]
  %v986 = vld [vmem:[%s8 + $0x17c] sm:$0xf]
  %v987 = vld [vmem:[%s8 + $0x180] sm:$0xf]
  %v988 = vld [vmem:[%s8 + $0x184] sm:$0xf]
  %v989 = vld [vmem:[%s8 + $0x188] sm:$0xf]
  %v990 = vld [vmem:[%s8 + $0x18c] sm:$0xf]
  %v991 = vld [vmem:[%s8 + $0x190] sm:$0xf]
  %v992 = vld [vmem:[%s8 + $0x194] sm:$0xf]
  %v993 = vld [vmem:[%s8 + $0x198] sm:$0xf]
  %v994 = vld [vmem:[%s8 + $0x19c] sm:$0xf]
  %v995 = vld [vmem:[%s8 + $0x1a0] sm:$0xf]
  %v996 = vld [vmem:[%s8 + $0x1a4] sm:$0xf]
  %v997 = vld [vmem:[%s8 + $0x1a8] sm:$0xf]
  %v998 = vld [vmem:[%s8 + $0x1ac] sm:$0xf]
  %v999 = vld [vmem:[%s8 + $0x1b0] sm:$0xf]
  %v1000 = vld [vmem:[%s8 + $0x1b4] sm:$0xf]
  %v1001 = vld [vmem:[%s8 + $0x1b8] sm:$0xf]
  %v1002 = vld [vmem:[%s8 + $0x1bc] sm:$0xf]
  %v1003 = vld [vmem:[%s8 + $0x1c0] sm:$0xf]
  %v1004 = vld [vmem:[%s8 + $0x1c4] sm:$0xf]
  %v1005 = vld [vmem:[%s8 + $0x1c8] sm:$0xf]
  %v1006 = vld [vmem:[%s8 + $0x1cc] sm:$0xf]
  %v1007 = vld [vmem:[%s8 + $0x1d0] sm:$0xf]
  %v1008 = vld [vmem:[%s8 + $0x1d4] sm:$0xf]
  %v1009 = vld [vmem:[%s8 + $0x1d8] sm:$0xf]
  %v1010 = vld [vmem:[%s8 + $0x1dc] sm:$0xf]
  %v1011 = vld [vmem:[%s8 + $0x1e0] sm:$0xf]
  %v1012 = vld [vmem:[%s8 + $0x1e4] sm:$0xf]
  %v1013 = vld [vmem:[%s8 + $0x1e8] sm:$0xf]
  %v1014 = vld [vmem:[%s8 + $0x1ec] sm:$0xf]
  %v1015 = vld [vmem:[%s8 + $0x1f0] sm:$0xf]
  %v1016 = vld [vmem:[%s8 + $0x1f4] sm:$0xf]
  %v1017 = vld [vmem:[%s8 + $0x1f8] sm:$0xf]
  %v1018 = vld [vmem:[%s8 + $0x1fc] sm:$0xf]
  %v1019 = vld [vmem:[%s9] sm:$0x1]
  %v1021 = vperm.slane %v1019, 0
  %v1151 = vunpack.c.l.b16 %v891
  %v1152 = vunpack.c.l.b16 %v892
  %v1153 = vunpack.c.l.b16 %v893
  %v1154 = vunpack.c.l.b16 %v894
  %v1155 = vunpack.c.l.b16 %v895
  %v1156 = vunpack.c.l.b16 %v896
  %v1157 = vunpack.c.l.b16 %v897
  %v1158 = vunpack.c.l.b16 %v898
  %v1159 = vunpack.c.l.b16 %v899
  %v1160 = vunpack.c.l.b16 %v900
  %v1161 = vunpack.c.l.b16 %v901
  %v1162 = vunpack.c.l.b16 %v902
  %v1163 = vunpack.c.l.b16 %v903
  %v1164 = vunpack.c.l.b16 %v904
  %v1165 = vunpack.c.l.b16 %v905
  %v1166 = vunpack.c.l.b16 %v906
  %v1167 = vunpack.c.l.b16 %v907
  %v1168 = vunpack.c.l.b16 %v908
  %v1169 = vunpack.c.l.b16 %v909
  %v1170 = vunpack.c.l.b16 %v910
  %v1171 = vunpack.c.l.b16 %v911
  %v1172 = vunpack.c.l.b16 %v912
  %v1173 = vunpack.c.l.b16 %v913
  %v1174 = vunpack.c.l.b16 %v914
  %v1175 = vunpack.c.l.b16 %v915
  %v1176 = vunpack.c.l.b16 %v916
  %v1177 = vunpack.c.l.b16 %v917
  %v1178 = vunpack.c.l.b16 %v918
  %v1179 = vunpack.c.l.b16 %v919
  %v1180 = vunpack.c.l.b16 %v920
  %v1181 = vunpack.c.l.b16 %v921
  %v1182 = vunpack.c.l.b16 %v922
  %v1183 = vunpack.c.l.b16 %v923
  %v1184 = vunpack.c.l.b16 %v924
  %v1185 = vunpack.c.l.b16 %v925
  %v1186 = vunpack.c.l.b16 %v926
  %v1187 = vunpack.c.l.b16 %v927
  %v1188 = vunpack.c.l.b16 %v928
  %v1189 = vunpack.c.l.b16 %v929
  %v1190 = vunpack.c.l.b16 %v930
  %v1191 = vunpack.c.l.b16 %v931
  %v1192 = vunpack.c.l.b16 %v932
  %v1193 = vunpack.c.l.b16 %v933
  %v1194 = vunpack.c.l.b16 %v934
  %v1195 = vunpack.c.l.b16 %v935
  %v1196 = vunpack.c.l.b16 %v936
  %v1197 = vunpack.c.l.b16 %v937
  %v1198 = vunpack.c.l.b16 %v938
  %v1199 = vunpack.c.l.b16 %v939
  %v1200 = vunpack.c.l.b16 %v940
  %v1201 = vunpack.c.l.b16 %v941
  %v1202 = vunpack.c.l.b16 %v942
  %v1203 = vunpack.c.l.b16 %v943
  %v1204 = vunpack.c.l.b16 %v944
  %v1205 = vunpack.c.l.b16 %v945
  %v1206 = vunpack.c.l.b16 %v946
  %v1207 = vunpack.c.l.b16 %v947
  %v1208 = vunpack.c.l.b16 %v948
  %v1209 = vunpack.c.l.b16 %v949
  %v1210 = vunpack.c.l.b16 %v950
  %v1211 = vunpack.c.l.b16 %v951
  %v1212 = vunpack.c.l.b16 %v952
  %v1213 = vunpack.c.l.b16 %v953
  %v1214 = vunpack.c.l.b16 %v954
  %v1215 = vunpack.c.l.b16 %v955
  %v1216 = vunpack.c.l.b16 %v956
  %v1217 = vunpack.c.l.b16 %v957
  %v1218 = vunpack.c.l.b16 %v958
  %v1219 = vunpack.c.l.b16 %v959
  %v1220 = vunpack.c.l.b16 %v960
  %v1221 = vunpack.c.l.b16 %v961
  %v1222 = vunpack.c.l.b16 %v962
  %v1223 = vunpack.c.l.b16 %v963
  %v1224 = vunpack.c.l.b16 %v964
  %v1225 = vunpack.c.l.b16 %v965
  %v1226 = vunpack.c.l.b16 %v966
  %v1227 = vunpack.c.l.b16 %v967
  %v1228 = vunpack.c.l.b16 %v968
  %v1229 = vunpack.c.l.b16 %v969
  %v1230 = vunpack.c.l.b16 %v970
  %v1231 = vunpack.c.l.b16 %v971
  %v1232 = vunpack.c.l.b16 %v972
  %v1233 = vunpack.c.l.b16 %v973
  %v1234 = vunpack.c.l.b16 %v974
  %v1235 = vunpack.c.l.b16 %v975
  %v1236 = vunpack.c.l.b16 %v976
  %v1237 = vunpack.c.l.b16 %v977
  %v1238 = vunpack.c.l.b16 %v978
  %v1239 = vunpack.c.l.b16 %v979
  %v1240 = vunpack.c.l.b16 %v980
  %v1241 = vunpack.c.l.b16 %v981
  %v1242 = vunpack.c.l.b16 %v982
  %v1243 = vunpack.c.l.b16 %v983
  %v1244 = vunpack.c.l.b16 %v984
  %v1245 = vunpack.c.l.b16 %v985
  %v1246 = vunpack.c.l.b16 %v986
  %v1247 = vunpack.c.l.b16 %v987
  %v1248 = vunpack.c.l.b16 %v988
  %v1249 = vunpack.c.l.b16 %v989
  %v1250 = vunpack.c.l.b16 %v990
  %v1251 = vunpack.c.l.b16 %v991
  %v1252 = vunpack.c.l.b16 %v992
  %v1253 = vunpack.c.l.b16 %v993
  %v1254 = vunpack.c.l.b16 %v994
  %v1255 = vunpack.c.l.b16 %v995
  %v1256 = vunpack.c.l.b16 %v996
  %v1257 = vunpack.c.l.b16 %v997
  %v1258 = vunpack.c.l.b16 %v998
  %v1259 = vunpack.c.l.b16 %v999
  %v1260 = vunpack.c.l.b16 %v1000
  %v1261 = vunpack.c.l.b16 %v1001
  %v1262 = vunpack.c.l.b16 %v1002
  %v1263 = vunpack.c.l.b16 %v1003
  %v1264 = vunpack.c.l.b16 %v1004
  %v1265 = vunpack.c.l.b16 %v1005
  %v1266 = vunpack.c.l.b16 %v1006
  %v1267 = vunpack.c.l.b16 %v1007
  %v1268 = vunpack.c.l.b16 %v1008
  %v1269 = vunpack.c.l.b16 %v1009
  %v1270 = vunpack.c.l.b16 %v1010
  %v1271 = vunpack.c.l.b16 %v1011
  %v1272 = vunpack.c.l.b16 %v1012
  %v1273 = vunpack.c.l.b16 %v1013
  %v1274 = vunpack.c.l.b16 %v1014
  %v1275 = vunpack.c.l.b16 %v1015
  %v1276 = vunpack.c.l.b16 %v1016
  %v1277 = vunpack.c.l.b16 %v1017
  %v1278 = vunpack.c.l.b16 %v1018
  %v1279 = vpack.c.b16 %v1152, %v1151
  %v1280 = vpack.c.b16 %v1154, %v1153
  %v1281 = vpack.c.b16 %v1156, %v1155
  %v1282 = vpack.c.b16 %v1158, %v1157
  %v1283 = vpack.c.b16 %v1160, %v1159
  %v1284 = vpack.c.b16 %v1162, %v1161
  %v1285 = vpack.c.b16 %v1164, %v1163
  %v1286 = vpack.c.b16 %v1166, %v1165
  %v1287 = vpack.c.b16 %v1168, %v1167
  %v1288 = vpack.c.b16 %v1170, %v1169
  %v1289 = vpack.c.b16 %v1172, %v1171
  %v1290 = vpack.c.b16 %v1174, %v1173
  %v1291 = vpack.c.b16 %v1176, %v1175
  %v1292 = vpack.c.b16 %v1178, %v1177
  %v1293 = vpack.c.b16 %v1180, %v1179
  %v1294 = vpack.c.b16 %v1182, %v1181
  %v1295 = vpack.c.b16 %v1184, %v1183
  %v1296 = vpack.c.b16 %v1186, %v1185
  %v1297 = vpack.c.b16 %v1188, %v1187
  %v1298 = vpack.c.b16 %v1190, %v1189
  %v1299 = vpack.c.b16 %v1192, %v1191
  %v1300 = vpack.c.b16 %v1194, %v1193
  %v1301 = vpack.c.b16 %v1196, %v1195
  %v1302 = vpack.c.b16 %v1198, %v1197
  %v1303 = vpack.c.b16 %v1200, %v1199
  %v1304 = vpack.c.b16 %v1202, %v1201
  %v1305 = vpack.c.b16 %v1204, %v1203
  %v1306 = vpack.c.b16 %v1206, %v1205
  %v1307 = vpack.c.b16 %v1208, %v1207
  %v1308 = vpack.c.b16 %v1210, %v1209
  %v1309 = vpack.c.b16 %v1212, %v1211
  %v1310 = vpack.c.b16 %v1214, %v1213
  %v1311 = vpack.c.b16 %v1216, %v1215
  %v1312 = vpack.c.b16 %v1218, %v1217
  %v1313 = vpack.c.b16 %v1220, %v1219
  %v1314 = vpack.c.b16 %v1222, %v1221
  %v1315 = vpack.c.b16 %v1224, %v1223
  %v1316 = vpack.c.b16 %v1226, %v1225
  %v1317 = vpack.c.b16 %v1228, %v1227
  %v1318 = vpack.c.b16 %v1230, %v1229
  %v1319 = vpack.c.b16 %v1232, %v1231
  %v1320 = vpack.c.b16 %v1234, %v1233
  %v1321 = vpack.c.b16 %v1236, %v1235
  %v1322 = vpack.c.b16 %v1238, %v1237
  %v1323 = vpack.c.b16 %v1240, %v1239
  %v1324 = vpack.c.b16 %v1242, %v1241
  %v1325 = vpack.c.b16 %v1244, %v1243
  %v1326 = vpack.c.b16 %v1246, %v1245
  %v1327 = vpack.c.b16 %v1248, %v1247
  %v1328 = vpack.c.b16 %v1250, %v1249
  %v1329 = vpack.c.b16 %v1252, %v1251
  %v1330 = vpack.c.b16 %v1254, %v1253
  %v1331 = vpack.c.b16 %v1256, %v1255
  %v1332 = vpack.c.b16 %v1258, %v1257
  %v1333 = vpack.c.b16 %v1260, %v1259
  %v1334 = vpack.c.b16 %v1262, %v1261
  %v1335 = vpack.c.b16 %v1264, %v1263
  %v1336 = vpack.c.b16 %v1266, %v1265
  %v1337 = vpack.c.b16 %v1268, %v1267
  %v1338 = vpack.c.b16 %v1270, %v1269
  %v1339 = vpack.c.b16 %v1272, %v1271
  %v1340 = vpack.c.b16 %v1274, %v1273
  %v1341 = vpack.c.b16 %v1276, %v1275
  %v1342 = vpack.c.b16 %v1278, %v1277
  %1407 = vmatpush.bf16.msra.mxu0 %v1286
  %1408 = vmatpush.bf16.msra.mxu0 %v1285
  %1409 = vmatpush.bf16.msra.mxu0 %v1284
  %1410 = vmatpush.bf16.msra.mxu0 %v1283
  %1411 = vmatpush.bf16.msra.mxu0 %v1282
  %1412 = vmatpush.bf16.msra.mxu0 %v1281
  %1413 = vmatpush.bf16.msra.mxu0 %v1280
  %1414 = vmatpush.bf16.msra.mxu0 %v1279
  %1415 = vmatmul.bf16.gmra.mxu0 %v883
  %v1416 = vpop.f32.mrf.mxu0
  %v1417 = vadd.f32 %v1021, %v1416
  %v1418 = vpop.f32.mrf.mxu0
  %1419 = vdwg.mxu0
  %1420 = vmatpush.bf16.msra.mxu0 %v1294
  %1421 = vmatpush.bf16.msra.mxu0 %v1293
  %1422 = vmatpush.bf16.msra.mxu0 %v1292
  %1423 = vmatpush.bf16.msra.mxu0 %v1291
  %1424 = vmatpush.bf16.msra.mxu0 %v1290
  %1425 = vmatpush.bf16.msra.mxu0 %v1289
  %1426 = vmatpush.bf16.msra.mxu0 %v1288
  %1427 = vmatpush.bf16.msra.mxu0 %v1287
  %1428 = vmatmul.bf16.gmra.mxu0 %v884
  %v1429 = vpop.f32.mrf.mxu0
  %v1430 = vadd.f32 %v1417, %v1429
  %v1431 = vpop.f32.mrf.mxu0
  %1432 = vdwg.mxu0
  %1433 = vmatpush.bf16.msra.mxu0 %v1302
  %1434 = vmatpush.bf16.msra.mxu0 %v1301
  %1435 = vmatpush.bf16.msra.mxu0 %v1300
  %1436 = vmatpush.bf16.msra.mxu0 %v1299
  %1437 = vmatpush.bf16.msra.mxu0 %v1298
  %1438 = vmatpush.bf16.msra.mxu0 %v1297
  %1439 = vmatpush.bf16.msra.mxu0 %v1296
  %1440 = vmatpush.bf16.msra.mxu0 %v1295
  %1441 = vmatmul.bf16.gmra.mxu0 %v885
  %v1442 = vpop.f32.mrf.mxu0
  %v1443 = vadd.f32 %v1430, %v1442
  %v1444 = vpop.f32.mrf.mxu0
  %1445 = vdwg.mxu0
  %1446 = vmatpush.bf16.msra.mxu0 %v1310
  %1447 = vmatpush.bf16.msra.mxu0 %v1309
  %1448 = vmatpush.bf16.msra.mxu0 %v1308
  %1449 = vmatpush.bf16.msra.mxu0 %v1307
  %1450 = vmatpush.bf16.msra.mxu0 %v1306
  %1451 = vmatpush.bf16.msra.mxu0 %v1305
  %1452 = vmatpush.bf16.msra.mxu0 %v1304
  %1453 = vmatpush.bf16.msra.mxu0 %v1303
  %1454 = vmatmul.bf16.gmra.mxu0 %v886
  %v1455 = vpop.f32.mrf.mxu0
  %v1456 = vadd.f32 %v1443, %v1455
  %v1457 = vpop.f32.mrf.mxu0
  %1458 = vdwg.mxu0
  %1459 = vmatpush.bf16.msra.mxu0 %v1318
  %1460 = vmatpush.bf16.msra.mxu0 %v1317
  %1461 = vmatpush.bf16.msra.mxu0 %v1316
  %1462 = vmatpush.bf16.msra.mxu0 %v1315
  %1463 = vmatpush.bf16.msra.mxu0 %v1314
  %1464 = vmatpush.bf16.msra.mxu0 %v1313
  %1465 = vmatpush.bf16.msra.mxu0 %v1312
  %1466 = vmatpush.bf16.msra.mxu0 %v1311
  %1467 = vmatmul.bf16.gmra.mxu0 %v887
  %v1468 = vpop.f32.mrf.mxu0
  %v1469 = vadd.f32 %v1456, %v1468
  %v1470 = vpop.f32.mrf.mxu0
  %1471 = vdwg.mxu0
  %1472 = vmatpush.bf16.msra.mxu0 %v1326
  %1473 = vmatpush.bf16.msra.mxu0 %v1325
  %1474 = vmatpush.bf16.msra.mxu0 %v1324
  %1475 = vmatpush.bf16.msra.mxu0 %v1323
  %1476 = vmatpush.bf16.msra.mxu0 %v1322
  %1477 = vmatpush.bf16.msra.mxu0 %v1321
  %1478 = vmatpush.bf16.msra.mxu0 %v1320
  %1479 = vmatpush.bf16.msra.mxu0 %v1319
  %1480 = vmatmul.bf16.gmra.mxu0 %v888
  %v1481 = vpop.f32.mrf.mxu0
  %v1482 = vadd.f32 %v1469, %v1481
  %v1483 = vpop.f32.mrf.mxu0
  %1484 = vdwg.mxu0
  %1485 = vmatpush.bf16.msra.mxu0 %v1334
  %1486 = vmatpush.bf16.msra.mxu0 %v1333
  %1487 = vmatpush.bf16.msra.mxu0 %v1332
  %1488 = vmatpush.bf16.msra.mxu0 %v1331
  %1489 = vmatpush.bf16.msra.mxu0 %v1330
  %1490 = vmatpush.bf16.msra.mxu0 %v1329
  %1491 = vmatpush.bf16.msra.mxu0 %v1328
  %1492 = vmatpush.bf16.msra.mxu0 %v1327
  %1493 = vmatmul.bf16.gmra.mxu0 %v889
  %v1494 = vpop.f32.mrf.mxu0
  %v1495 = vadd.f32 %v1482, %v1494
  %v1496 = vpop.f32.mrf.mxu0
  %1497 = vdwg.mxu0
  %1498 = vmatpush.bf16.msra.mxu0 %v1342
  %1499 = vmatpush.bf16.msra.mxu0 %v1341
  %1500 = vmatpush.bf16.msra.mxu0 %v1340
  %1501 = vmatpush.bf16.msra.mxu0 %v1339
  %1502 = vmatpush.bf16.msra.mxu0 %v1338
  %1503 = vmatpush.bf16.msra.mxu0 %v1337
  %1504 = vmatpush.bf16.msra.mxu0 %v1336
  %1505 = vmatpush.bf16.msra.mxu0 %v1335
  %1506 = vmatmul.bf16.gmra.mxu0 %v890
  %v1507 = vpop.f32.mrf.mxu0
  %v1508 = vadd.f32 %v1495, %v1507
  %v1509 = vpop.f32.mrf.mxu0
  %1510 = vdwg.mxu0
  %vm1511 = vcmask 125952
  %1512 = vst.msk [vmem:[%s11] sm:$0xf] %vm1511, %v1508
  // Predicated region
  $region42: #{active_sensing_forward.5} parent=0 // pred_check
    _
  $region43: #{active_sensing_forward.5} parent=0 // pred_check_branch
    %1514 = sbr.rel (0) target = $region45
  $region44: #{active_sensing_forward.5} parent=0 // pred_region
    _
  $region45: #{active_sensing_forward.5} parent=0 // pred_fallthru
    _
  // Predicated region
  $region46: #{active_sensing_forward.5} parent=0 // pred_check
    _
  $region47: #{active_sensing_forward.5} parent=0 // pred_check_branch
    %1516 = sbr.rel (0) target = $region49
  $region48: #{active_sensing_forward.5} parent=0 // pred_region
    _
  $region49: #{active_sensing_forward.5} parent=0 // pred_fallthru
    _
  // Predicated region
  $region50: #{active_sensing_forward.5} parent=0 // pred_check
    _
  $region51: #{active_sensing_forward.5} parent=0 // pred_check_branch
    %1518 = sbr.rel (0) target = $region53
  $region52: #{active_sensing_forward.5} parent=0 // pred_region
    _
  $region53: #{active_sensing_forward.5} parent=0 // pred_fallthru
    _
  // Predicated region
  $region54: #{active_sensing_forward.5} parent=0 // pred_check
    _
  $region55: #{active_sensing_forward.5} parent=0 // pred_check_branch
    %1520 = sbr.rel (0) target = $region57
  $region56: #{active_sensing_forward.5} parent=0 // pred_region
    _
  $region57: #{active_sensing_forward.5} parent=0 // pred_fallthru
    _

// kernel: active_sensing_forward.4
$region0: #{active_sensing_forward.4}
  #allocation0 [shape = 'u32[]', space=smem, size = 0x4, offset = 0x4, fixed_abs, tag = 'smem constant byte address 0x4 - core index']
  #allocation1 [shape = 'u32[72,128]{1,0:T(1,128)}', space=vmem, size = 0x9000, scoped, tag = 'internal scratch']
  %s0 = inlined_call_operand.vmem [shape: f32[4,16], index: 0, kind: input, shape index: {}]
  %s1 = inlined_call_operand.vmem [shape: f32[4,128], index: 1, kind: input, shape index: {}, may-alias: {1,12}]
  %s2 = inlined_call_operand.vmem [shape: bf16[16,384], index: 2, kind: input, shape index: {}]
  %s3 = inlined_call_operand.vmem [shape: bf16[128,384], index: 3, kind: input, shape index: {}]
  %s4 = inlined_call_operand.vmem [shape: f32[1,384], index: 4, kind: input, shape index: {}]
  %s5 = inlined_call_operand.vmem [shape: f32[1,384], index: 5, kind: input, shape index: {}]
  %s6 = inlined_call_operand.vmem [shape: bf16[128,2048], index: 6, kind: input, shape index: {}]
  %s7 = inlined_call_operand.vmem [shape: f32[1,2048], index: 7, kind: input, shape index: {}]
  %s8 = inlined_call_operand.vmem [shape: bf16[1024,16], index: 8, kind: input, shape index: {}]
  %s9 = inlined_call_operand.vmem [shape: f32[1,16], index: 9, kind: input, shape index: {}]
  %s10 = inlined_call_operand.vmem [shape: bf16[1024,16], index: 10, kind: input, shape index: {}]
  %s11 = inlined_call_operand.vmem [shape: f32[1,16], index: 11, kind: input, shape index: {}]
  %s12 = inlined_call_operand.vmem [shape: f32[4,128], index: 12, kind: output, shape index: {0}, may-alias: {1,12}]
  %s13 = inlined_call_operand.vmem [shape: f32[4,16], index: 13, kind: output, shape index: {1}]
  %s14 = inlined_call_operand.vmem [shape: f32[4,16], index: 14, kind: output, shape index: {2}]
  %15 = xla_tuple %s12, %s13, %s14
  %s16 = sld [smem:[#allocation0]]
  $region74: #{active_sensing_forward.4} parent=0
    _
  %s18 = ssub.s32 1, %s16
  %s19 = scalar_select 0, %s18, %s16
  // Predicated region
  $region2: #{active_sensing_forward.4} parent=0 // pred_check
    _
  $region3: #{active_sensing_forward.4} parent=0 // pred_check_branch
    %21 = sbr.rel (0) target = $region5
  $region4: #{active_sensing_forward.4} parent=0 // pred_region
    _
  $region5: #{active_sensing_forward.4} parent=0 // pred_fallthru
    _
  // Predicated region
  $region6: #{active_sensing_forward.4} parent=0 // pred_check
    _
  $region7: #{active_sensing_forward.4} parent=0 // pred_check_branch
    %23 = sbr.rel (0) target = $region9
  $region8: #{active_sensing_forward.4} parent=0 // pred_region
    _
  $region9: #{active_sensing_forward.4} parent=0 // pred_fallthru
    _
  // Predicated region
  $region10: #{active_sensing_forward.4} parent=0 // pred_check
    _
  $region11: #{active_sensing_forward.4} parent=0 // pred_check_branch
    %25 = sbr.rel (0) target = $region13
  $region12: #{active_sensing_forward.4} parent=0 // pred_region
    _
  $region13: #{active_sensing_forward.4} parent=0 // pred_fallthru
    _
  // Predicated region
  $region14: #{active_sensing_forward.4} parent=0 // pred_check
    _
  $region15: #{active_sensing_forward.4} parent=0 // pred_check_branch
    %27 = sbr.rel (0) target = $region17
  $region16: #{active_sensing_forward.4} parent=0 // pred_region
    _
  $region17: #{active_sensing_forward.4} parent=0 // pred_fallthru
    _
  // Predicated region
  $region18: #{active_sensing_forward.4} parent=0 // pred_check
    _
  $region19: #{active_sensing_forward.4} parent=0 // pred_check_branch
    %29 = sbr.rel (0) target = $region21
  $region20: #{active_sensing_forward.4} parent=0 // pred_region
    _
  $region21: #{active_sensing_forward.4} parent=0 // pred_fallthru
    _
  // Predicated region
  $region22: #{active_sensing_forward.4} parent=0 // pred_check
    _
  $region23: #{active_sensing_forward.4} parent=0 // pred_check_branch
    %31 = sbr.rel (0) target = $region25
  $region24: #{active_sensing_forward.4} parent=0 // pred_region
    _
  $region25: #{active_sensing_forward.4} parent=0 // pred_fallthru
    _
  // Predicated region
  $region26: #{active_sensing_forward.4} parent=0 // pred_check
    _
  $region27: #{active_sensing_forward.4} parent=0 // pred_check_branch
    %33 = sbr.rel (0) target = $region29
  $region28: #{active_sensing_forward.4} parent=0 // pred_region
    _
  $region29: #{active_sensing_forward.4} parent=0 // pred_fallthru
    _
  // Predicated region
  $region30: #{active_sensing_forward.4} parent=0 // pred_check
    _
  $region31: #{active_sensing_forward.4} parent=0 // pred_check_branch
    %35 = sbr.rel (0) target = $region33
  $region32: #{active_sensing_forward.4} parent=0 // pred_region
    _
  $region33: #{active_sensing_forward.4} parent=0 // pred_fallthru
    _
  // Predicated region
  $region34: #{active_sensing_forward.4} parent=0 // pred_check
    _
  $region35: #{active_sensing_forward.4} parent=0 // pred_check_branch
    %37 = sbr.rel (0) target = $region37
  $region36: #{active_sensing_forward.4} parent=0 // pred_region
    _
  $region37: #{active_sensing_forward.4} parent=0 // pred_fallthru
    _
  // Predicated region
  $region38: #{active_sensing_forward.4} parent=0 // pred_check
    _
  $region39: #{active_sensing_forward.4} parent=0 // pred_check_branch
    %39 = sbr.rel (0) target = $region41
  $region40: #{active_sensing_forward.4} parent=0 // pred_region
    _
  $region41: #{active_sensing_forward.4} parent=0 // pred_fallthru
    _
  // Predicated region
  $region42: #{active_sensing_forward.4} parent=0 // pred_check
    _
  $region43: #{active_sensing_forward.4} parent=0 // pred_check_branch
    %41 = sbr.rel (0) target = $region45
  $region44: #{active_sensing_forward.4} parent=0 // pred_region
    _
  $region45: #{active_sensing_forward.4} parent=0 // pred_fallthru
    _
  // Predicated region
  $region46: #{active_sensing_forward.4} parent=0 // pred_check
    _
  $region47: #{active_sensing_forward.4} parent=0 // pred_check_branch
    %43 = sbr.rel (0) target = $region49
  $region48: #{active_sensing_forward.4} parent=0 // pred_region
    _
  $region49: #{active_sensing_forward.4} parent=0 // pred_fallthru
    _
  %v45 = vld [vmem:[%s1] sm:$0xf]
  %v46 = vld [vmem:[%s0] sm:$0xf]
  %v47 = vpack.c.bf16 %v46, %v46
  %v48 = vld [vmem:[%s2] sm:$0xff]
  %v49 = vld [vmem:[%s2 + $0x8] sm:$0xf]
  %v50 = vld [vmem:[%s2 + $0xc] sm:$0xff]
  %v51 = vld [vmem:[%s2 + $0x14] sm:$0xf]
  %v52 = vld [vmem:[%s4] sm:$0x7]
  %v54 = vperm.slane %v52, 0
  %v55 = vperm.slane %v52, 1
  %v56 = vperm.slane %v52, 2
  %v64 = vunpack.c.l.b16 %v48
  %v65 = vunpack.c.h.b16 %v48
  %v66 = vunpack.c.l.b16 %v49
  %v67 = vunpack.c.l.b16 %v50
  %v68 = vunpack.c.h.b16 %v50
  %v69 = vunpack.c.l.b16 %v51
  %v70 = vpack.c.b16 %v67, %v64
  %v71 = vpack.c.b16 %v68, %v65
  %v72 = vpack.c.b16 %v69, %v66
  %vm76 = vcmask 130048
  %v78 = vsel %vm76, %v47, 0
  %80 = vmatpush.bf16.msra.mxu0 0
  %81 = vmatpush.bf16.msra.mxu0 0
  %82 = vmatpush.bf16.msra.mxu0 0
  %83 = vmatpush.bf16.msra.mxu0 0
  %84 = vmatpush.bf16.msra.mxu0 0
  %85 = vmatpush.bf16.msra.mxu0 0
  %86 = vmatpush.bf16.msra.mxu0 0
  %87 = vmatpush.bf16.msra.mxu0 %v70
  %88 = vmatmul.bf16.gmra.mxu0 %v78
  %v89 = vpop.f32.mrf.mxu0
  %v90 = vadd.f32 %v54, %v89
  %v91 = vpop.f32.mrf.mxu0
  %92 = vdwg.mxu0
  %93 = vmatpush.bf16.msra.mxu0 0
  %94 = vmatpush.bf16.msra.mxu0 0
  %95 = vmatpush.bf16.msra.mxu0 0
  %96 = vmatpush.bf16.msra.mxu0 0
  %97 = vmatpush.bf16.msra.mxu0 0
  %98 = vmatpush.bf16.msra.mxu0 0
  %99 = vmatpush.bf16.msra.mxu0 0
  %100 = vmatpush.bf16.msra.mxu0 %v71
  %101 = vmatmul.bf16.gmra.mxu0 %v78
  %v102 = vpop.f32.mrf.mxu0
  %v103 = vadd.f32 %v55, %v102
  %v104 = vpop.f32.mrf.mxu0
  %105 = vdwg.mxu0
  %106 = vmatpush.bf16.msra.mxu0 0
  %107 = vmatpush.bf16.msra.mxu0 0
  %108 = vmatpush.bf16.msra.mxu0 0
  %109 = vmatpush.bf16.msra.mxu0 0
  %110 = vmatpush.bf16.msra.mxu0 0
  %111 = vmatpush.bf16.msra.mxu0 0
  %112 = vmatpush.bf16.msra.mxu0 0
  %113 = vmatpush.bf16.msra.mxu0 %v72
  %114 = vmatmul.bf16.gmra.mxu0 %v78
  %v115 = vpop.f32.mrf.mxu0
  %v116 = vadd.f32 %v56, %v115
  %v117 = vpop.f32.mrf.mxu0
  %118 = vdwg.mxu0
  %v119 = vpack.c.bf16 %v45, %v45
  %v120 = vld [vmem:[%s3] sm:$0xff]
  %v121 = vld [vmem:[%s3 + $0x8] sm:$0xf]
  %v122 = vld [vmem:[%s3 + $0xc] sm:$0xff]
  %v123 = vld [vmem:[%s3 + $0x14] sm:$0xf]
  %v124 = vld [vmem:[%s3 + $0x18] sm:$0xff]
  %v125 = vld [vmem:[%s3 + $0x20] sm:$0xf]
  %v126 = vld [vmem:[%s3 + $0x24] sm:$0xff]
  %v127 = vld [vmem:[%s3 + $0x2c] sm:$0xf]
  %v128 = vld [vmem:[%s3 + $0x30] sm:$0xff]
  %v129 = vld [vmem:[%s3 + $0x38] sm:$0xf]
  %v130 = vld [vmem:[%s3 + $0x3c] sm:$0xff]
  %v131 = vld [vmem:[%s3 + $0x44] sm:$0xf]
  %v132 = vld [vmem:[%s3 + $0x48] sm:$0xff]
  %v133 = vld [vmem:[%s3 + $0x50] sm:$0xf]
  %v134 = vld [vmem:[%s3 + $0x54] sm:$0xff]
  %v135 = vld [vmem:[%s3 + $0x5c] sm:$0xf]
  %v136 = vld [vmem:[%s3 + $0x60] sm:$0xff]
  %v137 = vld [vmem:[%s3 + $0x68] sm:$0xf]
  %v138 = vld [vmem:[%s3 + $0x6c] sm:$0xff]
  %v139 = vld [vmem:[%s3 + $0x74] sm:$0xf]
  %v140 = vld [vmem:[%s3 + $0x78] sm:$0xff]
  %v141 = vld [vmem:[%s3 + $0x80] sm:$0xf]
  %v142 = vld [vmem:[%s3 + $0x84] sm:$0xff]
  %v143 = vld [vmem:[%s3 + $0x8c] sm:$0xf]
  %v144 = vld [vmem:[%s3 + $0x90] sm:$0xff]
  %v145 = vld [vmem:[%s3 + $0x98] sm:$0xf]
  %v146 = vld [vmem:[%s3 + $0x9c] sm:$0xff]
  %v147 = vld [vmem:[%s3 + $0xa4] sm:$0xf]
  %v148 = vld [vmem:[%s3 + $0xa8] sm:$0xff]
  %v149 = vld [vmem:[%s3 + $0xb0] sm:$0xf]
  %v150 = vld [vmem:[%s3 + $0xb4] sm:$0xff]
  %v151 = vld [vmem:[%s3 + $0xbc] sm:$0xf]
  %v152 = vld [vmem:[%s5] sm:$0x7]
  %v154 = vperm.slane %v152, 0
  %v155 = vperm.slane %v152, 1
  %v156 = vperm.slane %v152, 2
  %v192 = vunpack.c.l.b16 %v120
  %v193 = vunpack.c.h.b16 %v120
  %v194 = vunpack.c.l.b16 %v121
  %v195 = vunpack.c.l.b16 %v122
  %v196 = vunpack.c.h.b16 %v122
  %v197 = vunpack.c.l.b16 %v123
  %v198 = vunpack.c.l.b16 %v124
  %v199 = vunpack.c.h.b16 %v124
  %v200 = vunpack.c.l.b16 %v125
  %v201 = vunpack.c.l.b16 %v126
  %v202 = vunpack.c.h.b16 %v126
  %v203 = vunpack.c.l.b16 %v127
  %v204 = vunpack.c.l.b16 %v128
  %v205 = vunpack.c.h.b16 %v128
  %v206 = vunpack.c.l.b16 %v129
  %v207 = vunpack.c.l.b16 %v130
  %v208 = vunpack.c.h.b16 %v130
  %v209 = vunpack.c.l.b16 %v131
  %v210 = vunpack.c.l.b16 %v132
  %v211 = vunpack.c.h.b16 %v132
  %v212 = vunpack.c.l.b16 %v133
  %v213 = vunpack.c.l.b16 %v134
  %v214 = vunpack.c.h.b16 %v134
  %v215 = vunpack.c.l.b16 %v135
  %v216 = vunpack.c.l.b16 %v136
  %v217 = vunpack.c.h.b16 %v136
  %v218 = vunpack.c.l.b16 %v137
  %v219 = vunpack.c.l.b16 %v138
  %v220 = vunpack.c.h.b16 %v138
  %v221 = vunpack.c.l.b16 %v139
  %v222 = vunpack.c.l.b16 %v140
  %v223 = vunpack.c.h.b16 %v140
  %v224 = vunpack.c.l.b16 %v141
  %v225 = vunpack.c.l.b16 %v142
  %v226 = vunpack.c.h.b16 %v142
  %v227 = vunpack.c.l.b16 %v143
  %v228 = vunpack.c.l.b16 %v144
  %v229 = vunpack.c.h.b16 %v144
  %v230 = vunpack.c.l.b16 %v145
  %v231 = vunpack.c.l.b16 %v146
  %v232 = vunpack.c.h.b16 %v146
  %v233 = vunpack.c.l.b16 %v147
  %v234 = vunpack.c.l.b16 %v148
  %v235 = vunpack.c.h.b16 %v148
  %v236 = vunpack.c.l.b16 %v149
  %v237 = vunpack.c.l.b16 %v150
  %v238 = vunpack.c.h.b16 %v150
  %v239 = vunpack.c.l.b16 %v151
  %v240 = vpack.c.b16 %v195, %v192
  %v241 = vpack.c.b16 %v196, %v193
  %v242 = vpack.c.b16 %v197, %v194
  %v243 = vpack.c.b16 %v201, %v198
  %v244 = vpack.c.b16 %v202, %v199
  %v245 = vpack.c.b16 %v203, %v200
  %v246 = vpack.c.b16 %v207, %v204
  %v247 = vpack.c.b16 %v208, %v205
  %v248 = vpack.c.b16 %v209, %v206
  %v249 = vpack.c.b16 %v213, %v210
  %v250 = vpack.c.b16 %v214, %v211
  %v251 = vpack.c.b16 %v215, %v212
  %v252 = vpack.c.b16 %v219, %v216
  %v253 = vpack.c.b16 %v220, %v217
  %v254 = vpack.c.b16 %v221, %v218
  %v255 = vpack.c.b16 %v225, %v222
  %v256 = vpack.c.b16 %v226, %v223
  %v257 = vpack.c.b16 %v227, %v224
  %v258 = vpack.c.b16 %v231, %v228
  %v259 = vpack.c.b16 %v232, %v229
  %v260 = vpack.c.b16 %v233, %v230
  %v261 = vpack.c.b16 %v237, %v234
  %v262 = vpack.c.b16 %v238, %v235
  %v263 = vpack.c.b16 %v239, %v236
  %288 = vmatpush.bf16.msra.mxu0 %v261
  %289 = vmatpush.bf16.msra.mxu0 %v258
  %290 = vmatpush.bf16.msra.mxu0 %v255
  %291 = vmatpush.bf16.msra.mxu0 %v252
  %292 = vmatpush.bf16.msra.mxu0 %v249
  %293 = vmatpush.bf16.msra.mxu0 %v246
  %294 = vmatpush.bf16.msra.mxu0 %v243
  %295 = vmatpush.bf16.msra.mxu0 %v240
  %296 = vmatmul.bf16.gmra.mxu0 %v119
  %v297 = vpop.f32.mrf.mxu0
  %v298 = vadd.f32 %v154, %v297
  %v299 = vpop.f32.mrf.mxu0
  %300 = vdwg.mxu0
  %301 = vmatpush.bf16.msra.mxu0 %v262
  %302 = vmatpush.bf16.msra.mxu0 %v259
  %303 = vmatpush.bf16.msra.mxu0 %v256
  %304 = vmatpush.bf16.msra.mxu0 %v253
  %305 = vmatpush.bf16.msra.mxu0 %v250
  %306 = vmatpush.bf16.msra.mxu0 %v247
  %307 = vmatpush.bf16.msra.mxu0 %v244
  %308 = vmatpush.bf16.msra.mxu0 %v241
  %309 = vmatmul.bf16.gmra.mxu0 %v119
  %v310 = vpop.f32.mrf.mxu0
  %v311 = vadd.f32 %v155, %v310
  %v312 = vpop.f32.mrf.mxu0
  %313 = vdwg.mxu0
  %314 = vmatpush.bf16.msra.mxu0 %v263
  %315 = vmatpush.bf16.msra.mxu0 %v260
  %316 = vmatpush.bf16.msra.mxu0 %v257
  %317 = vmatpush.bf16.msra.mxu0 %v254
  %318 = vmatpush.bf16.msra.mxu0 %v251
  %319 = vmatpush.bf16.msra.mxu0 %v248
  %320 = vmatpush.bf16.msra.mxu0 %v245
  %321 = vmatpush.bf16.msra.mxu0 %v242
  %322 = vmatmul.bf16.gmra.mxu0 %v119
  %v323 = vpop.f32.mrf.mxu0
  %v324 = vadd.f32 %v156, %v323
  %v325 = vpop.f32.mrf.mxu0
  %326 = vdwg.mxu0
  %v327 = vadd.f32 %v90, %v298
  %v328 = vxor.u32 %v327, 2147483648
  %v329 = vmul.f32 %v328, 1.442695
  %v330 = vpow.pop %v329
  %v331 = vadd.f32 %v330, 1.0
  %v332 = vrcp.pop %v331
  %v333 = vmul.f32 %v331, %v332
  %v334 = vsub.f32 1.0, %v333
  %v335 = vmul.f32 %v332, %v334
  %v336 = vadd.f32 %v332, %v335
  %vm337 = vweird.f32 %v331
  %vm338 = vweird.f32 %v332
  %vm339 = vmor %vm337, %vm338
  %v340 = vsel %vm339, %v332, %v336
  %v341 = vand.u32 2147483647, %v331
  %vm342 = vcmp.eq.f32.partialorder %v341, 8.507059e+37
  %v343 = vand.u32 %v331, 2147483648
  %v344 = vor.u32 1.1754944e-38, %v343
  %v345 = vsel %vm342, %v344, %v340
  %v346 = vmul.f32 1.0, %v345
  %v347 = vadd.f32 %v103, %v311
  %v348 = vxor.u32 %v347, 2147483648
  %v349 = vmul.f32 %v348, 1.442695
  %v350 = vpow.pop %v349
  %v351 = vadd.f32 %v350, 1.0
  %v352 = vrcp.pop %v351
  %v353 = vmul.f32 %v351, %v352
  %v354 = vsub.f32 1.0, %v353
  %v355 = vmul.f32 %v352, %v354
  %v356 = vadd.f32 %v352, %v355
  %vm357 = vweird.f32 %v351
  %vm358 = vweird.f32 %v352
  %vm359 = vmor %vm357, %vm358
  %v360 = vsel %vm359, %v352, %v356
  %v361 = vand.u32 2147483647, %v351
  %vm362 = vcmp.eq.f32.partialorder %v361, 8.507059e+37
  %v363 = vand.u32 %v351, 2147483648
  %v364 = vor.u32 1.1754944e-38, %v363
  %v365 = vsel %vm362, %v364, %v360
  %v366 = vmul.f32 1.0, %v365
  %v367 = vmul.f32 %v346, %v324
  %v368 = vadd.f32 %v116, %v367
  %v369 = vtanh.pop %v368
  %v370 = vsub.f32 1.0, %v366
  %v371 = vmul.f32 %v370, %v369
  %v372 = vmul.f32 %v366, %v45
  %v373 = vadd.f32 %v371, %v372
  %374 = vst [vmem:[%s12] sm:$0xf] %v373
  %v375 = vpack.c.bf16 %v373, %v373
  %v376 = vld [vmem:[%s6] sm:$0xff]
  %v377 = vld [vmem:[%s6 + $0x8] sm:$0xff]
  %v378 = vld [vmem:[%s6 + $0x10] sm:$0xff]
  %v379 = vld [vmem:[%s6 + $0x18] sm:$0xff]
  %v380 = vld [vmem:[%s6 + $0x20] sm:$0xff]
  %v381 = vld [vmem:[%s6 + $0x28] sm:$0xff]
  %v382 = vld [vmem:[%s6 + $0x30] sm:$0xff]
  %v383 = vld [vmem:[%s6 + $0x38] sm:$0xff]
  %v384 = vld [vmem:[%s6 + $0x40] sm:$0xff]
  %v385 = vld [vmem:[%s6 + $0x48] sm:$0xff]
  %v386 = vld [vmem:[%s6 + $0x50] sm:$0xff]
  %v387 = vld [vmem:[%s6 + $0x58] sm:$0xff]
  %v388 = vld [vmem:[%s6 + $0x60] sm:$0xff]
  %v389 = vld [vmem:[%s6 + $0x68] sm:$0xff]
  %v390 = vld [vmem:[%s6 + $0x70] sm:$0xff]
  %v391 = vld [vmem:[%s6 + $0x78] sm:$0xff]
  %v392 = vld [vmem:[%s6 + $0x80] sm:$0xff]
  %v393 = vld [vmem:[%s6 + $0x88] sm:$0xff]
  %v394 = vld [vmem:[%s6 + $0x90] sm:$0xff]
  %v395 = vld [vmem:[%s6 + $0x98] sm:$0xff]
  %v396 = vld [vmem:[%s6 + $0xa0] sm:$0xff]
  %v397 = vld [vmem:[%s6 + $0xa8] sm:$0xff]
  %v398 = vld [vmem:[%s6 + $0xb0] sm:$0xff]
  %v399 = vld [vmem:[%s6 + $0xb8] sm:$0xff]
  %v400 = vld [vmem:[%s6 + $0xc0] sm:$0xff]
  %v401 = vld [vmem:[%s6 + $0xc8] sm:$0xff]
  %v402 = vld [vmem:[%s6 + $0xd0] sm:$0xff]
  %v403 = vld [vmem:[%s6 + $0xd8] sm:$0xff]
  %v404 = vld [vmem:[%s6 + $0xe0] sm:$0xff]
  %v405 = vld [vmem:[%s6 + $0xe8] sm:$0xff]
  %v406 = vld [vmem:[%s6 + $0xf0] sm:$0xff]
  %v407 = vld [vmem:[%s6 + $0xf8] sm:$0xff]
  %v408 = vld [vmem:[%s6 + $0x100] sm:$0xff]
  %v409 = vld [vmem:[%s6 + $0x108] sm:$0xff]
  %v410 = vld [vmem:[%s6 + $0x110] sm:$0xff]
  %v411 = vld [vmem:[%s6 + $0x118] sm:$0xff]
  %v412 = vld [vmem:[%s6 + $0x120] sm:$0xff]
  %v413 = vld [vmem:[%s6 + $0x128] sm:$0xff]
  %v414 = vld [vmem:[%s6 + $0x130] sm:$0xff]
  %v415 = vld [vmem:[%s6 + $0x138] sm:$0xff]
  %v416 = vld [vmem:[%s6 + $0x140] sm:$0xff]
  %v417 = vld [vmem:[%s6 + $0x148] sm:$0xff]
  %v418 = vld [vmem:[%s6 + $0x150] sm:$0xff]
  %v419 = vld [vmem:[%s6 + $0x158] sm:$0xff]
  %v420 = vld [vmem:[%s6 + $0x160] sm:$0xff]
  %v421 = vld [vmem:[%s6 + $0x168] sm:$0xff]
  %v422 = vld [vmem:[%s6 + $0x170] sm:$0xff]
  %v423 = vld [vmem:[%s6 + $0x178] sm:$0xff]
  %v424 = vld [vmem:[%s6 + $0x180] sm:$0xff]
  %v425 = vld [vmem:[%s6 + $0x188] sm:$0xff]
  %v426 = vld [vmem:[%s6 + $0x190] sm:$0xff]
  %v427 = vld [vmem:[%s6 + $0x198] sm:$0xff]
  %v428 = vld [vmem:[%s6 + $0x1a0] sm:$0xff]
  %v429 = vld [vmem:[%s6 + $0x1a8] sm:$0xff]
  %v430 = vld [vmem:[%s6 + $0x1b0] sm:$0xff]
  %v431 = vld [vmem:[%s6 + $0x1b8] sm:$0xff]
  %v432 = vld [vmem:[%s6 + $0x1c0] sm:$0xff]
  %v433 = vld [vmem:[%s6 + $0x1c8] sm:$0xff]
  %v434 = vld [vmem:[%s6 + $0x1d0] sm:$0xff]
  %v435 = vld [vmem:[%s6 + $0x1d8] sm:$0xff]
  %v436 = vld [vmem:[%s6 + $0x1e0] sm:$0xff]
  %v437 = vld [vmem:[%s6 + $0x1e8] sm:$0xff]
  %v438 = vld [vmem:[%s6 + $0x1f0] sm:$0xff]
  %v439 = vld [vmem:[%s6 + $0x1f8] sm:$0xff]
  %v440 = vld [vmem:[%s6 + $0x200] sm:$0xff]
  %v441 = vld [vmem:[%s6 + $0x208] sm:$0xff]
  %v442 = vld [vmem:[%s6 + $0x210] sm:$0xff]
  %v443 = vld [vmem:[%s6 + $0x218] sm:$0xff]
  %v444 = vld [vmem:[%s6 + $0x220] sm:$0xff]
  %v445 = vld [vmem:[%s6 + $0x228] sm:$0xff]
  %v446 = vld [vmem:[%s6 + $0x230] sm:$0xff]
  %v447 = vld [vmem:[%s6 + $0x238] sm:$0xff]
  %v448 = vld [vmem:[%s6 + $0x240] sm:$0xff]
  %v449 = vld [vmem:[%s6 + $0x248] sm:$0xff]
  %v450 = vld [vmem:[%s6 + $0x250] sm:$0xff]
  %v451 = vld [vmem:[%s6 + $0x258] sm:$0xff]
  %v452 = vld [vmem:[%s6 + $0x260] sm:$0xff]
  %v453 = vld [vmem:[%s6 + $0x268] sm:$0xff]
  %v454 = vld [vmem:[%s6 + $0x270] sm:$0xff]
  %v455 = vld [vmem:[%s6 + $0x278] sm:$0xff]
  %v456 = vld [vmem:[%s6 + $0x280] sm:$0xff]
  %v457 = vld [vmem:[%s6 + $0x288] sm:$0xff]
  %v458 = vld [vmem:[%s6 + $0x290] sm:$0xff]
  %v459 = vld [vmem:[%s6 + $0x298] sm:$0xff]
  %v460 = vld [vmem:[%s6 + $0x2a0] sm:$0xff]
  %v461 = vld [vmem:[%s6 + $0x2a8] sm:$0xff]
  %v462 = vld [vmem:[%s6 + $0x2b0] sm:$0xff]
  %v463 = vld [vmem:[%s6 + $0x2b8] sm:$0xff]
  %v464 = vld [vmem:[%s6 + $0x2c0] sm:$0xff]
  %v465 = vld [vmem:[%s6 + $0x2c8] sm:$0xff]
  %v466 = vld [vmem:[%s6 + $0x2d0] sm:$0xff]
  %v467 = vld [vmem:[%s6 + $0x2d8] sm:$0xff]
  %v468 = vld [vmem:[%s6 + $0x2e0] sm:$0xff]
  %v469 = vld [vmem:[%s6 + $0x2e8] sm:$0xff]
  %v470 = vld [vmem:[%s6 + $0x2f0] sm:$0xff]
  %v471 = vld [vmem:[%s6 + $0x2f8] sm:$0xff]
  %v472 = vld [vmem:[%s6 + $0x300] sm:$0xff]
  %v473 = vld [vmem:[%s6 + $0x308] sm:$0xff]
  %v474 = vld [vmem:[%s6 + $0x310] sm:$0xff]
  %v475 = vld [vmem:[%s6 + $0x318] sm:$0xff]
  %v476 = vld [vmem:[%s6 + $0x320] sm:$0xff]
  %v477 = vld [vmem:[%s6 + $0x328] sm:$0xff]
  %v478 = vld [vmem:[%s6 + $0x330] sm:$0xff]
  %v479 = vld [vmem:[%s6 + $0x338] sm:$0xff]
  %v480 = vld [vmem:[%s6 + $0x340] sm:$0xff]
  %v481 = vld [vmem:[%s6 + $0x348] sm:$0xff]
  %v482 = vld [vmem:[%s6 + $0x350] sm:$0xff]
  %v483 = vld [vmem:[%s6 + $0x358] sm:$0xff]
  %v484 = vld [vmem:[%s6 + $0x360] sm:$0xff]
  %v485 = vld [vmem:[%s6 + $0x368] sm:$0xff]
  %v486 = vld [vmem:[%s6 + $0x370] sm:$0xff]
  %v487 = vld [vmem:[%s6 + $0x378] sm:$0xff]
  %v488 = vld [vmem:[%s6 + $0x380] sm:$0xff]
  %v489 = vld [vmem:[%s6 + $0x388] sm:$0xff]
  %v490 = vld [vmem:[%s6 + $0x390] sm:$0xff]
  %v491 = vld [vmem:[%s6 + $0x398] sm:$0xff]
  %v492 = vld [vmem:[%s6 + $0x3a0] sm:$0xff]
  %v493 = vld [vmem:[%s6 + $0x3a8] sm:$0xff]
  %v494 = vld [vmem:[%s6 + $0x3b0] sm:$0xff]
  %v495 = vld [vmem:[%s6 + $0x3b8] sm:$0xff]
  %v496 = vld [vmem:[%s6 + $0x3c0] sm:$0xff]
  %v497 = vld [vmem:[%s6 + $0x3c8] sm:$0xff]
  %v498 = vld [vmem:[%s6 + $0x3d0] sm:$0xff]
  %v499 = vld [vmem:[%s6 + $0x3d8] sm:$0xff]
  %v500 = vld [vmem:[%s6 + $0x3e0] sm:$0xff]
  %v501 = vld [vmem:[%s6 + $0x3e8] sm:$0xff]
  %v502 = vld [vmem:[%s6 + $0x3f0] sm:$0xff]
  %v503 = vld [vmem:[%s6 + $0x3f8] sm:$0xff]
  %v504 = vld [vmem:[%s7] sm:$0xff]
  %v505 = vld [vmem:[%s7 + $0x8] sm:$0xff]
  %v508 = vperm.slane %v504, 0
  %v509 = vperm.slane %v504, 1
  %v510 = vperm.slane %v504, 2
  %v511 = vperm.slane %v504, 3
  %v512 = vperm.slane %v504, 4
  %v513 = vperm.slane %v504, 5
  %v514 = vperm.slane %v504, 6
  %v515 = vperm.slane %v504, 7
  %v516 = vperm.slane %v505, 0
  %v517 = vperm.slane %v505, 1
  %v518 = vperm.slane %v505, 2
  %v519 = vperm.slane %v505, 3
  %v520 = vperm.slane %v505, 4
  %v521 = vperm.slane %v505, 5
  %v522 = vperm.slane %v505, 6
  %v523 = vperm.slane %v505, 7
  %v668 = vunpack.c.l.b16 %v376
  %v669 = vunpack.c.h.b16 %v376
  %v670 = vunpack.c.l.b16 %v377
  %v671 = vunpack.c.h.b16 %v377
  %v672 = vunpack.c.l.b16 %v378
  %v673 = vunpack.c.h.b16 %v378
  %v674 = vunpack.c.l.b16 %v379
  %v675 = vunpack.c.h.b16 %v379
  %v676 = vunpack.c.l.b16 %v380
  %v677 = vunpack.c.h.b16 %v380
  %v678 = vunpack.c.l.b16 %v381
  %v679 = vunpack.c.h.b16 %v381
  %v680 = vunpack.c.l.b16 %v382
  %v681 = vunpack.c.h.b16 %v382
  %v682 = vunpack.c.l.b16 %v383
  %v683 = vunpack.c.h.b16 %v383
  %v684 = vunpack.c.l.b16 %v384
  %v685 = vunpack.c.h.b16 %v384
  %v686 = vunpack.c.l.b16 %v385
  %v687 = vunpack.c.h.b16 %v385
  %v688 = vunpack.c.l.b16 %v386
  %v689 = vunpack.c.h.b16 %v386
  %v690 = vunpack.c.l.b16 %v387
  %v691 = vunpack.c.h.b16 %v387
  %v692 = vunpack.c.l.b16 %v388
  %v693 = vunpack.c.h.b16 %v388
  %v694 = vunpack.c.l.b16 %v389
  %v695 = vunpack.c.h.b16 %v389
  %v696 = vunpack.c.l.b16 %v390
  %v697 = vunpack.c.h.b16 %v390
  %v698 = vunpack.c.l.b16 %v391
  %v699 = vunpack.c.h.b16 %v391
  %v700 = vunpack.c.l.b16 %v392
  %v701 = vunpack.c.h.b16 %v392
  %v702 = vunpack.c.l.b16 %v393
  %v703 = vunpack.c.h.b16 %v393
  %v704 = vunpack.c.l.b16 %v394
  %v705 = vunpack.c.h.b16 %v394
  %v706 = vunpack.c.l.b16 %v395
  %v707 = vunpack.c.h.b16 %v395
  %v708 = vunpack.c.l.b16 %v396
  %v709 = vunpack.c.h.b16 %v396
  %v710 = vunpack.c.l.b16 %v397
  %v711 = vunpack.c.h.b16 %v397
  %v712 = vunpack.c.l.b16 %v398
  %v713 = vunpack.c.h.b16 %v398
  %v714 = vunpack.c.l.b16 %v399
  %v715 = vunpack.c.h.b16 %v399
  %v716 = vunpack.c.l.b16 %v400
  %v717 = vunpack.c.h.b16 %v400
  %v718 = vunpack.c.l.b16 %v401
  %v719 = vunpack.c.h.b16 %v401
  %v720 = vunpack.c.l.b16 %v402
  %v721 = vunpack.c.h.b16 %v402
  %v722 = vunpack.c.l.b16 %v403
  %v723 = vunpack.c.h.b16 %v403
  %v724 = vunpack.c.l.b16 %v404
  %v725 = vunpack.c.h.b16 %v404
  %v726 = vunpack.c.l.b16 %v405
  %v727 = vunpack.c.h.b16 %v405
  %v728 = vunpack.c.l.b16 %v406
  %v729 = vunpack.c.h.b16 %v406
  %v730 = vunpack.c.l.b16 %v407
  %v731 = vunpack.c.h.b16 %v407
  %v732 = vunpack.c.l.b16 %v408
  %v733 = vunpack.c.h.b16 %v408
  %v734 = vunpack.c.l.b16 %v409
  %v735 = vunpack.c.h.b16 %v409
  %v736 = vunpack.c.l.b16 %v410
  %v737 = vunpack.c.h.b16 %v410
  %v738 = vunpack.c.l.b16 %v411
  %v739 = vunpack.c.h.b16 %v411
  %v740 = vunpack.c.l.b16 %v412
  %v741 = vunpack.c.h.b16 %v412
  %v742 = vunpack.c.l.b16 %v413
  %v743 = vunpack.c.h.b16 %v413
  %v744 = vunpack.c.l.b16 %v414
  %v745 = vunpack.c.h.b16 %v414
  %v746 = vunpack.c.l.b16 %v415
  %v747 = vunpack.c.h.b16 %v415
  %v748 = vunpack.c.l.b16 %v416
  %v749 = vunpack.c.h.b16 %v416
  %v750 = vunpack.c.l.b16 %v417
  %v751 = vunpack.c.h.b16 %v417
  %v752 = vunpack.c.l.b16 %v418
  %v753 = vunpack.c.h.b16 %v418
  %v754 = vunpack.c.l.b16 %v419
  %v755 = vunpack.c.h.b16 %v419
  %v756 = vunpack.c.l.b16 %v420
  %v757 = vunpack.c.h.b16 %v420
  %v758 = vunpack.c.l.b16 %v421
  %v759 = vunpack.c.h.b16 %v421
  %v760 = vunpack.c.l.b16 %v422
  %v761 = vunpack.c.h.b16 %v422
  %v762 = vunpack.c.l.b16 %v423
  %v763 = vunpack.c.h.b16 %v423
  %v764 = vunpack.c.l.b16 %v424
  %v765 = vunpack.c.h.b16 %v424
  %v766 = vunpack.c.l.b16 %v425
  %v767 = vunpack.c.h.b16 %v425
  %v768 = vunpack.c.l.b16 %v426
  %v769 = vunpack.c.h.b16 %v426
  %v770 = vunpack.c.l.b16 %v427
  %v771 = vunpack.c.h.b16 %v427
  %v772 = vunpack.c.l.b16 %v428
  %v773 = vunpack.c.h.b16 %v428
  %v774 = vunpack.c.l.b16 %v429
  %v775 = vunpack.c.h.b16 %v429
  %v776 = vunpack.c.l.b16 %v430
  %v777 = vunpack.c.h.b16 %v430
  %v778 = vunpack.c.l.b16 %v431
  %v779 = vunpack.c.h.b16 %v431
  %v780 = vunpack.c.l.b16 %v432
  %v781 = vunpack.c.h.b16 %v432
  %v782 = vunpack.c.l.b16 %v433
  %v783 = vunpack.c.h.b16 %v433
  %v784 = vunpack.c.l.b16 %v434
  %v785 = vunpack.c.h.b16 %v434
  %v786 = vunpack.c.l.b16 %v435
  %v787 = vunpack.c.h.b16 %v435
  %v788 = vunpack.c.l.b16 %v436
  %v789 = vunpack.c.h.b16 %v436
  %v790 = vunpack.c.l.b16 %v437
  %v791 = vunpack.c.h.b16 %v437
  %v792 = vunpack.c.l.b16 %v438
  %v793 = vunpack.c.h.b16 %v438
  %v794 = vunpack.c.l.b16 %v439
  %v795 = vunpack.c.h.b16 %v439
  %v796 = vunpack.c.l.b16 %v440
  %v797 = vunpack.c.h.b16 %v440
  %v798 = vunpack.c.l.b16 %v441
  %v799 = vunpack.c.h.b16 %v441
  %v800 = vunpack.c.l.b16 %v442
  %v801 = vunpack.c.h.b16 %v442
  %v802 = vunpack.c.l.b16 %v443
  %v803 = vunpack.c.h.b16 %v443
  %v804 = vunpack.c.l.b16 %v444
  %v805 = vunpack.c.h.b16 %v444
  %v806 = vunpack.c.l.b16 %v445
  %v807 = vunpack.c.h.b16 %v445
  %v808 = vunpack.c.l.b16 %v446
  %v809 = vunpack.c.h.b16 %v446
  %v810 = vunpack.c.l.b16 %v447
  %v811 = vunpack.c.h.b16 %v447
  %v812 = vunpack.c.l.b16 %v448
  %v813 = vunpack.c.h.b16 %v448
  %v814 = vunpack.c.l.b16 %v449
  %v815 = vunpack.c.h.b16 %v449
  %v816 = vunpack.c.l.b16 %v450
  %v817 = vunpack.c.h.b16 %v450
  %v818 = vunpack.c.l.b16 %v451
  %v819 = vunpack.c.h.b16 %v451
  %v820 = vunpack.c.l.b16 %v452
  %v821 = vunpack.c.h.b16 %v452
  %v822 = vunpack.c.l.b16 %v453
  %v823 = vunpack.c.h.b16 %v453
  %v824 = vunpack.c.l.b16 %v454
  %v825 = vunpack.c.h.b16 %v454
  %v826 = vunpack.c.l.b16 %v455
  %v827 = vunpack.c.h.b16 %v455
  %v828 = vunpack.c.l.b16 %v456
  %v829 = vunpack.c.h.b16 %v456
  %v830 = vunpack.c.l.b16 %v457
  %v831 = vunpack.c.h.b16 %v457
  %v832 = vunpack.c.l.b16 %v458
  %v833 = vunpack.c.h.b16 %v458
  %v834 = vunpack.c.l.b16 %v459
  %v835 = vunpack.c.h.b16 %v459
  %v836 = vunpack.c.l.b16 %v460
  %v837 = vunpack.c.h.b16 %v460
  %v838 = vunpack.c.l.b16 %v461
  %v839 = vunpack.c.h.b16 %v461
  %v840 = vunpack.c.l.b16 %v462
  %v841 = vunpack.c.h.b16 %v462
  %v842 = vunpack.c.l.b16 %v463
  %v843 = vunpack.c.h.b16 %v463
  %v844 = vunpack.c.l.b16 %v464
  %v845 = vunpack.c.h.b16 %v464
  %v846 = vunpack.c.l.b16 %v465
  %v847 = vunpack.c.h.b16 %v465
  %v848 = vunpack.c.l.b16 %v466
  %v849 = vunpack.c.h.b16 %v466
  %v850 = vunpack.c.l.b16 %v467
  %v851 = vunpack.c.h.b16 %v467
  %v852 = vunpack.c.l.b16 %v468
  %v853 = vunpack.c.h.b16 %v468
  %v854 = vunpack.c.l.b16 %v469
  %v855 = vunpack.c.h.b16 %v469
  %v856 = vunpack.c.l.b16 %v470
  %v857 = vunpack.c.h.b16 %v470
  %v858 = vunpack.c.l.b16 %v471
  %v859 = vunpack.c.h.b16 %v471
  %v860 = vunpack.c.l.b16 %v472
  %v861 = vunpack.c.h.b16 %v472
  %v862 = vunpack.c.l.b16 %v473
  %v863 = vunpack.c.h.b16 %v473
  %v864 = vunpack.c.l.b16 %v474
  %v865 = vunpack.c.h.b16 %v474
  %v866 = vunpack.c.l.b16 %v475
  %v867 = vunpack.c.h.b16 %v475
  %v868 = vunpack.c.l.b16 %v476
  %v869 = vunpack.c.h.b16 %v476
  %v870 = vunpack.c.l.b16 %v477
  %v871 = vunpack.c.h.b16 %v477
  %v872 = vunpack.c.l.b16 %v478
  %v873 = vunpack.c.h.b16 %v478
  %v874 = vunpack.c.l.b16 %v479
  %v875 = vunpack.c.h.b16 %v479
  %v876 = vunpack.c.l.b16 %v480
  %v877 = vunpack.c.h.b16 %v480
  %v878 = vunpack.c.l.b16 %v481
  %v879 = vunpack.c.h.b16 %v481
  %v880 = vunpack.c.l.b16 %v482
  %v881 = vunpack.c.h.b16 %v482
  %v882 = vunpack.c.l.b16 %v483
  %v883 = vunpack.c.h.b16 %v483
  %v884 = vunpack.c.l.b16 %v484
  %v885 = vunpack.c.h.b16 %v484
  %v886 = vunpack.c.l.b16 %v485
  %v887 = vunpack.c.h.b16 %v485
  %v888 = vunpack.c.l.b16 %v486
  %v889 = vunpack.c.h.b16 %v486
  %v890 = vunpack.c.l.b16 %v487
  %v891 = vunpack.c.h.b16 %v487
  %v892 = vunpack.c.l.b16 %v488
  %v893 = vunpack.c.h.b16 %v488
  %v894 = vunpack.c.l.b16 %v489
  %v895 = vunpack.c.h.b16 %v489
  %v896 = vunpack.c.l.b16 %v490
  %v897 = vunpack.c.h.b16 %v490
  %v898 = vunpack.c.l.b16 %v491
  %v899 = vunpack.c.h.b16 %v491
  %v900 = vunpack.c.l.b16 %v492
  %v901 = vunpack.c.h.b16 %v492
  %v902 = vunpack.c.l.b16 %v493
  %v903 = vunpack.c.h.b16 %v493
  %v904 = vunpack.c.l.b16 %v494
  %v905 = vunpack.c.h.b16 %v494
  %v906 = vunpack.c.l.b16 %v495
  %v907 = vunpack.c.h.b16 %v495
  %v908 = vunpack.c.l.b16 %v496
  %v909 = vunpack.c.h.b16 %v496
  %v910 = vunpack.c.l.b16 %v497
  %v911 = vunpack.c.h.b16 %v497
  %v912 = vunpack.c.l.b16 %v498
  %v913 = vunpack.c.h.b16 %v498
  %v914 = vunpack.c.l.b16 %v499
  %v915 = vunpack.c.h.b16 %v499
  %v916 = vunpack.c.l.b16 %v500
  %v917 = vunpack.c.h.b16 %v500
  %v918 = vunpack.c.l.b16 %v501
  %v919 = vunpack.c.h.b16 %v501
  %v920 = vunpack.c.l.b16 %v502
  %v921 = vunpack.c.h.b16 %v502
  %v922 = vunpack.c.l.b16 %v503
  %v923 = vunpack.c.h.b16 %v503
  %v924 = vpack.c.b16 %v684, %v668
  %v925 = vpack.c.b16 %v685, %v669
  %v926 = vpack.c.b16 %v686, %v670
  %v927 = vpack.c.b16 %v687, %v671
  %v928 = vpack.c.b16 %v688, %v672
  %v929 = vpack.c.b16 %v689, %v673
  %v930 = vpack.c.b16 %v690, %v674
  %v931 = vpack.c.b16 %v691, %v675
  %v932 = vpack.c.b16 %v692, %v676
  %v933 = vpack.c.b16 %v693, %v677
  %v934 = vpack.c.b16 %v694, %v678
  %v935 = vpack.c.b16 %v695, %v679
  %v936 = vpack.c.b16 %v696, %v680
  %v937 = vpack.c.b16 %v697, %v681
  %v938 = vpack.c.b16 %v698, %v682
  %v939 = vpack.c.b16 %v699, %v683
  %v940 = vpack.c.b16 %v716, %v700
  %v941 = vpack.c.b16 %v717, %v701
  %v942 = vpack.c.b16 %v718, %v702
  %v943 = vpack.c.b16 %v719, %v703
  %v944 = vpack.c.b16 %v720, %v704
  %v945 = vpack.c.b16 %v721, %v705
  %v946 = vpack.c.b16 %v722, %v706
  %v947 = vpack.c.b16 %v723, %v707
  %v948 = vpack.c.b16 %v724, %v708
  %v949 = vpack.c.b16 %v725, %v709
  %v950 = vpack.c.b16 %v726, %v710
  %v951 = vpack.c.b16 %v727, %v711
  %v952 = vpack.c.b16 %v728, %v712
  %v953 = vpack.c.b16 %v729, %v713
  %v954 = vpack.c.b16 %v730, %v714
  %v955 = vpack.c.b16 %v731, %v715
  %v956 = vpack.c.b16 %v748, %v732
  %v957 = vpack.c.b16 %v749, %v733
  %v958 = vpack.c.b16 %v750, %v734
  %v959 = vpack.c.b16 %v751, %v735
  %v960 = vpack.c.b16 %v752, %v736
  %v961 = vpack.c.b16 %v753, %v737
  %v962 = vpack.c.b16 %v754, %v738
  %v963 = vpack.c.b16 %v755, %v739
  %v964 = vpack.c.b16 %v756, %v740
  %v965 = vpack.c.b16 %v757, %v741
  %v966 = vpack.c.b16 %v758, %v742
  %v967 = vpack.c.b16 %v759, %v743
  %v968 = vpack.c.b16 %v760, %v744
  %v969 = vpack.c.b16 %v761, %v745
  %v970 = vpack.c.b16 %v762, %v746
  %v971 = vpack.c.b16 %v763, %v747
  %v972 = vpack.c.b16 %v780, %v764
  %v973 = vpack.c.b16 %v781, %v765
  %v974 = vpack.c.b16 %v782, %v766
  %v975 = vpack.c.b16 %v783, %v767
  %v976 = vpack.c.b16 %v784, %v768
  %v977 = vpack.c.b16 %v785, %v769
  %v978 = vpack.c.b16 %v786, %v770
  %v979 = vpack.c.b16 %v787, %v771
  %v980 = vpack.c.b16 %v788, %v772
  %v981 = vpack.c.b16 %v789, %v773
  %v982 = vpack.c.b16 %v790, %v774
  %v983 = vpack.c.b16 %v791, %v775
  %v984 = vpack.c.b16 %v792, %v776
  %v985 = vpack.c.b16 %v793, %v777
  %v986 = vpack.c.b16 %v794, %v778
  %v987 = vpack.c.b16 %v795, %v779
  %v988 = vpack.c.b16 %v812, %v796
  %v989 = vpack.c.b16 %v813, %v797
  %v990 = vpack.c.b16 %v814, %v798
  %v991 = vpack.c.b16 %v815, %v799
  %v992 = vpack.c.b16 %v816, %v800
  %v993 = vpack.c.b16 %v817, %v801
  %v994 = vpack.c.b16 %v818, %v802
  %v995 = vpack.c.b16 %v819, %v803
  %v996 = vpack.c.b16 %v820, %v804
  %v997 = vpack.c.b16 %v821, %v805
  %v998 = vpack.c.b16 %v822, %v806
  %v999 = vpack.c.b16 %v823, %v807
  %v1000 = vpack.c.b16 %v824, %v808
  %v1001 = vpack.c.b16 %v825, %v809
  %v1002 = vpack.c.b16 %v826, %v810
  %v1003 = vpack.c.b16 %v827, %v811
  %v1004 = vpack.c.b16 %v844, %v828
  %v1005 = vpack.c.b16 %v845, %v829
  %v1006 = vpack.c.b16 %v846, %v830
  %v1007 = vpack.c.b16 %v847, %v831
  %v1008 = vpack.c.b16 %v848, %v832
  %v1009 = vpack.c.b16 %v849, %v833
  %v1010 = vpack.c.b16 %v850, %v834
  %v1011 = vpack.c.b16 %v851, %v835
  %v1012 = vpack.c.b16 %v852, %v836
  %v1013 = vpack.c.b16 %v853, %v837
  %v1014 = vpack.c.b16 %v854, %v838
  %v1015 = vpack.c.b16 %v855, %v839
  %v1016 = vpack.c.b16 %v856, %v840
  %v1017 = vpack.c.b16 %v857, %v841
  %v1018 = vpack.c.b16 %v858, %v842
  %v1019 = vpack.c.b16 %v859, %v843
  %v1020 = vpack.c.b16 %v876, %v860
  %v1021 = vpack.c.b16 %v877, %v861
  %v1022 = vpack.c.b16 %v878, %v862
  %v1023 = vpack.c.b16 %v879, %v863
  %v1024 = vpack.c.b16 %v880, %v864
  %v1025 = vpack.c.b16 %v881, %v865
  %v1026 = vpack.c.b16 %v882, %v866
  %v1027 = vpack.c.b16 %v883, %v867
  %v1028 = vpack.c.b16 %v884, %v868
  %v1029 = vpack.c.b16 %v885, %v869
  %v1030 = vpack.c.b16 %v886, %v870
  %v1031 = vpack.c.b16 %v887, %v871
  %v1032 = vpack.c.b16 %v888, %v872
  %v1033 = vpack.c.b16 %v889, %v873
  %v1034 = vpack.c.b16 %v890, %v874
  %v1035 = vpack.c.b16 %v891, %v875
  %v1036 = vpack.c.b16 %v908, %v892
  %v1037 = vpack.c.b16 %v909, %v893
  %v1038 = vpack.c.b16 %v910, %v894
  %v1039 = vpack.c.b16 %v911, %v895
  %v1040 = vpack.c.b16 %v912, %v896
  %v1041 = vpack.c.b16 %v913, %v897
  %v1042 = vpack.c.b16 %v914, %v898
  %v1043 = vpack.c.b16 %v915, %v899
  %v1044 = vpack.c.b16 %v916, %v900
  %v1045 = vpack.c.b16 %v917, %v901
  %v1046 = vpack.c.b16 %v918, %v902
  %v1047 = vpack.c.b16 %v919, %v903
  %v1048 = vpack.c.b16 %v920, %v904
  %v1049 = vpack.c.b16 %v921, %v905
  %v1050 = vpack.c.b16 %v922, %v906
  %v1051 = vpack.c.b16 %v923, %v907
  %1180 = vmatpush.bf16.msra.mxu0 %v1036
  %1181 = vmatpush.bf16.msra.mxu0 %v1020
  %1182 = vmatpush.bf16.msra.mxu0 %v1004
  %1183 = vmatpush.bf16.msra.mxu0 %v988
  %1184 = vmatpush.bf16.msra.mxu0 %v972
  %1185 = vmatpush.bf16.msra.mxu0 %v956
  %1186 = vmatpush.bf16.msra.mxu0 %v940
  %1187 = vmatpush.bf16.msra.mxu0 %v924
  %1188 = vmatmul.bf16.gmra.mxu0 %v375
  %v1189 = vpop.f32.mrf.mxu0
  %v1190 = vadd.f32 %v508, %v1189
  %v1191 = vpop.f32.mrf.mxu0
  %1192 = vdwg.mxu0
  %1193 = vmatpush.bf16.msra.mxu0 %v1037
  %1194 = vmatpush.bf16.msra.mxu0 %v1021
  %1195 = vmatpush.bf16.msra.mxu0 %v1005
  %1196 = vmatpush.bf16.msra.mxu0 %v989
  %1197 = vmatpush.bf16.msra.mxu0 %v973
  %1198 = vmatpush.bf16.msra.mxu0 %v957
  %1199 = vmatpush.bf16.msra.mxu0 %v941
  %1200 = vmatpush.bf16.msra.mxu0 %v925
  %1201 = vmatmul.bf16.gmra.mxu0 %v375
  %v1202 = vpop.f32.mrf.mxu0
  %v1203 = vadd.f32 %v509, %v1202
  %v1204 = vpop.f32.mrf.mxu0
  %1205 = vdwg.mxu0
  %1206 = vmatpush.bf16.msra.mxu0 %v1038
  %1207 = vmatpush.bf16.msra.mxu0 %v1022
  %1208 = vmatpush.bf16.msra.mxu0 %v1006
  %1209 = vmatpush.bf16.msra.mxu0 %v990
  %1210 = vmatpush.bf16.msra.mxu0 %v974
  %1211 = vmatpush.bf16.msra.mxu0 %v958
  %1212 = vmatpush.bf16.msra.mxu0 %v942
  %1213 = vmatpush.bf16.msra.mxu0 %v926
  %1214 = vmatmul.bf16.gmra.mxu0 %v375
  %v1215 = vpop.f32.mrf.mxu0
  %v1216 = vadd.f32 %v510, %v1215
  %v1217 = vpop.f32.mrf.mxu0
  %1218 = vdwg.mxu0
  %1219 = vmatpush.bf16.msra.mxu0 %v1039
  %1220 = vmatpush.bf16.msra.mxu0 %v1023
  %1221 = vmatpush.bf16.msra.mxu0 %v1007
  %1222 = vmatpush.bf16.msra.mxu0 %v991
  %1223 = vmatpush.bf16.msra.mxu0 %v975
  %1224 = vmatpush.bf16.msra.mxu0 %v959
  %1225 = vmatpush.bf16.msra.mxu0 %v943
  %1226 = vmatpush.bf16.msra.mxu0 %v927
  %1227 = vmatmul.bf16.gmra.mxu0 %v375
  %v1228 = vpop.f32.mrf.mxu0
  %v1229 = vadd.f32 %v511, %v1228
  %v1230 = vpop.f32.mrf.mxu0
  %1231 = vdwg.mxu0
  %1232 = vmatpush.bf16.msra.mxu0 %v1040
  %1233 = vmatpush.bf16.msra.mxu0 %v1024
  %1234 = vmatpush.bf16.msra.mxu0 %v1008
  %1235 = vmatpush.bf16.msra.mxu0 %v992
  %1236 = vmatpush.bf16.msra.mxu0 %v976
  %1237 = vmatpush.bf16.msra.mxu0 %v960
  %1238 = vmatpush.bf16.msra.mxu0 %v944
  %1239 = vmatpush.bf16.msra.mxu0 %v928
  %1240 = vmatmul.bf16.gmra.mxu0 %v375
  %v1241 = vpop.f32.mrf.mxu0
  %v1242 = vadd.f32 %v512, %v1241
  %v1243 = vpop.f32.mrf.mxu0
  %1244 = vdwg.mxu0
  %1245 = vmatpush.bf16.msra.mxu0 %v1041
  %1246 = vmatpush.bf16.msra.mxu0 %v1025
  %1247 = vmatpush.bf16.msra.mxu0 %v1009
  %1248 = vmatpush.bf16.msra.mxu0 %v993
  %1249 = vmatpush.bf16.msra.mxu0 %v977
  %1250 = vmatpush.bf16.msra.mxu0 %v961
  %1251 = vmatpush.bf16.msra.mxu0 %v945
  %1252 = vmatpush.bf16.msra.mxu0 %v929
  %1253 = vmatmul.bf16.gmra.mxu0 %v375
  %v1254 = vpop.f32.mrf.mxu0
  %v1255 = vadd.f32 %v513, %v1254
  %v1256 = vpop.f32.mrf.mxu0
  %1257 = vdwg.mxu0
  %1258 = vmatpush.bf16.msra.mxu0 %v1042
  %1259 = vmatpush.bf16.msra.mxu0 %v1026
  %1260 = vmatpush.bf16.msra.mxu0 %v1010
  %1261 = vmatpush.bf16.msra.mxu0 %v994
  %1262 = vmatpush.bf16.msra.mxu0 %v978
  %1263 = vmatpush.bf16.msra.mxu0 %v962
  %1264 = vmatpush.bf16.msra.mxu0 %v946
  %1265 = vmatpush.bf16.msra.mxu0 %v930
  %1266 = vmatmul.bf16.gmra.mxu0 %v375
  %v1267 = vpop.f32.mrf.mxu0
  %v1268 = vadd.f32 %v514, %v1267
  %v1269 = vpop.f32.mrf.mxu0
  %1270 = vdwg.mxu0
  %1271 = vmatpush.bf16.msra.mxu0 %v1043
  %1272 = vmatpush.bf16.msra.mxu0 %v1027
  %1273 = vmatpush.bf16.msra.mxu0 %v1011
  %1274 = vmatpush.bf16.msra.mxu0 %v995
  %1275 = vmatpush.bf16.msra.mxu0 %v979
  %1276 = vmatpush.bf16.msra.mxu0 %v963
  %1277 = vmatpush.bf16.msra.mxu0 %v947
  %1278 = vmatpush.bf16.msra.mxu0 %v931
  %1279 = vmatmul.bf16.gmra.mxu0 %v375
  %v1280 = vpop.f32.mrf.mxu0
  %v1281 = vadd.f32 %v515, %v1280
  %v1282 = vpop.f32.mrf.mxu0
  %1283 = vdwg.mxu0
  %1284 = vmatpush.bf16.msra.mxu0 %v1044
  %1285 = vmatpush.bf16.msra.mxu0 %v1028
  %1286 = vmatpush.bf16.msra.mxu0 %v1012
  %1287 = vmatpush.bf16.msra.mxu0 %v996
  %1288 = vmatpush.bf16.msra.mxu0 %v980
  %1289 = vmatpush.bf16.msra.mxu0 %v964
  %1290 = vmatpush.bf16.msra.mxu0 %v948
  %1291 = vmatpush.bf16.msra.mxu0 %v932
  %1292 = vmatmul.bf16.gmra.mxu0 %v375
  %v1293 = vpop.f32.mrf.mxu0
  %v1294 = vadd.f32 %v516, %v1293
  %v1295 = vpop.f32.mrf.mxu0
  %1296 = vdwg.mxu0
  %1297 = vmatpush.bf16.msra.mxu0 %v1045
  %1298 = vmatpush.bf16.msra.mxu0 %v1029
  %1299 = vmatpush.bf16.msra.mxu0 %v1013
  %1300 = vmatpush.bf16.msra.mxu0 %v997
  %1301 = vmatpush.bf16.msra.mxu0 %v981
  %1302 = vmatpush.bf16.msra.mxu0 %v965
  %1303 = vmatpush.bf16.msra.mxu0 %v949
  %1304 = vmatpush.bf16.msra.mxu0 %v933
  %1305 = vmatmul.bf16.gmra.mxu0 %v375
  %v1306 = vpop.f32.mrf.mxu0
  %v1307 = vadd.f32 %v517, %v1306
  %v1308 = vpop.f32.mrf.mxu0
  %1309 = vdwg.mxu0
  %1310 = vmatpush.bf16.msra.mxu0 %v1046
  %1311 = vmatpush.bf16.msra.mxu0 %v1030
  %1312 = vmatpush.bf16.msra.mxu0 %v1014
  %1313 = vmatpush.bf16.msra.mxu0 %v998
  %1314 = vmatpush.bf16.msra.mxu0 %v982
  %1315 = vmatpush.bf16.msra.mxu0 %v966
  %1316 = vmatpush.bf16.msra.mxu0 %v950
  %1317 = vmatpush.bf16.msra.mxu0 %v934
  %1318 = vmatmul.bf16.gmra.mxu0 %v375
  %v1319 = vpop.f32.mrf.mxu0
  %v1320 = vadd.f32 %v518, %v1319
  %v1321 = vpop.f32.mrf.mxu0
  %1322 = vdwg.mxu0
  %1323 = vmatpush.bf16.msra.mxu0 %v1047
  %1324 = vmatpush.bf16.msra.mxu0 %v1031
  %1325 = vmatpush.bf16.msra.mxu0 %v1015
  %1326 = vmatpush.bf16.msra.mxu0 %v999
  %1327 = vmatpush.bf16.msra.mxu0 %v983
  %1328 = vmatpush.bf16.msra.mxu0 %v967
  %1329 = vmatpush.bf16.msra.mxu0 %v951
  %1330 = vmatpush.bf16.msra.mxu0 %v935
  %1331 = vmatmul.bf16.gmra.mxu0 %v375
  %v1332 = vpop.f32.mrf.mxu0
  %v1333 = vadd.f32 %v519, %v1332
  %v1334 = vpop.f32.mrf.mxu0
  %1335 = vdwg.mxu0
  %1336 = vmatpush.bf16.msra.mxu0 %v1048
  %1337 = vmatpush.bf16.msra.mxu0 %v1032
  %1338 = vmatpush.bf16.msra.mxu0 %v1016
  %1339 = vmatpush.bf16.msra.mxu0 %v1000
  %1340 = vmatpush.bf16.msra.mxu0 %v984
  %1341 = vmatpush.bf16.msra.mxu0 %v968
  %1342 = vmatpush.bf16.msra.mxu0 %v952
  %1343 = vmatpush.bf16.msra.mxu0 %v936
  %1344 = vmatmul.bf16.gmra.mxu0 %v375
  %v1345 = vpop.f32.mrf.mxu0
  %v1346 = vadd.f32 %v520, %v1345
  %v1347 = vpop.f32.mrf.mxu0
  %1348 = vdwg.mxu0
  %1349 = vmatpush.bf16.msra.mxu0 %v1049
  %1350 = vmatpush.bf16.msra.mxu0 %v1033
  %1351 = vmatpush.bf16.msra.mxu0 %v1017
  %1352 = vmatpush.bf16.msra.mxu0 %v1001
  %1353 = vmatpush.bf16.msra.mxu0 %v985
  %1354 = vmatpush.bf16.msra.mxu0 %v969
  %1355 = vmatpush.bf16.msra.mxu0 %v953
  %1356 = vmatpush.bf16.msra.mxu0 %v937
  %1357 = vmatmul.bf16.gmra.mxu0 %v375
  %v1358 = vpop.f32.mrf.mxu0
  %v1359 = vadd.f32 %v521, %v1358
  %v1360 = vpop.f32.mrf.mxu0
  %1361 = vdwg.mxu0
  %1362 = vmatpush.bf16.msra.mxu0 %v1050
  %1363 = vmatpush.bf16.msra.mxu0 %v1034
  %1364 = vmatpush.bf16.msra.mxu0 %v1018
  %1365 = vmatpush.bf16.msra.mxu0 %v1002
  %1366 = vmatpush.bf16.msra.mxu0 %v986
  %1367 = vmatpush.bf16.msra.mxu0 %v970
  %1368 = vmatpush.bf16.msra.mxu0 %v954
  %1369 = vmatpush.bf16.msra.mxu0 %v938
  %1370 = vmatmul.bf16.gmra.mxu0 %v375
  %v1371 = vpop.f32.mrf.mxu0
  %v1372 = vadd.f32 %v522, %v1371
  %v1373 = vpop.f32.mrf.mxu0
  %1374 = vdwg.mxu0
  %1375 = vmatpush.bf16.msra.mxu0 %v1051
  %1376 = vmatpush.bf16.msra.mxu0 %v1035
  %1377 = vmatpush.bf16.msra.mxu0 %v1019
  %1378 = vmatpush.bf16.msra.mxu0 %v1003
  %1379 = vmatpush.bf16.msra.mxu0 %v987
  %1380 = vmatpush.bf16.msra.mxu0 %v971
  %1381 = vmatpush.bf16.msra.mxu0 %v955
  %1382 = vmatpush.bf16.msra.mxu0 %v939
  %1383 = vmatmul.bf16.gmra.mxu0 %v375
  %v1384 = vpop.f32.mrf.mxu0
  %v1385 = vadd.f32 %v523, %v1384
  %v1386 = vpop.f32.mrf.mxu0
  %1387 = vdwg.mxu0
  %v1388 = vmax.f32 %v1190, 0.0
  %v1389 = vmax.f32 %v1203, 0.0
  %v1390 = vmax.f32 %v1216, 0.0
  %v1391 = vmax.f32 %v1229, 0.0
  %v1392 = vmax.f32 %v1242, 0.0
  %v1393 = vmax.f32 %v1255, 0.0
  %v1394 = vmax.f32 %v1268, 0.0
  %v1395 = vmax.f32 %v1281, 0.0
  %v1396 = vmax.f32 %v1294, 0.0
  %v1397 = vmax.f32 %v1307, 0.0
  %v1398 = vmax.f32 %v1320, 0.0
  %v1399 = vmax.f32 %v1333, 0.0
  %v1400 = vmax.f32 %v1346, 0.0
  %v1401 = vmax.f32 %v1359, 0.0
  %v1402 = vmax.f32 %v1372, 0.0
  %v1403 = vmax.f32 %v1385, 0.0
  %v1404 = vpack.c.bf16 %v1389, %v1388
  %v1405 = vpack.c.bf16 %v1391, %v1390
  %v1406 = vpack.c.bf16 %v1393, %v1392
  %v1407 = vpack.c.bf16 %v1395, %v1394
  %v1408 = vpack.c.bf16 %v1397, %v1396
  %v1409 = vpack.c.bf16 %v1399, %v1398
  %v1410 = vpack.c.bf16 %v1401, %v1400
  %v1411 = vpack.c.bf16 %v1403, %v1402
  %v1412 = vld [vmem:[%s8] sm:$0xf]
  %v1413 = vld [vmem:[%s8 + $0x4] sm:$0xf]
  %v1414 = vld [vmem:[%s8 + $0x8] sm:$0xf]
  %v1415 = vld [vmem:[%s8 + $0xc] sm:$0xf]
  %v1416 = vld [vmem:[%s8 + $0x10] sm:$0xf]
  %v1417 = vld [vmem:[%s8 + $0x14] sm:$0xf]
  %v1418 = vld [vmem:[%s8 + $0x18] sm:$0xf]
  %v1419 = vld [vmem:[%s8 + $0x1c] sm:$0xf]
  %v1420 = vld [vmem:[%s8 + $0x20] sm:$0xf]
  %v1421 = vld [vmem:[%s8 + $0x24] sm:$0xf]
  %v1422 = vld [vmem:[%s8 + $0x28] sm:$0xf]
  %v1423 = vld [vmem:[%s8 + $0x2c] sm:$0xf]
  %v1424 = vld [vmem:[%s8 + $0x30] sm:$0xf]
  %v1425 = vld [vmem:[%s8 + $0x34] sm:$0xf]
  %v1426 = vld [vmem:[%s8 + $0x38] sm:$0xf]
  %v1427 = vld [vmem:[%s8 + $0x3c] sm:$0xf]
  %v1428 = vld [vmem:[%s8 + $0x40] sm:$0xf]
  %v1429 = vld [vmem:[%s8 + $0x44] sm:$0xf]
  %v1430 = vld [vmem:[%s8 + $0x48] sm:$0xf]
  %v1431 = vld [vmem:[%s8 + $0x4c] sm:$0xf]
  %v1432 = vld [vmem:[%s8 + $0x50] sm:$0xf]
  %v1433 = vld [vmem:[%s8 + $0x54] sm:$0xf]
  %v1434 = vld [vmem:[%s8 + $0x58] sm:$0xf]
  %v1435 = vld [vmem:[%s8 + $0x5c] sm:$0xf]
  %v1436 = vld [vmem:[%s8 + $0x60] sm:$0xf]
  %v1437 = vld [vmem:[%s8 + $0x64] sm:$0xf]
  %v1438 = vld [vmem:[%s8 + $0x68] sm:$0xf]
  %v1439 = vld [vmem:[%s8 + $0x6c] sm:$0xf]
  %v1440 = vld [vmem:[%s8 + $0x70] sm:$0xf]
  %v1441 = vld [vmem:[%s8 + $0x74] sm:$0xf]
  %v1442 = vld [vmem:[%s8 + $0x78] sm:$0xf]
  %v1443 = vld [vmem:[%s8 + $0x7c] sm:$0xf]
  %v1444 = vld [vmem:[%s8 + $0x80] sm:$0xf]
  %v1445 = vld [vmem:[%s8 + $0x84] sm:$0xf]
  %v1446 = vld [vmem:[%s8 + $0x88] sm:$0xf]
  %v1447 = vld [vmem:[%s8 + $0x8c] sm:$0xf]
  %v1448 = vld [vmem:[%s8 + $0x90] sm:$0xf]
  %v1449 = vld [vmem:[%s8 + $0x94] sm:$0xf]
  %v1450 = vld [vmem:[%s8 + $0x98] sm:$0xf]
  %v1451 = vld [vmem:[%s8 + $0x9c] sm:$0xf]
  %v1452 = vld [vmem:[%s8 + $0xa0] sm:$0xf]
  %v1453 = vld [vmem:[%s8 + $0xa4] sm:$0xf]
  %v1454 = vld [vmem:[%s8 + $0xa8] sm:$0xf]
  %v1455 = vld [vmem:[%s8 + $0xac] sm:$0xf]
  %v1456 = vld [vmem:[%s8 + $0xb0] sm:$0xf]
  %v1457 = vld [vmem:[%s8 + $0xb4] sm:$0xf]
  %v1458 = vld [vmem:[%s8 + $0xb8] sm:$0xf]
  %v1459 = vld [vmem:[%s8 + $0xbc] sm:$0xf]
  %v1460 = vld [vmem:[%s8 + $0xc0] sm:$0xf]
  %v1461 = vld [vmem:[%s8 + $0xc4] sm:$0xf]
  %v1462 = vld [vmem:[%s8 + $0xc8] sm:$0xf]
  %v1463 = vld [vmem:[%s8 + $0xcc] sm:$0xf]
  %v1464 = vld [vmem:[%s8 + $0xd0] sm:$0xf]
  %v1465 = vld [vmem:[%s8 + $0xd4] sm:$0xf]
  %v1466 = vld [vmem:[%s8 + $0xd8] sm:$0xf]
  %v1467 = vld [vmem:[%s8 + $0xdc] sm:$0xf]
  %v1468 = vld [vmem:[%s8 + $0xe0] sm:$0xf]
  %v1469 = vld [vmem:[%s8 + $0xe4] sm:$0xf]
  %v1470 = vld [vmem:[%s8 + $0xe8] sm:$0xf]
  %v1471 = vld [vmem:[%s8 + $0xec] sm:$0xf]
  %v1472 = vld [vmem:[%s8 + $0xf0] sm:$0xf]
  %v1473 = vld [vmem:[%s8 + $0xf4] sm:$0xf]
  %v1474 = vld [vmem:[%s8 + $0xf8] sm:$0xf]
  %v1475 = vld [vmem:[%s8 + $0xfc] sm:$0xf]
  %v1476 = vld [vmem:[%s8 + $0x100] sm:$0xf]
  %v1477 = vld [vmem:[%s8 + $0x104] sm:$0xf]
  %v1478 = vld [vmem:[%s8 + $0x108] sm:$0xf]
  %v1479 = vld [vmem:[%s8 + $0x10c] sm:$0xf]
  %v1480 = vld [vmem:[%s8 + $0x110] sm:$0xf]
  %v1481 = vld [vmem:[%s8 + $0x114] sm:$0xf]
  %v1482 = vld [vmem:[%s8 + $0x118] sm:$0xf]
  %v1483 = vld [vmem:[%s8 + $0x11c] sm:$0xf]
  %v1484 = vld [vmem:[%s8 + $0x120] sm:$0xf]
  %v1485 = vld [vmem:[%s8 + $0x124] sm:$0xf]
  %v1486 = vld [vmem:[%s8 + $0x128] sm:$0xf]
  %v1487 = vld [vmem:[%s8 + $0x12c] sm:$0xf]
  %v1488 = vld [vmem:[%s8 + $0x130] sm:$0xf]
  %v1489 = vld [vmem:[%s8 + $0x134] sm:$0xf]
  %v1490 = vld [vmem:[%s8 + $0x138] sm:$0xf]
  %v1491 = vld [vmem:[%s8 + $0x13c] sm:$0xf]
  %v1492 = vld [vmem:[%s8 + $0x140] sm:$0xf]
  %v1493 = vld [vmem:[%s8 + $0x144] sm:$0xf]
  %v1494 = vld [vmem:[%s8 + $0x148] sm:$0xf]
  %v1495 = vld [vmem:[%s8 + $0x14c] sm:$0xf]
  %v1496 = vld [vmem:[%s8 + $0x150] sm:$0xf]
  %v1497 = vld [vmem:[%s8 + $0x154] sm:$0xf]
  %v1498 = vld [vmem:[%s8 + $0x158] sm:$0xf]
  %v1499 = vld [vmem:[%s8 + $0x15c] sm:$0xf]
  %v1500 = vld [vmem:[%s8 + $0x160] sm:$0xf]
  %v1501 = vld [vmem:[%s8 + $0x164] sm:$0xf]
  %v1502 = vld [vmem:[%s8 + $0x168] sm:$0xf]
  %v1503 = vld [vmem:[%s8 + $0x16c] sm:$0xf]
  %v1504 = vld [vmem:[%s8 + $0x170] sm:$0xf]
  %v1505 = vld [vmem:[%s8 + $0x174] sm:$0xf]
  %v1506 = vld [vmem:[%s8 + $0x178] sm:$0xf]
  %v1507 = vld [vmem:[%s8 + $0x17c] sm:$0xf]
  %v1508 = vld [vmem:[%s8 + $0x180] sm:$0xf]
  %v1509 = vld [vmem:[%s8 + $0x184] sm:$0xf]
  %v1510 = vld [vmem:[%s8 + $0x188] sm:$0xf]
  %v1511 = vld [vmem:[%s8 + $0x18c] sm:$0xf]
  %v1512 = vld [vmem:[%s8 + $0x190] sm:$0xf]
  %v1513 = vld [vmem:[%s8 + $0x194] sm:$0xf]
  %v1514 = vld [vmem:[%s8 + $0x198] sm:$0xf]
  %v1515 = vld [vmem:[%s8 + $0x19c] sm:$0xf]
  %v1516 = vld [vmem:[%s8 + $0x1a0] sm:$0xf]
  %v1517 = vld [vmem:[%s8 + $0x1a4] sm:$0xf]
  %v1518 = vld [vmem:[%s8 + $0x1a8] sm:$0xf]
  %v1519 = vld [vmem:[%s8 + $0x1ac] sm:$0xf]
  %v1520 = vld [vmem:[%s8 + $0x1b0] sm:$0xf]
  %v1521 = vld [vmem:[%s8 + $0x1b4] sm:$0xf]
  %v1522 = vld [vmem:[%s8 + $0x1b8] sm:$0xf]
  %v1523 = vld [vmem:[%s8 + $0x1bc] sm:$0xf]
  %v1524 = vld [vmem:[%s8 + $0x1c0] sm:$0xf]
  %v1525 = vld [vmem:[%s8 + $0x1c4] sm:$0xf]
  %v1526 = vld [vmem:[%s8 + $0x1c8] sm:$0xf]
  %v1527 = vld [vmem:[%s8 + $0x1cc] sm:$0xf]
  %v1528 = vld [vmem:[%s8 + $0x1d0] sm:$0xf]
  %v1529 = vld [vmem:[%s8 + $0x1d4] sm:$0xf]
  %v1530 = vld [vmem:[%s8 + $0x1d8] sm:$0xf]
  %v1531 = vld [vmem:[%s8 + $0x1dc] sm:$0xf]
  %v1532 = vld [vmem:[%s8 + $0x1e0] sm:$0xf]
  %v1533 = vld [vmem:[%s8 + $0x1e4] sm:$0xf]
  %v1534 = vld [vmem:[%s8 + $0x1e8] sm:$0xf]
  %v1535 = vld [vmem:[%s8 + $0x1ec] sm:$0xf]
  %v1536 = vld [vmem:[%s8 + $0x1f0] sm:$0xf]
  %v1537 = vld [vmem:[%s8 + $0x1f4] sm:$0xf]
  %v1538 = vld [vmem:[%s8 + $0x1f8] sm:$0xf]
  %v1539 = vld [vmem:[%s8 + $0x1fc] sm:$0xf]
  %v1540 = vld [vmem:[%s9] sm:$0x1]
  %v1542 = vperm.slane %v1540, 0
  %v1548 = vunpack.c.l.b16 %v1404
  %v1549 = vunpack.c.h.b16 %v1404
  %v1550 = vunpack.c.l.b16 %v1405
  %v1551 = vunpack.c.h.b16 %v1405
  %v1552 = vunpack.c.l.b16 %v1406
  %v1553 = vunpack.c.h.b16 %v1406
  %v1554 = vunpack.c.l.b16 %v1407
  %v1555 = vunpack.c.h.b16 %v1407
  %v1556 = vpack.c.b16 %v1548, %v1548
  %v1557 = vpack.c.b16 %v1549, %v1549
  %v1558 = vpack.c.b16 %v1550, %v1550
  %v1559 = vpack.c.b16 %v1551, %v1551
  %v1560 = vpack.c.b16 %v1552, %v1552
  %v1561 = vpack.c.b16 %v1553, %v1553
  %v1562 = vpack.c.b16 %v1554, %v1554
  %v1563 = vpack.c.b16 %v1555, %v1555
  %v1700 = vunpack.c.l.b16 %v1412
  %v1701 = vunpack.c.l.b16 %v1413
  %v1702 = vunpack.c.l.b16 %v1414
  %v1703 = vunpack.c.l.b16 %v1415
  %v1704 = vunpack.c.l.b16 %v1416
  %v1705 = vunpack.c.l.b16 %v1417
  %v1706 = vunpack.c.l.b16 %v1418
  %v1707 = vunpack.c.l.b16 %v1419
  %v1708 = vunpack.c.l.b16 %v1420
  %v1709 = vunpack.c.l.b16 %v1421
  %v1710 = vunpack.c.l.b16 %v1422
  %v1711 = vunpack.c.l.b16 %v1423
  %v1712 = vunpack.c.l.b16 %v1424
  %v1713 = vunpack.c.l.b16 %v1425
  %v1714 = vunpack.c.l.b16 %v1426
  %v1715 = vunpack.c.l.b16 %v1427
  %v1716 = vunpack.c.l.b16 %v1428
  %v1717 = vunpack.c.l.b16 %v1429
  %v1718 = vunpack.c.l.b16 %v1430
  %v1719 = vunpack.c.l.b16 %v1431
  %v1720 = vunpack.c.l.b16 %v1432
  %v1721 = vunpack.c.l.b16 %v1433
  %v1722 = vunpack.c.l.b16 %v1434
  %v1723 = vunpack.c.l.b16 %v1435
  %v1724 = vunpack.c.l.b16 %v1436
  %v1725 = vunpack.c.l.b16 %v1437
  %v1726 = vunpack.c.l.b16 %v1438
  %v1727 = vunpack.c.l.b16 %v1439
  %v1728 = vunpack.c.l.b16 %v1440
  %v1729 = vunpack.c.l.b16 %v1441
  %v1730 = vunpack.c.l.b16 %v1442
  %v1731 = vunpack.c.l.b16 %v1443
  %v1732 = vunpack.c.l.b16 %v1444
  %v1733 = vunpack.c.l.b16 %v1445
  %v1734 = vunpack.c.l.b16 %v1446
  %v1735 = vunpack.c.l.b16 %v1447
  %v1736 = vunpack.c.l.b16 %v1448
  %v1737 = vunpack.c.l.b16 %v1449
  %v1738 = vunpack.c.l.b16 %v1450
  %v1739 = vunpack.c.l.b16 %v1451
  %v1740 = vunpack.c.l.b16 %v1452
  %v1741 = vunpack.c.l.b16 %v1453
  %v1742 = vunpack.c.l.b16 %v1454
  %v1743 = vunpack.c.l.b16 %v1455
  %v1744 = vunpack.c.l.b16 %v1456
  %v1745 = vunpack.c.l.b16 %v1457
  %v1746 = vunpack.c.l.b16 %v1458
  %v1747 = vunpack.c.l.b16 %v1459
  %v1748 = vunpack.c.l.b16 %v1460
  %v1749 = vunpack.c.l.b16 %v1461
  %v1750 = vunpack.c.l.b16 %v1462
  %v1751 = vunpack.c.l.b16 %v1463
  %v1752 = vunpack.c.l.b16 %v1464
  %v1753 = vunpack.c.l.b16 %v1465
  %v1754 = vunpack.c.l.b16 %v1466
  %v1755 = vunpack.c.l.b16 %v1467
  %v1756 = vunpack.c.l.b16 %v1468
  %v1757 = vunpack.c.l.b16 %v1469
  %v1758 = vunpack.c.l.b16 %v1470
  %v1759 = vunpack.c.l.b16 %v1471
  %v1760 = vunpack.c.l.b16 %v1472
  %v1761 = vunpack.c.l.b16 %v1473
  %v1762 = vunpack.c.l.b16 %v1474
  %v1763 = vunpack.c.l.b16 %v1475
  %v1764 = vunpack.c.l.b16 %v1476
  %v1765 = vunpack.c.l.b16 %v1477
  %v1766 = vunpack.c.l.b16 %v1478
  %v1767 = vunpack.c.l.b16 %v1479
  %v1768 = vunpack.c.l.b16 %v1480
  %v1769 = vunpack.c.l.b16 %v1481
  %v1770 = vunpack.c.l.b16 %v1482
  %v1771 = vunpack.c.l.b16 %v1483
  %v1772 = vunpack.c.l.b16 %v1484
  %v1773 = vunpack.c.l.b16 %v1485
  %v1774 = vunpack.c.l.b16 %v1486
  %v1775 = vunpack.c.l.b16 %v1487
  %v1776 = vunpack.c.l.b16 %v1488
  %v1777 = vunpack.c.l.b16 %v1489
  %v1778 = vunpack.c.l.b16 %v1490
  %v1779 = vunpack.c.l.b16 %v1491
  %v1780 = vunpack.c.l.b16 %v1492
  %v1781 = vunpack.c.l.b16 %v1493
  %v1782 = vunpack.c.l.b16 %v1494
  %v1783 = vunpack.c.l.b16 %v1495
  %v1784 = vunpack.c.l.b16 %v1496
  %v1785 = vunpack.c.l.b16 %v1497
  %v1786 = vunpack.c.l.b16 %v1498
  %v1787 = vunpack.c.l.b16 %v1499
  %v1788 = vunpack.c.l.b16 %v1500
  %v1789 = vunpack.c.l.b16 %v1501
  %v1790 = vunpack.c.l.b16 %v1502
  %v1791 = vunpack.c.l.b16 %v1503
  %v1792 = vunpack.c.l.b16 %v1504
  %v1793 = vunpack.c.l.b16 %v1505
  %v1794 = vunpack.c.l.b16 %v1506
  %v1795 = vunpack.c.l.b16 %v1507
  %v1796 = vunpack.c.l.b16 %v1508
  %v1797 = vunpack.c.l.b16 %v1509
  %v1798 = vunpack.c.l.b16 %v1510
  %v1799 = vunpack.c.l.b16 %v1511
  %v1800 = vunpack.c.l.b16 %v1512
  %v1801 = vunpack.c.l.b16 %v1513
  %v1802 = vunpack.c.l.b16 %v1514
  %v1803 = vunpack.c.l.b16 %v1515
  %v1804 = vunpack.c.l.b16 %v1516
  %v1805 = vunpack.c.l.b16 %v1517
  %v1806 = vunpack.c.l.b16 %v1518
  %v1807 = vunpack.c.l.b16 %v1519
  %v1808 = vunpack.c.l.b16 %v1520
  %v1809 = vunpack.c.l.b16 %v1521
  %v1810 = vunpack.c.l.b16 %v1522
  %v1811 = vunpack.c.l.b16 %v1523
  %v1812 = vunpack.c.l.b16 %v1524
  %v1813 = vunpack.c.l.b16 %v1525
  %v1814 = vunpack.c.l.b16 %v1526
  %v1815 = vunpack.c.l.b16 %v1527
  %v1816 = vunpack.c.l.b16 %v1528
  %v1817 = vunpack.c.l.b16 %v1529
  %v1818 = vunpack.c.l.b16 %v1530
  %v1819 = vunpack.c.l.b16 %v1531
  %v1820 = vunpack.c.l.b16 %v1532
  %v1821 = vunpack.c.l.b16 %v1533
  %v1822 = vunpack.c.l.b16 %v1534
  %v1823 = vunpack.c.l.b16 %v1535
  %v1824 = vunpack.c.l.b16 %v1536
  %v1825 = vunpack.c.l.b16 %v1537
  %v1826 = vunpack.c.l.b16 %v1538
  %v1827 = vunpack.c.l.b16 %v1539
  %v1828 = vpack.c.b16 %v1701, %v1700
  %v1829 = vpack.c.b16 %v1703, %v1702
  %v1830 = vpack.c.b16 %v1705, %v1704
  %v1831 = vpack.c.b16 %v1707, %v1706
  %v1832 = vpack.c.b16 %v1709, %v1708
  %v1833 = vpack.c.b16 %v1711, %v1710
  %v1834 = vpack.c.b16 %v1713, %v1712
  %v1835 = vpack.c.b16 %v1715, %v1714
  %v1836 = vpack.c.b16 %v1717, %v1716
  %v1837 = vpack.c.b16 %v1719, %v1718
  %v1838 = vpack.c.b16 %v1721, %v1720
  %v1839 = vpack.c.b16 %v1723, %v1722
  %v1840 = vpack.c.b16 %v1725, %v1724
  %v1841 = vpack.c.b16 %v1727, %v1726
  %v1842 = vpack.c.b16 %v1729, %v1728
  %v1843 = vpack.c.b16 %v1731, %v1730
  %v1844 = vpack.c.b16 %v1733, %v1732
  %v1845 = vpack.c.b16 %v1735, %v1734
  %v1846 = vpack.c.b16 %v1737, %v1736
  %v1847 = vpack.c.b16 %v1739, %v1738
  %v1848 = vpack.c.b16 %v1741, %v1740
  %v1849 = vpack.c.b16 %v1743, %v1742
  %v1850 = vpack.c.b16 %v1745, %v1744
  %v1851 = vpack.c.b16 %v1747, %v1746
  %v1852 = vpack.c.b16 %v1749, %v1748
  %v1853 = vpack.c.b16 %v1751, %v1750
  %v1854 = vpack.c.b16 %v1753, %v1752
  %v1855 = vpack.c.b16 %v1755, %v1754
  %v1856 = vpack.c.b16 %v1757, %v1756
  %v1857 = vpack.c.b16 %v1759, %v1758
  %v1858 = vpack.c.b16 %v1761, %v1760
  %v1859 = vpack.c.b16 %v1763, %v1762
  %v1860 = vpack.c.b16 %v1765, %v1764
  %v1861 = vpack.c.b16 %v1767, %v1766
  %v1862 = vpack.c.b16 %v1769, %v1768
  %v1863 = vpack.c.b16 %v1771, %v1770
  %v1864 = vpack.c.b16 %v1773, %v1772
  %v1865 = vpack.c.b16 %v1775, %v1774
  %v1866 = vpack.c.b16 %v1777, %v1776
  %v1867 = vpack.c.b16 %v1779, %v1778
  %v1868 = vpack.c.b16 %v1781, %v1780
  %v1869 = vpack.c.b16 %v1783, %v1782
  %v1870 = vpack.c.b16 %v1785, %v1784
  %v1871 = vpack.c.b16 %v1787, %v1786
  %v1872 = vpack.c.b16 %v1789, %v1788
  %v1873 = vpack.c.b16 %v1791, %v1790
  %v1874 = vpack.c.b16 %v1793, %v1792
  %v1875 = vpack.c.b16 %v1795, %v1794
  %v1876 = vpack.c.b16 %v1797, %v1796
  %v1877 = vpack.c.b16 %v1799, %v1798
  %v1878 = vpack.c.b16 %v1801, %v1800
  %v1879 = vpack.c.b16 %v1803, %v1802
  %v1880 = vpack.c.b16 %v1805, %v1804
  %v1881 = vpack.c.b16 %v1807, %v1806
  %v1882 = vpack.c.b16 %v1809, %v1808
  %v1883 = vpack.c.b16 %v1811, %v1810
  %v1884 = vpack.c.b16 %v1813, %v1812
  %v1885 = vpack.c.b16 %v1815, %v1814
  %v1886 = vpack.c.b16 %v1817, %v1816
  %v1887 = vpack.c.b16 %v1819, %v1818
  %v1888 = vpack.c.b16 %v1821, %v1820
  %v1889 = vpack.c.b16 %v1823, %v1822
  %v1890 = vpack.c.b16 %v1825, %v1824
  %v1891 = vpack.c.b16 %v1827, %v1826
  %1956 = vmatpush.bf16.msra.mxu0 %v1835
  %1957 = vmatpush.bf16.msra.mxu0 %v1834
  %1958 = vmatpush.bf16.msra.mxu0 %v1833
  %1959 = vmatpush.bf16.msra.mxu0 %v1832
  %1960 = vmatpush.bf16.msra.mxu0 %v1831
  %1961 = vmatpush.bf16.msra.mxu0 %v1830
  %1962 = vmatpush.bf16.msra.mxu0 %v1829
  %1963 = vmatpush.bf16.msra.mxu0 %v1828
  %1964 = vmatmul.bf16.gmra.mxu0 %v1556
  %v1965 = vpop.f32.mrf.mxu0
  %v1966 = vadd.f32 %v1542, %v1965
  %v1967 = vpop.f32.mrf.mxu0
  %1968 = vdwg.mxu0
  %1969 = vmatpush.bf16.msra.mxu0 %v1843
  %1970 = vmatpush.bf16.msra.mxu0 %v1842
  %1971 = vmatpush.bf16.msra.mxu0 %v1841
  %1972 = vmatpush.bf16.msra.mxu0 %v1840
  %1973 = vmatpush.bf16.msra.mxu0 %v1839
  %1974 = vmatpush.bf16.msra.mxu0 %v1838
  %1975 = vmatpush.bf16.msra.mxu0 %v1837
  %1976 = vmatpush.bf16.msra.mxu0 %v1836
  %1977 = vmatmul.bf16.gmra.mxu0 %v1557
  %v1978 = vpop.f32.mrf.mxu0
  %v1979 = vadd.f32 %v1966, %v1978
  %v1980 = vpop.f32.mrf.mxu0
  %1981 = vdwg.mxu0
  %1982 = vmatpush.bf16.msra.mxu0 %v1851
  %1983 = vmatpush.bf16.msra.mxu0 %v1850
  %1984 = vmatpush.bf16.msra.mxu0 %v1849
  %1985 = vmatpush.bf16.msra.mxu0 %v1848
  %1986 = vmatpush.bf16.msra.mxu0 %v1847
  %1987 = vmatpush.bf16.msra.mxu0 %v1846
  %1988 = vmatpush.bf16.msra.mxu0 %v1845
  %1989 = vmatpush.bf16.msra.mxu0 %v1844
  %1990 = vmatmul.bf16.gmra.mxu0 %v1558
  %v1991 = vpop.f32.mrf.mxu0
  %v1992 = vadd.f32 %v1979, %v1991
  %v1993 = vpop.f32.mrf.mxu0
  %1994 = vdwg.mxu0
  %1995 = vmatpush.bf16.msra.mxu0 %v1859
  %1996 = vmatpush.bf16.msra.mxu0 %v1858
  %1997 = vmatpush.bf16.msra.mxu0 %v1857
  %1998 = vmatpush.bf16.msra.mxu0 %v1856
  %1999 = vmatpush.bf16.msra.mxu0 %v1855
  %2000 = vmatpush.bf16.msra.mxu0 %v1854
  %2001 = vmatpush.bf16.msra.mxu0 %v1853
  %2002 = vmatpush.bf16.msra.mxu0 %v1852
  %2003 = vmatmul.bf16.gmra.mxu0 %v1559
  %v2004 = vpop.f32.mrf.mxu0
  %v2005 = vadd.f32 %v1992, %v2004
  %v2006 = vpop.f32.mrf.mxu0
  %2007 = vdwg.mxu0
  %2008 = vmatpush.bf16.msra.mxu0 %v1867
  %2009 = vmatpush.bf16.msra.mxu0 %v1866
  %2010 = vmatpush.bf16.msra.mxu0 %v1865
  %2011 = vmatpush.bf16.msra.mxu0 %v1864
  %2012 = vmatpush.bf16.msra.mxu0 %v1863
  %2013 = vmatpush.bf16.msra.mxu0 %v1862
  %2014 = vmatpush.bf16.msra.mxu0 %v1861
  %2015 = vmatpush.bf16.msra.mxu0 %v1860
  %2016 = vmatmul.bf16.gmra.mxu0 %v1560
  %v2017 = vpop.f32.mrf.mxu0
  %v2018 = vadd.f32 %v2005, %v2017
  %v2019 = vpop.f32.mrf.mxu0
  %2020 = vdwg.mxu0
  %2021 = vmatpush.bf16.msra.mxu0 %v1875
  %2022 = vmatpush.bf16.msra.mxu0 %v1874
  %2023 = vmatpush.bf16.msra.mxu0 %v1873
  %2024 = vmatpush.bf16.msra.mxu0 %v1872
  %2025 = vmatpush.bf16.msra.mxu0 %v1871
  %2026 = vmatpush.bf16.msra.mxu0 %v1870
  %2027 = vmatpush.bf16.msra.mxu0 %v1869
  %2028 = vmatpush.bf16.msra.mxu0 %v1868
  %2029 = vmatmul.bf16.gmra.mxu0 %v1561
  %v2030 = vpop.f32.mrf.mxu0
  %v2031 = vadd.f32 %v2018, %v2030
  %v2032 = vpop.f32.mrf.mxu0
  %2033 = vdwg.mxu0
  %2034 = vmatpush.bf16.msra.mxu0 %v1883
  %2035 = vmatpush.bf16.msra.mxu0 %v1882
  %2036 = vmatpush.bf16.msra.mxu0 %v1881
  %2037 = vmatpush.bf16.msra.mxu0 %v1880
  %2038 = vmatpush.bf16.msra.mxu0 %v1879
  %2039 = vmatpush.bf16.msra.mxu0 %v1878
  %2040 = vmatpush.bf16.msra.mxu0 %v1877
  %2041 = vmatpush.bf16.msra.mxu0 %v1876
  %2042 = vmatmul.bf16.gmra.mxu0 %v1562
  %v2043 = vpop.f32.mrf.mxu0
  %v2044 = vadd.f32 %v2031, %v2043
  %v2045 = vpop.f32.mrf.mxu0
  %2046 = vdwg.mxu0
  %2047 = vmatpush.bf16.msra.mxu0 %v1891
  %2048 = vmatpush.bf16.msra.mxu0 %v1890
  %2049 = vmatpush.bf16.msra.mxu0 %v1889
  %2050 = vmatpush.bf16.msra.mxu0 %v1888
  %2051 = vmatpush.bf16.msra.mxu0 %v1887
  %2052 = vmatpush.bf16.msra.mxu0 %v1886
  %2053 = vmatpush.bf16.msra.mxu0 %v1885
  %2054 = vmatpush.bf16.msra.mxu0 %v1884
  %2055 = vmatmul.bf16.gmra.mxu0 %v1563
  %v2056 = vpop.f32.mrf.mxu0
  %v2057 = vadd.f32 %v2044, %v2056
  %v2058 = vpop.f32.mrf.mxu0
  %2059 = vdwg.mxu0
  %vm2060 = vcmask 125952
  %2061 = vst.msk [vmem:[%s13] sm:$0xf] %vm2060, %v2057
  %v2062 = vld [vmem:[%s10] sm:$0xf]
  %v2063 = vld [vmem:[%s10 + $0x4] sm:$0xf]
  %v2064 = vld [vmem:[%s10 + $0x8] sm:$0xf]
  %v2065 = vld [vmem:[%s10 + $0xc] sm:$0xf]
  %v2066 = vld [vmem:[%s10 + $0x10] sm:$0xf]
  %v2067 = vld [vmem:[%s10 + $0x14] sm:$0xf]
  %v2068 = vld [vmem:[%s10 + $0x18] sm:$0xf]
  %v2069 = vld [vmem:[%s10 + $0x1c] sm:$0xf]
  %v2070 = vld [vmem:[%s10 + $0x20] sm:$0xf]
  %v2071 = vld [vmem:[%s10 + $0x24] sm:$0xf]
  %v2072 = vld [vmem:[%s10 + $0x28] sm:$0xf]
  %v2073 = vld [vmem:[%s10 + $0x2c] sm:$0xf]
  %v2074 = vld [vmem:[%s10 + $0x30] sm:$0xf]
  %v2075 = vld [vmem:[%s10 + $0x34] sm:$0xf]
  %v2076 = vld [vmem:[%s10 + $0x38] sm:$0xf]
  %v2077 = vld [vmem:[%s10 + $0x3c] sm:$0xf]
  %v2078 = vld [vmem:[%s10 + $0x40] sm:$0xf]
  %v2079 = vld [vmem:[%s10 + $0x44] sm:$0xf]
  %v2080 = vld [vmem:[%s10 + $0x48] sm:$0xf]
  %v2081 = vld [vmem:[%s10 + $0x4c] sm:$0xf]
  %v2082 = vld [vmem:[%s10 + $0x50] sm:$0xf]
  %v2083 = vld [vmem:[%s10 + $0x54] sm:$0xf]
  %v2084 = vld [vmem:[%s10 + $0x58] sm:$0xf]
  %v2085 = vld [vmem:[%s10 + $0x5c] sm:$0xf]
  %v2086 = vld [vmem:[%s10 + $0x60] sm:$0xf]
  %v2087 = vld [vmem:[%s10 + $0x64] sm:$0xf]
  %v2088 = vld [vmem:[%s10 + $0x68] sm:$0xf]
  %v2089 = vld [vmem:[%s10 + $0x6c] sm:$0xf]
  %v2090 = vld [vmem:[%s10 + $0x70] sm:$0xf]
  %v2091 = vld [vmem:[%s10 + $0x74] sm:$0xf]
  %v2092 = vld [vmem:[%s10 + $0x78] sm:$0xf]
  %v2093 = vld [vmem:[%s10 + $0x7c] sm:$0xf]
  %v2094 = vld [vmem:[%s10 + $0x80] sm:$0xf]
  %v2095 = vld [vmem:[%s10 + $0x84] sm:$0xf]
  %v2096 = vld [vmem:[%s10 + $0x88] sm:$0xf]
  %v2097 = vld [vmem:[%s10 + $0x8c] sm:$0xf]
  %v2098 = vld [vmem:[%s10 + $0x90] sm:$0xf]
  %v2099 = vld [vmem:[%s10 + $0x94] sm:$0xf]
  %v2100 = vld [vmem:[%s10 + $0x98] sm:$0xf]
  %v2101 = vld [vmem:[%s10 + $0x9c] sm:$0xf]
  %v2102 = vld [vmem:[%s10 + $0xa0] sm:$0xf]
  %v2103 = vld [vmem:[%s10 + $0xa4] sm:$0xf]
  %v2104 = vld [vmem:[%s10 + $0xa8] sm:$0xf]
  %v2105 = vld [vmem:[%s10 + $0xac] sm:$0xf]
  %v2106 = vld [vmem:[%s10 + $0xb0] sm:$0xf]
  %v2107 = vld [vmem:[%s10 + $0xb4] sm:$0xf]
  %v2108 = vld [vmem:[%s10 + $0xb8] sm:$0xf]
  %v2109 = vld [vmem:[%s10 + $0xbc] sm:$0xf]
  %v2110 = vld [vmem:[%s10 + $0xc0] sm:$0xf]
  %v2111 = vld [vmem:[%s10 + $0xc4] sm:$0xf]
  %v2112 = vld [vmem:[%s10 + $0xc8] sm:$0xf]
  %v2113 = vld [vmem:[%s10 + $0xcc] sm:$0xf]
  %v2114 = vld [vmem:[%s10 + $0xd0] sm:$0xf]
  %v2115 = vld [vmem:[%s10 + $0xd4] sm:$0xf]
  %v2116 = vld [vmem:[%s10 + $0xd8] sm:$0xf]
  %v2117 = vld [vmem:[%s10 + $0xdc] sm:$0xf]
  %v2118 = vld [vmem:[%s10 + $0xe0] sm:$0xf]
  %v2119 = vld [vmem:[%s10 + $0xe4] sm:$0xf]
  %v2120 = vld [vmem:[%s10 + $0xe8] sm:$0xf]
  %v2121 = vld [vmem:[%s10 + $0xec] sm:$0xf]
  %v2122 = vld [vmem:[%s10 + $0xf0] sm:$0xf]
  %v2123 = vld [vmem:[%s10 + $0xf4] sm:$0xf]
  %v2124 = vld [vmem:[%s10 + $0xf8] sm:$0xf]
  %v2125 = vld [vmem:[%s10 + $0xfc] sm:$0xf]
  %v2126 = vld [vmem:[%s10 + $0x100] sm:$0xf]
  %v2127 = vld [vmem:[%s10 + $0x104] sm:$0xf]
  %v2128 = vld [vmem:[%s10 + $0x108] sm:$0xf]
  %v2129 = vld [vmem:[%s10 + $0x10c] sm:$0xf]
  %v2130 = vld [vmem:[%s10 + $0x110] sm:$0xf]
  %v2131 = vld [vmem:[%s10 + $0x114] sm:$0xf]
  %v2132 = vld [vmem:[%s10 + $0x118] sm:$0xf]
  %v2133 = vld [vmem:[%s10 + $0x11c] sm:$0xf]
  %v2134 = vld [vmem:[%s10 + $0x120] sm:$0xf]
  %v2135 = vld [vmem:[%s10 + $0x124] sm:$0xf]
  %v2136 = vld [vmem:[%s10 + $0x128] sm:$0xf]
  %v2137 = vld [vmem:[%s10 + $0x12c] sm:$0xf]
  %v2138 = vld [vmem:[%s10 + $0x130] sm:$0xf]
  %v2139 = vld [vmem:[%s10 + $0x134] sm:$0xf]
  %v2140 = vld [vmem:[%s10 + $0x138] sm:$0xf]
  %v2141 = vld [vmem:[%s10 + $0x13c] sm:$0xf]
  %v2142 = vld [vmem:[%s10 + $0x140] sm:$0xf]
  %v2143 = vld [vmem:[%s10 + $0x144] sm:$0xf]
  %v2144 = vld [vmem:[%s10 + $0x148] sm:$0xf]
  %v2145 = vld [vmem:[%s10 + $0x14c] sm:$0xf]
  %v2146 = vld [vmem:[%s10 + $0x150] sm:$0xf]
  %v2147 = vld [vmem:[%s10 + $0x154] sm:$0xf]
  %v2148 = vld [vmem:[%s10 + $0x158] sm:$0xf]
  %v2149 = vld [vmem:[%s10 + $0x15c] sm:$0xf]
  %v2150 = vld [vmem:[%s10 + $0x160] sm:$0xf]
  %v2151 = vld [vmem:[%s10 + $0x164] sm:$0xf]
  %v2152 = vld [vmem:[%s10 + $0x168] sm:$0xf]
  %v2153 = vld [vmem:[%s10 + $0x16c] sm:$0xf]
  %v2154 = vld [vmem:[%s10 + $0x170] sm:$0xf]
  %v2155 = vld [vmem:[%s10 + $0x174] sm:$0xf]
  %v2156 = vld [vmem:[%s10 + $0x178] sm:$0xf]
  %v2157 = vld [vmem:[%s10 + $0x17c] sm:$0xf]
  %v2158 = vld [vmem:[%s10 + $0x180] sm:$0xf]
  %v2159 = vld [vmem:[%s10 + $0x184] sm:$0xf]
  %v2160 = vld [vmem:[%s10 + $0x188] sm:$0xf]
  %v2161 = vld [vmem:[%s10 + $0x18c] sm:$0xf]
  %v2162 = vld [vmem:[%s10 + $0x190] sm:$0xf]
  %v2163 = vld [vmem:[%s10 + $0x194] sm:$0xf]
  %v2164 = vld [vmem:[%s10 + $0x198] sm:$0xf]
  %v2165 = vld [vmem:[%s10 + $0x19c] sm:$0xf]
  %v2166 = vld [vmem:[%s10 + $0x1a0] sm:$0xf]
  %v2167 = vld [vmem:[%s10 + $0x1a4] sm:$0xf]
  %v2168 = vld [vmem:[%s10 + $0x1a8] sm:$0xf]
  %v2169 = vld [vmem:[%s10 + $0x1ac] sm:$0xf]
  %v2170 = vld [vmem:[%s10 + $0x1b0] sm:$0xf]
  %v2171 = vld [vmem:[%s10 + $0x1b4] sm:$0xf]
  %v2172 = vld [vmem:[%s10 + $0x1b8] sm:$0xf]
  %v2173 = vld [vmem:[%s10 + $0x1bc] sm:$0xf]
  %v2174 = vld [vmem:[%s10 + $0x1c0] sm:$0xf]
  %v2175 = vld [vmem:[%s10 + $0x1c4] sm:$0xf]
  %v2176 = vld [vmem:[%s10 + $0x1c8] sm:$0xf]
  %v2177 = vld [vmem:[%s10 + $0x1cc] sm:$0xf]
  %v2178 = vld [vmem:[%s10 + $0x1d0] sm:$0xf]
  %v2179 = vld [vmem:[%s10 + $0x1d4] sm:$0xf]
  %v2180 = vld [vmem:[%s10 + $0x1d8] sm:$0xf]
  %v2181 = vld [vmem:[%s10 + $0x1dc] sm:$0xf]
  %v2182 = vld [vmem:[%s10 + $0x1e0] sm:$0xf]
  %v2183 = vld [vmem:[%s10 + $0x1e4] sm:$0xf]
  %v2184 = vld [vmem:[%s10 + $0x1e8] sm:$0xf]
  %v2185 = vld [vmem:[%s10 + $0x1ec] sm:$0xf]
  %v2186 = vld [vmem:[%s10 + $0x1f0] sm:$0xf]
  %v2187 = vld [vmem:[%s10 + $0x1f4] sm:$0xf]
  %v2188 = vld [vmem:[%s10 + $0x1f8] sm:$0xf]
  %v2189 = vld [vmem:[%s10 + $0x1fc] sm:$0xf]
  %v2190 = vld [vmem:[%s11] sm:$0x1]
  %v2192 = vperm.slane %v2190, 0
  %v2198 = vunpack.c.l.b16 %v1408
  %v2199 = vunpack.c.h.b16 %v1408
  %v2200 = vunpack.c.l.b16 %v1409
  %v2201 = vunpack.c.h.b16 %v1409
  %v2202 = vunpack.c.l.b16 %v1410
  %v2203 = vunpack.c.h.b16 %v1410
  %v2204 = vunpack.c.l.b16 %v1411
  %v2205 = vunpack.c.h.b16 %v1411
  %v2206 = vpack.c.b16 %v2198, %v2198
  %v2207 = vpack.c.b16 %v2199, %v2199
  %v2208 = vpack.c.b16 %v2200, %v2200
  %v2209 = vpack.c.b16 %v2201, %v2201
  %v2210 = vpack.c.b16 %v2202, %v2202
  %v2211 = vpack.c.b16 %v2203, %v2203
  %v2212 = vpack.c.b16 %v2204, %v2204
  %v2213 = vpack.c.b16 %v2205, %v2205
  %v2350 = vunpack.c.l.b16 %v2062
  %v2351 = vunpack.c.l.b16 %v2063
  %v2352 = vunpack.c.l.b16 %v2064
  %v2353 = vunpack.c.l.b16 %v2065
  %v2354 = vunpack.c.l.b16 %v2066
  %v2355 = vunpack.c.l.b16 %v2067
  %v2356 = vunpack.c.l.b16 %v2068
  %v2357 = vunpack.c.l.b16 %v2069
  %v2358 = vunpack.c.l.b16 %v2070
  %v2359 = vunpack.c.l.b16 %v2071
  %v2360 = vunpack.c.l.b16 %v2072
  %v2361 = vunpack.c.l.b16 %v2073
  %v2362 = vunpack.c.l.b16 %v2074
  %v2363 = vunpack.c.l.b16 %v2075
  %v2364 = vunpack.c.l.b16 %v2076
  %v2365 = vunpack.c.l.b16 %v2077
  %v2366 = vunpack.c.l.b16 %v2078
  %v2367 = vunpack.c.l.b16 %v2079
  %v2368 = vunpack.c.l.b16 %v2080
  %v2369 = vunpack.c.l.b16 %v2081
  %v2370 = vunpack.c.l.b16 %v2082
  %v2371 = vunpack.c.l.b16 %v2083
  %v2372 = vunpack.c.l.b16 %v2084
  %v2373 = vunpack.c.l.b16 %v2085
  %v2374 = vunpack.c.l.b16 %v2086
  %v2375 = vunpack.c.l.b16 %v2087
  %v2376 = vunpack.c.l.b16 %v2088
  %v2377 = vunpack.c.l.b16 %v2089
  %v2378 = vunpack.c.l.b16 %v2090
  %v2379 = vunpack.c.l.b16 %v2091
  %v2380 = vunpack.c.l.b16 %v2092
  %v2381 = vunpack.c.l.b16 %v2093
  %v2382 = vunpack.c.l.b16 %v2094
  %v2383 = vunpack.c.l.b16 %v2095
  %v2384 = vunpack.c.l.b16 %v2096
  %v2385 = vunpack.c.l.b16 %v2097
  %v2386 = vunpack.c.l.b16 %v2098
  %v2387 = vunpack.c.l.b16 %v2099
  %v2388 = vunpack.c.l.b16 %v2100
  %v2389 = vunpack.c.l.b16 %v2101
  %v2390 = vunpack.c.l.b16 %v2102
  %v2391 = vunpack.c.l.b16 %v2103
  %v2392 = vunpack.c.l.b16 %v2104
  %v2393 = vunpack.c.l.b16 %v2105
  %v2394 = vunpack.c.l.b16 %v2106
  %v2395 = vunpack.c.l.b16 %v2107
  %v2396 = vunpack.c.l.b16 %v2108
  %v2397 = vunpack.c.l.b16 %v2109
  %v2398 = vunpack.c.l.b16 %v2110
  %v2399 = vunpack.c.l.b16 %v2111
  %v2400 = vunpack.c.l.b16 %v2112
  %v2401 = vunpack.c.l.b16 %v2113
  %v2402 = vunpack.c.l.b16 %v2114
  %v2403 = vunpack.c.l.b16 %v2115
  %v2404 = vunpack.c.l.b16 %v2116
  %v2405 = vunpack.c.l.b16 %v2117
  %v2406 = vunpack.c.l.b16 %v2118
  %v2407 = vunpack.c.l.b16 %v2119
  %v2408 = vunpack.c.l.b16 %v2120
  %v2409 = vunpack.c.l.b16 %v2121
  %v2410 = vunpack.c.l.b16 %v2122
  %v2411 = vunpack.c.l.b16 %v2123
  %v2412 = vunpack.c.l.b16 %v2124
  %v2413 = vunpack.c.l.b16 %v2125
  %v2414 = vunpack.c.l.b16 %v2126
  %v2415 = vunpack.c.l.b16 %v2127
  %v2416 = vunpack.c.l.b16 %v2128
  %v2417 = vunpack.c.l.b16 %v2129
  %v2418 = vunpack.c.l.b16 %v2130
  %v2419 = vunpack.c.l.b16 %v2131
  %v2420 = vunpack.c.l.b16 %v2132
  %v2421 = vunpack.c.l.b16 %v2133
  %v2422 = vunpack.c.l.b16 %v2134
  %v2423 = vunpack.c.l.b16 %v2135
  %v2424 = vunpack.c.l.b16 %v2136
  %v2425 = vunpack.c.l.b16 %v2137
  %v2426 = vunpack.c.l.b16 %v2138
  %v2427 = vunpack.c.l.b16 %v2139
  %v2428 = vunpack.c.l.b16 %v2140
  %v2429 = vunpack.c.l.b16 %v2141
  %v2430 = vunpack.c.l.b16 %v2142
  %v2431 = vunpack.c.l.b16 %v2143
  %v2432 = vunpack.c.l.b16 %v2144
  %v2433 = vunpack.c.l.b16 %v2145
  %v2434 = vunpack.c.l.b16 %v2146
  %v2435 = vunpack.c.l.b16 %v2147
  %v2436 = vunpack.c.l.b16 %v2148
  %v2437 = vunpack.c.l.b16 %v2149
  %v2438 = vunpack.c.l.b16 %v2150
  %v2439 = vunpack.c.l.b16 %v2151
  %v2440 = vunpack.c.l.b16 %v2152
  %v2441 = vunpack.c.l.b16 %v2153
  %v2442 = vunpack.c.l.b16 %v2154
  %v2443 = vunpack.c.l.b16 %v2155
  %v2444 = vunpack.c.l.b16 %v2156
  %v2445 = vunpack.c.l.b16 %v2157
  %v2446 = vunpack.c.l.b16 %v2158
  %v2447 = vunpack.c.l.b16 %v2159
  %v2448 = vunpack.c.l.b16 %v2160
  %v2449 = vunpack.c.l.b16 %v2161
  %v2450 = vunpack.c.l.b16 %v2162
  %v2451 = vunpack.c.l.b16 %v2163
  %v2452 = vunpack.c.l.b16 %v2164
  %v2453 = vunpack.c.l.b16 %v2165
  %v2454 = vunpack.c.l.b16 %v2166
  %v2455 = vunpack.c.l.b16 %v2167
  %v2456 = vunpack.c.l.b16 %v2168
  %v2457 = vunpack.c.l.b16 %v2169
  %v2458 = vunpack.c.l.b16 %v2170
  %v2459 = vunpack.c.l.b16 %v2171
  %v2460 = vunpack.c.l.b16 %v2172
  %v2461 = vunpack.c.l.b16 %v2173
  %v2462 = vunpack.c.l.b16 %v2174
  %v2463 = vunpack.c.l.b16 %v2175
  %v2464 = vunpack.c.l.b16 %v2176
  %v2465 = vunpack.c.l.b16 %v2177
  %v2466 = vunpack.c.l.b16 %v2178
  %v2467 = vunpack.c.l.b16 %v2179
  %v2468 = vunpack.c.l.b16 %v2180
  %v2469 = vunpack.c.l.b16 %v2181
  %v2470 = vunpack.c.l.b16 %v2182
  %v2471 = vunpack.c.l.b16 %v2183
  %v2472 = vunpack.c.l.b16 %v2184
  %v2473 = vunpack.c.l.b16 %v2185
  %v2474 = vunpack.c.l.b16 %v2186
  %v2475 = vunpack.c.l.b16 %v2187
  %v2476 = vunpack.c.l.b16 %v2188
  %v2477 = vunpack.c.l.b16 %v2189
  %v2478 = vpack.c.b16 %v2351, %v2350
  %v2479 = vpack.c.b16 %v2353, %v2352
  %v2480 = vpack.c.b16 %v2355, %v2354
  %v2481 = vpack.c.b16 %v2357, %v2356
  %v2482 = vpack.c.b16 %v2359, %v2358
  %v2483 = vpack.c.b16 %v2361, %v2360
  %v2484 = vpack.c.b16 %v2363, %v2362
  %v2485 = vpack.c.b16 %v2365, %v2364
  %v2486 = vpack.c.b16 %v2367, %v2366
  %v2487 = vpack.c.b16 %v2369, %v2368
  %v2488 = vpack.c.b16 %v2371, %v2370
  %v2489 = vpack.c.b16 %v2373, %v2372
  %v2490 = vpack.c.b16 %v2375, %v2374
  %v2491 = vpack.c.b16 %v2377, %v2376
  %v2492 = vpack.c.b16 %v2379, %v2378
  %v2493 = vpack.c.b16 %v2381, %v2380
  %v2494 = vpack.c.b16 %v2383, %v2382
  %v2495 = vpack.c.b16 %v2385, %v2384
  %v2496 = vpack.c.b16 %v2387, %v2386
  %v2497 = vpack.c.b16 %v2389, %v2388
  %v2498 = vpack.c.b16 %v2391, %v2390
  %v2499 = vpack.c.b16 %v2393, %v2392
  %v2500 = vpack.c.b16 %v2395, %v2394
  %v2501 = vpack.c.b16 %v2397, %v2396
  %v2502 = vpack.c.b16 %v2399, %v2398
  %v2503 = vpack.c.b16 %v2401, %v2400
  %v2504 = vpack.c.b16 %v2403, %v2402
  %v2505 = vpack.c.b16 %v2405, %v2404
  %v2506 = vpack.c.b16 %v2407, %v2406
  %v2507 = vpack.c.b16 %v2409, %v2408
  %v2508 = vpack.c.b16 %v2411, %v2410
  %v2509 = vpack.c.b16 %v2413, %v2412
  %v2510 = vpack.c.b16 %v2415, %v2414
  %v2511 = vpack.c.b16 %v2417, %v2416
  %v2512 = vpack.c.b16 %v2419, %v2418
  %v2513 = vpack.c.b16 %v2421, %v2420
  %v2514 = vpack.c.b16 %v2423, %v2422
  %v2515 = vpack.c.b16 %v2425, %v2424
  %v2516 = vpack.c.b16 %v2427, %v2426
  %v2517 = vpack.c.b16 %v2429, %v2428
  %v2518 = vpack.c.b16 %v2431, %v2430
  %v2519 = vpack.c.b16 %v2433, %v2432
  %v2520 = vpack.c.b16 %v2435, %v2434
  %v2521 = vpack.c.b16 %v2437, %v2436
  %v2522 = vpack.c.b16 %v2439, %v2438
  %v2523 = vpack.c.b16 %v2441, %v2440
  %v2524 = vpack.c.b16 %v2443, %v2442
  %v2525 = vpack.c.b16 %v2445, %v2444
  %v2526 = vpack.c.b16 %v2447, %v2446
  %v2527 = vpack.c.b16 %v2449, %v2448
  %v2528 = vpack.c.b16 %v2451, %v2450
  %v2529 = vpack.c.b16 %v2453, %v2452
  %v2530 = vpack.c.b16 %v2455, %v2454
  %v2531 = vpack.c.b16 %v2457, %v2456
  %v2532 = vpack.c.b16 %v2459, %v2458
  %v2533 = vpack.c.b16 %v2461, %v2460
  %v2534 = vpack.c.b16 %v2463, %v2462
  %v2535 = vpack.c.b16 %v2465, %v2464
  %v2536 = vpack.c.b16 %v2467, %v2466
  %v2537 = vpack.c.b16 %v2469, %v2468
  %v2538 = vpack.c.b16 %v2471, %v2470
  %v2539 = vpack.c.b16 %v2473, %v2472
  %v2540 = vpack.c.b16 %v2475, %v2474
  %v2541 = vpack.c.b16 %v2477, %v2476
  %2606 = vmatpush.bf16.msra.mxu0 %v2485
  %2607 = vmatpush.bf16.msra.mxu0 %v2484
  %2608 = vmatpush.bf16.msra.mxu0 %v2483
  %2609 = vmatpush.bf16.msra.mxu0 %v2482
  %2610 = vmatpush.bf16.msra.mxu0 %v2481
  %2611 = vmatpush.bf16.msra.mxu0 %v2480
  %2612 = vmatpush.bf16.msra.mxu0 %v2479
  %2613 = vmatpush.bf16.msra.mxu0 %v2478
  %2614 = vmatmul.bf16.gmra.mxu0 %v2206
  %v2615 = vpop.f32.mrf.mxu0
  %v2616 = vadd.f32 %v2192, %v2615
  %v2617 = vpop.f32.mrf.mxu0
  %2618 = vdwg.mxu0
  %2619 = vmatpush.bf16.msra.mxu0 %v2493
  %2620 = vmatpush.bf16.msra.mxu0 %v2492
  %2621 = vmatpush.bf16.msra.mxu0 %v2491
  %2622 = vmatpush.bf16.msra.mxu0 %v2490
  %2623 = vmatpush.bf16.msra.mxu0 %v2489
  %2624 = vmatpush.bf16.msra.mxu0 %v2488
  %2625 = vmatpush.bf16.msra.mxu0 %v2487
  %2626 = vmatpush.bf16.msra.mxu0 %v2486
  %2627 = vmatmul.bf16.gmra.mxu0 %v2207
  %v2628 = vpop.f32.mrf.mxu0
  %v2629 = vadd.f32 %v2616, %v2628
  %v2630 = vpop.f32.mrf.mxu0
  %2631 = vdwg.mxu0
  %2632 = vmatpush.bf16.msra.mxu0 %v2501
  %2633 = vmatpush.bf16.msra.mxu0 %v2500
  %2634 = vmatpush.bf16.msra.mxu0 %v2499
  %2635 = vmatpush.bf16.msra.mxu0 %v2498
  %2636 = vmatpush.bf16.msra.mxu0 %v2497
  %2637 = vmatpush.bf16.msra.mxu0 %v2496
  %2638 = vmatpush.bf16.msra.mxu0 %v2495
  %2639 = vmatpush.bf16.msra.mxu0 %v2494
  %2640 = vmatmul.bf16.gmra.mxu0 %v2208
  %v2641 = vpop.f32.mrf.mxu0
  %v2642 = vadd.f32 %v2629, %v2641
  %v2643 = vpop.f32.mrf.mxu0
  %2644 = vdwg.mxu0
  %2645 = vmatpush.bf16.msra.mxu0 %v2509
  %2646 = vmatpush.bf16.msra.mxu0 %v2508
  %2647 = vmatpush.bf16.msra.mxu0 %v2507
  %2648 = vmatpush.bf16.msra.mxu0 %v2506
  %2649 = vmatpush.bf16.msra.mxu0 %v2505
  %2650 = vmatpush.bf16.msra.mxu0 %v2504
  %2651 = vmatpush.bf16.msra.mxu0 %v2503
  %2652 = vmatpush.bf16.msra.mxu0 %v2502
  %2653 = vmatmul.bf16.gmra.mxu0 %v2209
  %v2654 = vpop.f32.mrf.mxu0
  %v2655 = vadd.f32 %v2642, %v2654
  %v2656 = vpop.f32.mrf.mxu0
  %2657 = vdwg.mxu0
  %2658 = vmatpush.bf16.msra.mxu0 %v2517
  %2659 = vmatpush.bf16.msra.mxu0 %v2516
  %2660 = vmatpush.bf16.msra.mxu0 %v2515
  %2661 = vmatpush.bf16.msra.mxu0 %v2514
  %2662 = vmatpush.bf16.msra.mxu0 %v2513
  %2663 = vmatpush.bf16.msra.mxu0 %v2512
  %2664 = vmatpush.bf16.msra.mxu0 %v2511
  %2665 = vmatpush.bf16.msra.mxu0 %v2510
  %2666 = vmatmul.bf16.gmra.mxu0 %v2210
  %v2667 = vpop.f32.mrf.mxu0
  %v2668 = vadd.f32 %v2655, %v2667
  %v2669 = vpop.f32.mrf.mxu0
  %2670 = vdwg.mxu0
  %2671 = vmatpush.bf16.msra.mxu0 %v2525
  %2672 = vmatpush.bf16.msra.mxu0 %v2524
  %2673 = vmatpush.bf16.msra.mxu0 %v2523
  %2674 = vmatpush.bf16.msra.mxu0 %v2522
  %2675 = vmatpush.bf16.msra.mxu0 %v2521
  %2676 = vmatpush.bf16.msra.mxu0 %v2520
  %2677 = vmatpush.bf16.msra.mxu0 %v2519
  %2678 = vmatpush.bf16.msra.mxu0 %v2518
  %2679 = vmatmul.bf16.gmra.mxu0 %v2211
  %v2680 = vpop.f32.mrf.mxu0
  %v2681 = vadd.f32 %v2668, %v2680
  %v2682 = vpop.f32.mrf.mxu0
  %2683 = vdwg.mxu0
  %2684 = vmatpush.bf16.msra.mxu0 %v2533
  %2685 = vmatpush.bf16.msra.mxu0 %v2532
  %2686 = vmatpush.bf16.msra.mxu0 %v2531
  %2687 = vmatpush.bf16.msra.mxu0 %v2530
  %2688 = vmatpush.bf16.msra.mxu0 %v2529
  %2689 = vmatpush.bf16.msra.mxu0 %v2528
  %2690 = vmatpush.bf16.msra.mxu0 %v2527
  %2691 = vmatpush.bf16.msra.mxu0 %v2526
  %2692 = vmatmul.bf16.gmra.mxu0 %v2212
  %v2693 = vpop.f32.mrf.mxu0
  %v2694 = vadd.f32 %v2681, %v2693
  %v2695 = vpop.f32.mrf.mxu0
  %2696 = vdwg.mxu0
  %2697 = vmatpush.bf16.msra.mxu0 %v2541
  %2698 = vmatpush.bf16.msra.mxu0 %v2540
  %2699 = vmatpush.bf16.msra.mxu0 %v2539
  %2700 = vmatpush.bf16.msra.mxu0 %v2538
  %2701 = vmatpush.bf16.msra.mxu0 %v2537
  %2702 = vmatpush.bf16.msra.mxu0 %v2536
  %2703 = vmatpush.bf16.msra.mxu0 %v2535
  %2704 = vmatpush.bf16.msra.mxu0 %v2534
  %2705 = vmatmul.bf16.gmra.mxu0 %v2213
  %v2706 = vpop.f32.mrf.mxu0
  %v2707 = vadd.f32 %v2694, %v2706
  %v2708 = vpop.f32.mrf.mxu0
  %2709 = vdwg.mxu0
  %2710 = vst.msk [vmem:[%s14] sm:$0xf] %vm2060, %v2707
  // Predicated region
  $region50: #{active_sensing_forward.4} parent=0 // pred_check
    _
  $region51: #{active_sensing_forward.4} parent=0 // pred_check_branch
    %2712 = sbr.rel (0) target = $region53
  $region52: #{active_sensing_forward.4} parent=0 // pred_region
    _
  $region53: #{active_sensing_forward.4} parent=0 // pred_fallthru
    _
  // Predicated region
  $region54: #{active_sensing_forward.4} parent=0 // pred_check
    _
  $region55: #{active_sensing_forward.4} parent=0 // pred_check_branch
    %2714 = sbr.rel (0) target = $region57
  $region56: #{active_sensing_forward.4} parent=0 // pred_region
    _
  $region57: #{active_sensing_forward.4} parent=0 // pred_fallthru
    _
  // Predicated region
  $region58: #{active_sensing_forward.4} parent=0 // pred_check
    _
  $region59: #{active_sensing_forward.4} parent=0 // pred_check_branch
    %2716 = sbr.rel (0) target = $region61
  $region60: #{active_sensing_forward.4} parent=0 // pred_region
    _
  $region61: #{active_sensing_forward.4} parent=0 // pred_fallthru
    _
  // Predicated region
  $region62: #{active_sensing_forward.4} parent=0 // pred_check
    _
  $region63: #{active_sensing_forward.4} parent=0 // pred_check_branch
    %2718 = sbr.rel (0) target = $region65
  $region64: #{active_sensing_forward.4} parent=0 // pred_region
    _
  $region65: #{active_sensing_forward.4} parent=0 // pred_fallthru
    _
  // Predicated region
  $region66: #{active_sensing_forward.4} parent=0 // pred_check
    _
  $region67: #{active_sensing_forward.4} parent=0 // pred_check_branch
    %2720 = sbr.rel (0) target = $region69
  $region68: #{active_sensing_forward.4} parent=0 // pred_region
    _
  $region69: #{active_sensing_forward.4} parent=0 // pred_fallthru
    _
  // Predicated region
  $region70: #{active_sensing_forward.4} parent=0 // pred_check
    _
  $region71: #{active_sensing_forward.4} parent=0 // pred_check_branch
    %2722 = sbr.rel (0) target = $region73
  $region72: #{active_sensing_forward.4} parent=0 // pred_region
    _
  $region73: #{active_sensing_forward.4} parent=0 // pred_fallthru
    _

</llo_original>
